<compile_context>
chip_gen: v7x
topology: tpu7x:2x2x1
jax: 0.10.0
libtpu: 0.0.40
codegen_flags: <defaults>
</compile_context>

<pallas_src>
import jax
import jax.numpy as jnp
from jax import lax
from jax.experimental import pallas as pl
from jax.experimental.pallas import tpu as pltpu


# ---------------------------------------------------------------------------
# Fused Pallas kernel
# ---------------------------------------------------------------------------
def _make_fused_attention_kernel(num_heads, key_dim, head_dim, H, W, pad):
    N = H * W
    nh_kd = num_heads * key_dim

    def kernel(x_ref, qkvw_ref, qkvb_ref, pew_ref, peb_ref, projw_ref,
               projb_ref, o_ref, vbuf_ref):
        C = o_ref.shape[2]

        x = x_ref[0]                                          # (N, C) f32

        # ---- qkv 1x1 conv (+folded BN; q rows pre-scaled by key_dim**-0.5) ----
        qkv = jnp.dot(x.astype(jnp.bfloat16), qkvw_ref[...],
                      preferred_element_type=jnp.float32) + qkvb_ref[...]
        q_all = qkv[:, :nh_kd].astype(jnp.bfloat16)           # (N, nh*kd)
        k_all = qkv[:, nh_kd:2 * nh_kd].astype(jnp.bfloat16)  # (N, nh*kd)
        v_all = qkv[:, 2 * nh_kd:]                            # (N, C) f32 (PE path)
        v_allb = v_all.astype(jnp.bfloat16)                   # MXU path

        # ---- per-head softmax attention, heads unrolled in-kernel ----
        head_outs = []
        for hh in range(num_heads):
            q_h = q_all[:, hh * key_dim:(hh + 1) * key_dim]
            k_h = k_all[:, hh * key_dim:(hh + 1) * key_dim]
            v_h = v_allb[:, hh * head_dim:(hh + 1) * head_dim]
            # scores[n, m] = sum_d q[n, d] * k[m, d]  (scale already folded in)
            s = lax.dot_general(q_h, k_h, (((1,), (1,)), ((), ())),
                                preferred_element_type=jnp.float32)   # (N, N)
            s = s - jnp.max(s, axis=-1, keepdims=True)
            e = jnp.exp(s)
            p = e * pl.reciprocal(jnp.sum(e, axis=-1, keepdims=True),
                                  approx=True)
            head_outs.append(jnp.dot(p.astype(jnp.bfloat16), v_h,
                                     preferred_element_type=jnp.float32))
        attn_out = jnp.concatenate(head_outs, axis=1)         # (N, C) f32

        # ---- depthwise 3x3 PE conv on the flattened (N, C) v slab ----
        pw = pew_ref[...]                                     # (9, C) f32
        col = lax.broadcasted_iota(jnp.int32, (N, 1), 0) % W
        ok_l = col >= 1                                       # col-1 in range
        ok_r = col < (W - 1)                                  # col+1 in range

        # zero halos + drop v into the middle of the scratch slab (aligned stores)
        zeros_pad = jnp.zeros((pad, C), jnp.float32)
        vbuf_ref[pl.ds(0, pad), :] = zeros_pad
        vbuf_ref[pl.ds(pad + N, pad), :] = zeros_pad
        vbuf_ref[pl.ds(pad, N), :] = v_all

        pe = v_all * pw[4:5, :]                               # center tap (0, 0)
        for dy in (-1, 0, 1):
            for dx in (-1, 0, 1):
                if dy == 0 and dx == 0:
                    continue
                t = (dy + 1) * 3 + (dx + 1)
                sh = dy * W + dx
                # v[n + sh] with zero fill for vertically out-of-range rows
                shifted = vbuf_ref[pl.ds(pad + sh, N), :]
                if dx == -1:                                  # mask horizontal wrap
                    shifted = jnp.where(ok_l, shifted, 0.0)
                elif dx == 1:
                    shifted = jnp.where(ok_r, shifted, 0.0)
                pe = pe + shifted * pw[t:t + 1, :]
        pe = pe + peb_ref[...]

        # ---- residual add + proj 1x1 conv (+folded BN) ----
        y = jnp.dot((attn_out + pe).astype(jnp.bfloat16), projw_ref[...],
                    preferred_element_type=jnp.float32) + projb_ref[...]
        o_ref[0] = y                                          # lane-dense (N, C)

    return kernel


# ---------------------------------------------------------------------------
# Wrapper
# ---------------------------------------------------------------------------
def attention_forward(x, p, num_heads, key_dim, head_dim):
    B, C, H, W = x.shape
    N = H * W
    h = p["qkv_w_t"].shape[1]
    pad = ((W + 1 + 7) // 8) * 8                              # halo rows, 8-aligned
    x_nc = jnp.transpose(x.reshape(B, C, N), (0, 2, 1))       # (B, N, C) in XLA

    out_nc = pl.pallas_call(
        _make_fused_attention_kernel(num_heads, key_dim, head_dim, H, W, pad),
        out_shape=jax.ShapeDtypeStruct((B, N, C), jnp.float32),
        grid=(B,),
        in_specs=[
            pl.BlockSpec((1, N, C), lambda b: (b, 0, 0)),     # x (per batch)
            pl.BlockSpec((C, h), lambda b: (0, 0)),           # qkv weight (bf16)
            pl.BlockSpec((1, h), lambda b: (0, 0)),           # qkv bias
            pl.BlockSpec((9, C), lambda b: (0, 0)),           # pe taps
            pl.BlockSpec((1, C), lambda b: (0, 0)),           # pe bias
            pl.BlockSpec((C, C), lambda b: (0, 0)),           # proj weight (bf16)
            pl.BlockSpec((1, C), lambda b: (0, 0)),           # proj bias
        ],
        out_specs=pl.BlockSpec((1, N, C), lambda b: (b, 0, 0)),
        scratch_shapes=[pltpu.VMEM((N + 2 * pad, C), jnp.float32)],
        compiler_params=pltpu.CompilerParams(dimension_semantics=("parallel",)),
    )(x_nc, p["qkv_w_t"], p["qkv_b"], p["pe_w9"], p["pe_b"],
      p["proj_w_t"], p["proj_b"])

    return jnp.transpose(out_nc, (0, 2, 1)).reshape(B, C, H, W)


# ---------------------------------------------------------------------------
# Pure-JAX reference (PyTorch semantics, f32 throughout)
# ---------------------------------------------------------------------------
def ref_forward(x, p, num_heads, key_dim, head_dim, scale):
    B, C, H, W = x.shape
    N = H * W
    xf = x.reshape(B, C, N)
    qkv = jnp.einsum("oc,bcn->bon", p["qkv_w"], xf) + p["qkv_b_vec"][None, :, None]
    qkv = qkv.reshape(B, num_heads, 2 * key_dim + head_dim, N)
    q, k, v = jnp.split(qkv, [key_dim, 2 * key_dim], axis=2)
    attn = jnp.einsum("bhdn,bhdm->bhnm", q, k) * scale
    attn = jax.nn.softmax(attn, axis=-1)
    out = jnp.einsum("bhdm,bhnm->bhdn", v, attn).reshape(B, C, H, W)
    v_img = v.reshape(B, C, H, W)
    pe = lax.conv_general_dilated(
        v_img, p["pe_w_oihw"], (1, 1), "SAME", feature_group_count=C,
        dimension_numbers=("NCHW", "OIHW", "NCHW"),
    ) + p["pe_b_vec"][None, :, None, None]
    xs = (out + pe).reshape(B, C, N)
    proj = jnp.einsum("oc,bcn->bon", p["proj_w"], xs) + p["proj_b_vec"][None, :, None]
    return proj.reshape(B, C, H, W)


# ---------------------------------------------------------------------------
# Deterministic parameter init (Conv2d weights + folded eval-mode BatchNorm)
# ---------------------------------------------------------------------------
def init_params(key, dim, num_heads, attn_ratio=0.5, eps=1e-3):
    head_dim = dim // num_heads
    key_dim = int(head_dim * attn_ratio)
    nh_kd = key_dim * num_heads
    h = dim + nh_kd * 2
    scale = float(key_dim) ** -0.5
    ks = jax.random.split(key, 6)

    def make_bn(k, c):
        k1, k2, k3, k4 = jax.random.split(k, 4)
        gamma = 1.0 + 0.1 * jax.random.normal(k1, (c,), jnp.float32)
        beta = 0.05 * jax.random.normal(k2, (c,), jnp.float32)
        mean = 0.02 * jax.random.normal(k3, (c,), jnp.float32)
        var = 1.0 + 0.1 * jax.random.uniform(k4, (c,), jnp.float32)
        return gamma, beta, mean, var

    def fold(w, bnp):
        gamma, beta, mean, var = bnp
        s = gamma / jnp.sqrt(var + eps)
        wf = w * s.reshape((-1,) + (1,) * (w.ndim - 1))
        bf = beta - mean * s
        return wf, bf

    qkv_w = 0.1 * jax.random.normal(ks[0], (h, dim), jnp.float32)        # 1x1 conv
    proj_w = 0.1 * jax.random.normal(ks[1], (dim, dim), jnp.float32)     # 1x1 conv
    pe_w = 0.1 * jax.random.normal(ks[2], (dim, 1, 3, 3), jnp.float32)   # depthwise

    qkv_wf, qkv_bf = fold(qkv_w, make_bn(ks[3], h))
    proj_wf, proj_bf = fold(proj_w, make_bn(ks[4], dim))
    pe_wf, pe_bf = fold(pe_w, make_bn(ks[5], dim))

    # Kernel-side qkv: permute output channels to [q heads | k heads | v heads]
    # and fold the softmax scale into the q rows (one-time host transform).
    g = 2 * key_dim + head_dim
    perm = ([hh * g + d for hh in range(num_heads) for d in range(key_dim)]
            + [hh * g + key_dim + d for hh in range(num_heads) for d in range(key_dim)]
            + [hh * g + 2 * key_dim + d for hh in range(num_heads) for d in range(head_dim)])
    perm = jnp.array(perm, jnp.int32)
    qkv_wp = qkv_wf[perm].at[:nh_kd].multiply(scale)      # (h, dim)
    qkv_bp = qkv_bf[perm].at[:nh_kd].multiply(scale)      # (h,)

    params = {
        # kernel-side layouts (MXU matmul weights pre-cast to bf16)
        "qkv_w_t": qkv_wp.T.astype(jnp.bfloat16),          # (dim, h)
        "qkv_b": qkv_bp.reshape(1, h),
        "proj_w_t": proj_wf.T.astype(jnp.bfloat16),        # (dim, dim)
        "proj_b": proj_bf.reshape(1, dim),
        "pe_w9": jnp.transpose(pe_wf[:, 0], (1, 2, 0)).reshape(9, dim),  # (9, dim)
        "pe_b": pe_bf.reshape(1, dim),
        # reference-side (PyTorch-style) layouts
        "qkv_w": qkv_wf, "qkv_b_vec": qkv_bf,
        "proj_w": proj_wf, "proj_b_vec": proj_bf,
        "pe_w_oihw": pe_wf, "pe_b_vec": pe_bf,
    }
    cfg = dict(num_heads=num_heads, key_dim=key_dim, head_dim=head_dim, scale=scale)
    return params, cfg


if __name__ == "__main__":
    B, DIM, H, W = 2, 64, 8, 8        # dim=64, num_heads=8 -> head_dim=8, key_dim=4
    NUM_HEADS = 8
    key = jax.random.PRNGKey(0)
    kp, kx = jax.random.split(key)
    params, cfg = init_params(kp, DIM, NUM_HEADS)
    x = jax.random.normal(kx, (B, DIM, H, W), jnp.float32)

    out = attention_forward(x, params, cfg["num_heads"], cfg["key_dim"],
                            cfg["head_dim"])
    out = jax.block_until_ready(out)

    ref = ref_forward(x, params, cfg["num_heads"], cfg["key_dim"],
                      cfg["head_dim"], cfg["scale"])
    assert out.shape == (B, DIM, H, W)
    err = float(jnp.max(jnp.abs(out - ref)))
    # tolerance loosened vs. a pure-f32 path: MXU operands are bf16
    # (f32 accumulation) and the softmax uses the EUP approx reciprocal.
    assert err < 5e-2, f"max abs error {err}"
    print("KERNEL_OK")
</pallas_src>

<mosaic_0001>
module attributes {stable_mosaic.version = 11 : i64} {
  func.func @kernel(%arg0: i32, %arg1: memref<1x64x64xf32, #tpu.memory_space<vmem>>, %arg2: memref<64x128xbf16, #tpu.memory_space<vmem>>, %arg3: memref<1x128xf32, #tpu.memory_space<vmem>>, %arg4: memref<9x64xf32, #tpu.memory_space<vmem>>, %arg5: memref<1x64xf32, #tpu.memory_space<vmem>>, %arg6: memref<64x64xbf16, #tpu.memory_space<vmem>>, %arg7: memref<1x64xf32, #tpu.memory_space<vmem>>, %arg8: memref<1x64x64xf32, #tpu.memory_space<vmem>>, %arg9: memref<96x64xf32, #tpu.memory_space<vmem>>) attributes {dimension_semantics = [#tpu.dimension_semantics<parallel>], iteration_bounds = array<i64: 2>, scalar_prefetch = 0 : i64, scratch_operands = 1 : i64, tpu.core_type = #tpu.core_type<tc>, window_params = [{transform_indices = @transform_0, window_bounds = array<i64: 1, 64, 64>}, {pipeline_mode = #tpu.pipeline_mode<synchronous>, transform_indices = @transform_1, window_bounds = array<i64: 64, 128>}, {pipeline_mode = #tpu.pipeline_mode<synchronous>, transform_indices = @transform_2, window_bounds = array<i64: 1, 128>}, {pipeline_mode = #tpu.pipeline_mode<synchronous>, transform_indices = @transform_3, window_bounds = array<i64: 9, 64>}, {pipeline_mode = #tpu.pipeline_mode<synchronous>, transform_indices = @transform_4, window_bounds = array<i64: 1, 64>}, {pipeline_mode = #tpu.pipeline_mode<synchronous>, transform_indices = @transform_5, window_bounds = array<i64: 64, 64>}, {pipeline_mode = #tpu.pipeline_mode<synchronous>, transform_indices = @transform_6, window_bounds = array<i64: 1, 64>}, {transform_indices = @transform_7, window_bounds = array<i64: 1, 64, 64>}]} {
    %c0 = arith.constant 0 : index
    %c0_0 = arith.constant 0 : index
    %c0_1 = arith.constant 0 : index
    %0 = vector.load %arg1[%c0, %c0_0, %c0_1] : memref<1x64x64xf32, #tpu.memory_space<vmem>>, vector<1x64x64xf32>
    %1 = vector.shape_cast %0 : vector<1x64x64xf32> to vector<64x64xf32>
    %2 = arith.truncf %1 : vector<64x64xf32> to vector<64x64xbf16>
    %c0_2 = arith.constant 0 : index
    %c0_3 = arith.constant 0 : index
    %3 = vector.load %arg2[%c0_2, %c0_3] : memref<64x128xbf16, #tpu.memory_space<vmem>>, vector<64x128xbf16>
    %cst = arith.constant dense<0.000000e+00> : vector<64x128xf32>
    %4 = tpu.matmul %2, %3, %cst {dimension_numbers = #tpu.dot_dimension_numbers<[1], [0], [0], [1], [0, 0, 1, 1], [], []>} : vector<64x64xbf16>, vector<64x128xbf16>, vector<64x128xf32> -> vector<64x128xf32>
    %c0_4 = arith.constant 0 : index
    %c0_5 = arith.constant 0 : index
    %5 = vector.load %arg3[%c0_4, %c0_5] : memref<1x128xf32, #tpu.memory_space<vmem>>, vector<1x128xf32>
    %6 = vector.broadcast %5 : vector<1x128xf32> to vector<64x128xf32>
    %7 = arith.addf %4, %6 : vector<64x128xf32>
    %8 = vector.extract_strided_slice %7 {offsets = [0, 0], sizes = [64, 32], strides = [1, 1]} : vector<64x128xf32> to vector<64x32xf32>
    %9 = arith.truncf %8 : vector<64x32xf32> to vector<64x32xbf16>
    %10 = vector.extract_strided_slice %7 {offsets = [0, 32], sizes = [64, 32], strides = [1, 1]} : vector<64x128xf32> to vector<64x32xf32>
    %11 = arith.truncf %10 : vector<64x32xf32> to vector<64x32xbf16>
    %12 = vector.extract_strided_slice %7 {offsets = [0, 64], sizes = [64, 64], strides = [1, 1]} : vector<64x128xf32> to vector<64x64xf32>
    %13 = arith.truncf %12 : vector<64x64xf32> to vector<64x64xbf16>
    %14 = vector.extract_strided_slice %9 {offsets = [0, 0], sizes = [64, 4], strides = [1, 1]} : vector<64x32xbf16> to vector<64x4xbf16>
    %15 = vector.extract_strided_slice %11 {offsets = [0, 0], sizes = [64, 4], strides = [1, 1]} : vector<64x32xbf16> to vector<64x4xbf16>
    %16 = vector.extract_strided_slice %13 {offsets = [0, 0], sizes = [64, 8], strides = [1, 1]} : vector<64x64xbf16> to vector<64x8xbf16>
    %cst_6 = arith.constant dense<0.000000e+00> : vector<64x64xf32>
    %17 = tpu.matmul %14, %15, %cst_6 {dimension_numbers = #tpu.dot_dimension_numbers<[1], [1], [0], [0], [0, 0, 1, 0], [], []>} : vector<64x4xbf16>, vector<64x4xbf16>, vector<64x64xf32> -> vector<64x64xf32>
    %cst_7 = arith.constant dense<0xFF800000> : vector<64xf32>
    %18 = vector.multi_reduction <maximumf>, %17, %cst_7 [1] : vector<64x64xf32> to vector<64xf32>
    %19 = vector.shape_cast %18 : vector<64xf32> to vector<64x1xf32>
    %20 = vector.broadcast %19 : vector<64x1xf32> to vector<64x64xf32>
    %21 = arith.subf %17, %20 : vector<64x64xf32>
    %22 = math.exp %21 : vector<64x64xf32>
    %cst_8 = arith.constant dense<0.000000e+00> : vector<64xf32>
    %23 = vector.multi_reduction <add>, %22, %cst_8 [1] : vector<64x64xf32> to vector<64xf32>
    %24 = vector.shape_cast %23 : vector<64xf32> to vector<64x1xf32>
    %25 = tpu.reciprocal %24 {approx = true} : vector<64x1xf32> -> vector<64x1xf32>
    %26 = vector.broadcast %25 : vector<64x1xf32> to vector<64x64xf32>
    %27 = arith.mulf %22, %26 : vector<64x64xf32>
    %28 = arith.truncf %27 : vector<64x64xf32> to vector<64x64xbf16>
    %cst_9 = arith.constant dense<0.000000e+00> : vector<64x8xf32>
    %29 = tpu.matmul %28, %16, %cst_9 {dimension_numbers = #tpu.dot_dimension_numbers<[1], [0], [0], [1], [0, 0, 1, 1], [], []>} : vector<64x64xbf16>, vector<64x8xbf16>, vector<64x8xf32> -> vector<64x8xf32>
    %30 = vector.extract_strided_slice %9 {offsets = [0, 4], sizes = [64, 4], strides = [1, 1]} : vector<64x32xbf16> to vector<64x4xbf16>
    %31 = vector.extract_strided_slice %11 {offsets = [0, 4], sizes = [64, 4], strides = [1, 1]} : vector<64x32xbf16> to vector<64x4xbf16>
    %32 = vector.extract_strided_slice %13 {offsets = [0, 8], sizes = [64, 8], strides = [1, 1]} : vector<64x64xbf16> to vector<64x8xbf16>
    %cst_10 = arith.constant dense<0.000000e+00> : vector<64x64xf32>
    %33 = tpu.matmul %30, %31, %cst_10 {dimension_numbers = #tpu.dot_dimension_numbers<[1], [1], [0], [0], [0, 0, 1, 0], [], []>} : vector<64x4xbf16>, vector<64x4xbf16>, vector<64x64xf32> -> vector<64x64xf32>
    %cst_11 = arith.constant dense<0xFF800000> : vector<64xf32>
    %34 = vector.multi_reduction <maximumf>, %33, %cst_11 [1] : vector<64x64xf32> to vector<64xf32>
    %35 = vector.shape_cast %34 : vector<64xf32> to vector<64x1xf32>
    %36 = vector.broadcast %35 : vector<64x1xf32> to vector<64x64xf32>
    %37 = arith.subf %33, %36 : vector<64x64xf32>
    %38 = math.exp %37 : vector<64x64xf32>
    %cst_12 = arith.constant dense<0.000000e+00> : vector<64xf32>
    %39 = vector.multi_reduction <add>, %38, %cst_12 [1] : vector<64x64xf32> to vector<64xf32>
    %40 = vector.shape_cast %39 : vector<64xf32> to vector<64x1xf32>
    %41 = tpu.reciprocal %40 {approx = true} : vector<64x1xf32> -> vector<64x1xf32>
    %42 = vector.broadcast %41 : vector<64x1xf32> to vector<64x64xf32>
    %43 = arith.mulf %38, %42 : vector<64x64xf32>
    %44 = arith.truncf %43 : vector<64x64xf32> to vector<64x64xbf16>
    %cst_13 = arith.constant dense<0.000000e+00> : vector<64x8xf32>
    %45 = tpu.matmul %44, %32, %cst_13 {dimension_numbers = #tpu.dot_dimension_numbers<[1], [0], [0], [1], [0, 0, 1, 1], [], []>} : vector<64x64xbf16>, vector<64x8xbf16>, vector<64x8xf32> -> vector<64x8xf32>
    %46 = vector.extract_strided_slice %9 {offsets = [0, 8], sizes = [64, 4], strides = [1, 1]} : vector<64x32xbf16> to vector<64x4xbf16>
    %47 = vector.extract_strided_slice %11 {offsets = [0, 8], sizes = [64, 4], strides = [1, 1]} : vector<64x32xbf16> to vector<64x4xbf16>
    %48 = vector.extract_strided_slice %13 {offsets = [0, 16], sizes = [64, 8], strides = [1, 1]} : vector<64x64xbf16> to vector<64x8xbf16>
    %cst_14 = arith.constant dense<0.000000e+00> : vector<64x64xf32>
    %49 = tpu.matmul %46, %47, %cst_14 {dimension_numbers = #tpu.dot_dimension_numbers<[1], [1], [0], [0], [0, 0, 1, 0], [], []>} : vector<64x4xbf16>, vector<64x4xbf16>, vector<64x64xf32> -> vector<64x64xf32>
    %cst_15 = arith.constant dense<0xFF800000> : vector<64xf32>
    %50 = vector.multi_reduction <maximumf>, %49, %cst_15 [1] : vector<64x64xf32> to vector<64xf32>
    %51 = vector.shape_cast %50 : vector<64xf32> to vector<64x1xf32>
    %52 = vector.broadcast %51 : vector<64x1xf32> to vector<64x64xf32>
    %53 = arith.subf %49, %52 : vector<64x64xf32>
    %54 = math.exp %53 : vector<64x64xf32>
    %cst_16 = arith.constant dense<0.000000e+00> : vector<64xf32>
    %55 = vector.multi_reduction <add>, %54, %cst_16 [1] : vector<64x64xf32> to vector<64xf32>
    %56 = vector.shape_cast %55 : vector<64xf32> to vector<64x1xf32>
    %57 = tpu.reciprocal %56 {approx = true} : vector<64x1xf32> -> vector<64x1xf32>
    %58 = vector.broadcast %57 : vector<64x1xf32> to vector<64x64xf32>
    %59 = arith.mulf %54, %58 : vector<64x64xf32>
    %60 = arith.truncf %59 : vector<64x64xf32> to vector<64x64xbf16>
    %cst_17 = arith.constant dense<0.000000e+00> : vector<64x8xf32>
    %61 = tpu.matmul %60, %48, %cst_17 {dimension_numbers = #tpu.dot_dimension_numbers<[1], [0], [0], [1], [0, 0, 1, 1], [], []>} : vector<64x64xbf16>, vector<64x8xbf16>, vector<64x8xf32> -> vector<64x8xf32>
    %62 = vector.extract_strided_slice %9 {offsets = [0, 12], sizes = [64, 4], strides = [1, 1]} : vector<64x32xbf16> to vector<64x4xbf16>
    %63 = vector.extract_strided_slice %11 {offsets = [0, 12], sizes = [64, 4], strides = [1, 1]} : vector<64x32xbf16> to vector<64x4xbf16>
    %64 = vector.extract_strided_slice %13 {offsets = [0, 24], sizes = [64, 8], strides = [1, 1]} : vector<64x64xbf16> to vector<64x8xbf16>
    %cst_18 = arith.constant dense<0.000000e+00> : vector<64x64xf32>
    %65 = tpu.matmul %62, %63, %cst_18 {dimension_numbers = #tpu.dot_dimension_numbers<[1], [1], [0], [0], [0, 0, 1, 0], [], []>} : vector<64x4xbf16>, vector<64x4xbf16>, vector<64x64xf32> -> vector<64x64xf32>
    %cst_19 = arith.constant dense<0xFF800000> : vector<64xf32>
    %66 = vector.multi_reduction <maximumf>, %65, %cst_19 [1] : vector<64x64xf32> to vector<64xf32>
    %67 = vector.shape_cast %66 : vector<64xf32> to vector<64x1xf32>
    %68 = vector.broadcast %67 : vector<64x1xf32> to vector<64x64xf32>
    %69 = arith.subf %65, %68 : vector<64x64xf32>
    %70 = math.exp %69 : vector<64x64xf32>
    %cst_20 = arith.constant dense<0.000000e+00> : vector<64xf32>
    %71 = vector.multi_reduction <add>, %70, %cst_20 [1] : vector<64x64xf32> to vector<64xf32>
    %72 = vector.shape_cast %71 : vector<64xf32> to vector<64x1xf32>
    %73 = tpu.reciprocal %72 {approx = true} : vector<64x1xf32> -> vector<64x1xf32>
    %74 = vector.broadcast %73 : vector<64x1xf32> to vector<64x64xf32>
    %75 = arith.mulf %70, %74 : vector<64x64xf32>
    %76 = arith.truncf %75 : vector<64x64xf32> to vector<64x64xbf16>
    %cst_21 = arith.constant dense<0.000000e+00> : vector<64x8xf32>
    %77 = tpu.matmul %76, %64, %cst_21 {dimension_numbers = #tpu.dot_dimension_numbers<[1], [0], [0], [1], [0, 0, 1, 1], [], []>} : vector<64x64xbf16>, vector<64x8xbf16>, vector<64x8xf32> -> vector<64x8xf32>
    %78 = vector.extract_strided_slice %9 {offsets = [0, 16], sizes = [64, 4], strides = [1, 1]} : vector<64x32xbf16> to vector<64x4xbf16>
    %79 = vector.extract_strided_slice %11 {offsets = [0, 16], sizes = [64, 4], strides = [1, 1]} : vector<64x32xbf16> to vector<64x4xbf16>
    %80 = vector.extract_strided_slice %13 {offsets = [0, 32], sizes = [64, 8], strides = [1, 1]} : vector<64x64xbf16> to vector<64x8xbf16>
    %cst_22 = arith.constant dense<0.000000e+00> : vector<64x64xf32>
    %81 = tpu.matmul %78, %79, %cst_22 {dimension_numbers = #tpu.dot_dimension_numbers<[1], [1], [0], [0], [0, 0, 1, 0], [], []>} : vector<64x4xbf16>, vector<64x4xbf16>, vector<64x64xf32> -> vector<64x64xf32>
    %cst_23 = arith.constant dense<0xFF800000> : vector<64xf32>
    %82 = vector.multi_reduction <maximumf>, %81, %cst_23 [1] : vector<64x64xf32> to vector<64xf32>
    %83 = vector.shape_cast %82 : vector<64xf32> to vector<64x1xf32>
    %84 = vector.broadcast %83 : vector<64x1xf32> to vector<64x64xf32>
    %85 = arith.subf %81, %84 : vector<64x64xf32>
    %86 = math.exp %85 : vector<64x64xf32>
    %cst_24 = arith.constant dense<0.000000e+00> : vector<64xf32>
    %87 = vector.multi_reduction <add>, %86, %cst_24 [1] : vector<64x64xf32> to vector<64xf32>
    %88 = vector.shape_cast %87 : vector<64xf32> to vector<64x1xf32>
    %89 = tpu.reciprocal %88 {approx = true} : vector<64x1xf32> -> vector<64x1xf32>
    %90 = vector.broadcast %89 : vector<64x1xf32> to vector<64x64xf32>
    %91 = arith.mulf %86, %90 : vector<64x64xf32>
    %92 = arith.truncf %91 : vector<64x64xf32> to vector<64x64xbf16>
    %cst_25 = arith.constant dense<0.000000e+00> : vector<64x8xf32>
    %93 = tpu.matmul %92, %80, %cst_25 {dimension_numbers = #tpu.dot_dimension_numbers<[1], [0], [0], [1], [0, 0, 1, 1], [], []>} : vector<64x64xbf16>, vector<64x8xbf16>, vector<64x8xf32> -> vector<64x8xf32>
    %94 = vector.extract_strided_slice %9 {offsets = [0, 20], sizes = [64, 4], strides = [1, 1]} : vector<64x32xbf16> to vector<64x4xbf16>
    %95 = vector.extract_strided_slice %11 {offsets = [0, 20], sizes = [64, 4], strides = [1, 1]} : vector<64x32xbf16> to vector<64x4xbf16>
    %96 = vector.extract_strided_slice %13 {offsets = [0, 40], sizes = [64, 8], strides = [1, 1]} : vector<64x64xbf16> to vector<64x8xbf16>
    %cst_26 = arith.constant dense<0.000000e+00> : vector<64x64xf32>
    %97 = tpu.matmul %94, %95, %cst_26 {dimension_numbers = #tpu.dot_dimension_numbers<[1], [1], [0], [0], [0, 0, 1, 0], [], []>} : vector<64x4xbf16>, vector<64x4xbf16>, vector<64x64xf32> -> vector<64x64xf32>
    %cst_27 = arith.constant dense<0xFF800000> : vector<64xf32>
    %98 = vector.multi_reduction <maximumf>, %97, %cst_27 [1] : vector<64x64xf32> to vector<64xf32>
    %99 = vector.shape_cast %98 : vector<64xf32> to vector<64x1xf32>
    %100 = vector.broadcast %99 : vector<64x1xf32> to vector<64x64xf32>
    %101 = arith.subf %97, %100 : vector<64x64xf32>
    %102 = math.exp %101 : vector<64x64xf32>
    %cst_28 = arith.constant dense<0.000000e+00> : vector<64xf32>
    %103 = vector.multi_reduction <add>, %102, %cst_28 [1] : vector<64x64xf32> to vector<64xf32>
    %104 = vector.shape_cast %103 : vector<64xf32> to vector<64x1xf32>
    %105 = tpu.reciprocal %104 {approx = true} : vector<64x1xf32> -> vector<64x1xf32>
    %106 = vector.broadcast %105 : vector<64x1xf32> to vector<64x64xf32>
    %107 = arith.mulf %102, %106 : vector<64x64xf32>
    %108 = arith.truncf %107 : vector<64x64xf32> to vector<64x64xbf16>
    %cst_29 = arith.constant dense<0.000000e+00> : vector<64x8xf32>
    %109 = tpu.matmul %108, %96, %cst_29 {dimension_numbers = #tpu.dot_dimension_numbers<[1], [0], [0], [1], [0, 0, 1, 1], [], []>} : vector<64x64xbf16>, vector<64x8xbf16>, vector<64x8xf32> -> vector<64x8xf32>
    %110 = vector.extract_strided_slice %9 {offsets = [0, 24], sizes = [64, 4], strides = [1, 1]} : vector<64x32xbf16> to vector<64x4xbf16>
    %111 = vector.extract_strided_slice %11 {offsets = [0, 24], sizes = [64, 4], strides = [1, 1]} : vector<64x32xbf16> to vector<64x4xbf16>
    %112 = vector.extract_strided_slice %13 {offsets = [0, 48], sizes = [64, 8], strides = [1, 1]} : vector<64x64xbf16> to vector<64x8xbf16>
    %cst_30 = arith.constant dense<0.000000e+00> : vector<64x64xf32>
    %113 = tpu.matmul %110, %111, %cst_30 {dimension_numbers = #tpu.dot_dimension_numbers<[1], [1], [0], [0], [0, 0, 1, 0], [], []>} : vector<64x4xbf16>, vector<64x4xbf16>, vector<64x64xf32> -> vector<64x64xf32>
    %cst_31 = arith.constant dense<0xFF800000> : vector<64xf32>
    %114 = vector.multi_reduction <maximumf>, %113, %cst_31 [1] : vector<64x64xf32> to vector<64xf32>
    %115 = vector.shape_cast %114 : vector<64xf32> to vector<64x1xf32>
    %116 = vector.broadcast %115 : vector<64x1xf32> to vector<64x64xf32>
    %117 = arith.subf %113, %116 : vector<64x64xf32>
    %118 = math.exp %117 : vector<64x64xf32>
    %cst_32 = arith.constant dense<0.000000e+00> : vector<64xf32>
    %119 = vector.multi_reduction <add>, %118, %cst_32 [1] : vector<64x64xf32> to vector<64xf32>
    %120 = vector.shape_cast %119 : vector<64xf32> to vector<64x1xf32>
    %121 = tpu.reciprocal %120 {approx = true} : vector<64x1xf32> -> vector<64x1xf32>
    %122 = vector.broadcast %121 : vector<64x1xf32> to vector<64x64xf32>
    %123 = arith.mulf %118, %122 : vector<64x64xf32>
    %124 = arith.truncf %123 : vector<64x64xf32> to vector<64x64xbf16>
    %cst_33 = arith.constant dense<0.000000e+00> : vector<64x8xf32>
    %125 = tpu.matmul %124, %112, %cst_33 {dimension_numbers = #tpu.dot_dimension_numbers<[1], [0], [0], [1], [0, 0, 1, 1], [], []>} : vector<64x64xbf16>, vector<64x8xbf16>, vector<64x8xf32> -> vector<64x8xf32>
    %126 = vector.extract_strided_slice %9 {offsets = [0, 28], sizes = [64, 4], strides = [1, 1]} : vector<64x32xbf16> to vector<64x4xbf16>
    %127 = vector.extract_strided_slice %11 {offsets = [0, 28], sizes = [64, 4], strides = [1, 1]} : vector<64x32xbf16> to vector<64x4xbf16>
    %128 = vector.extract_strided_slice %13 {offsets = [0, 56], sizes = [64, 8], strides = [1, 1]} : vector<64x64xbf16> to vector<64x8xbf16>
    %cst_34 = arith.constant dense<0.000000e+00> : vector<64x64xf32>
    %129 = tpu.matmul %126, %127, %cst_34 {dimension_numbers = #tpu.dot_dimension_numbers<[1], [1], [0], [0], [0, 0, 1, 0], [], []>} : vector<64x4xbf16>, vector<64x4xbf16>, vector<64x64xf32> -> vector<64x64xf32>
    %cst_35 = arith.constant dense<0xFF800000> : vector<64xf32>
    %130 = vector.multi_reduction <maximumf>, %129, %cst_35 [1] : vector<64x64xf32> to vector<64xf32>
    %131 = vector.shape_cast %130 : vector<64xf32> to vector<64x1xf32>
    %132 = vector.broadcast %131 : vector<64x1xf32> to vector<64x64xf32>
    %133 = arith.subf %129, %132 : vector<64x64xf32>
    %134 = math.exp %133 : vector<64x64xf32>
    %cst_36 = arith.constant dense<0.000000e+00> : vector<64xf32>
    %135 = vector.multi_reduction <add>, %134, %cst_36 [1] : vector<64x64xf32> to vector<64xf32>
    %136 = vector.shape_cast %135 : vector<64xf32> to vector<64x1xf32>
    %137 = tpu.reciprocal %136 {approx = true} : vector<64x1xf32> -> vector<64x1xf32>
    %138 = vector.broadcast %137 : vector<64x1xf32> to vector<64x64xf32>
    %139 = arith.mulf %134, %138 : vector<64x64xf32>
    %140 = arith.truncf %139 : vector<64x64xf32> to vector<64x64xbf16>
    %cst_37 = arith.constant dense<0.000000e+00> : vector<64x8xf32>
    %141 = tpu.matmul %140, %128, %cst_37 {dimension_numbers = #tpu.dot_dimension_numbers<[1], [0], [0], [1], [0, 0, 1, 1], [], []>} : vector<64x64xbf16>, vector<64x8xbf16>, vector<64x8xf32> -> vector<64x8xf32>
    %142 = tpu.concatenate %29, %45, %61, %77, %93, %109, %125, %141 in 1 : vector<64x8xf32>, vector<64x8xf32>, vector<64x8xf32>, vector<64x8xf32>, vector<64x8xf32>, vector<64x8xf32>, vector<64x8xf32>, vector<64x8xf32> -> vector<64x64xf32>
    %c0_38 = arith.constant 0 : index
    %c0_39 = arith.constant 0 : index
    %143 = vector.load %arg4[%c0_38, %c0_39] : memref<9x64xf32, #tpu.memory_space<vmem>>, vector<9x64xf32>
    %144 = tpu.iota {dimensions = array<i32: 0>} : vector<64x1xi32>
    %c8_i32 = arith.constant 8 : i32
    %c0_i32 = arith.constant 0 : i32
    %145 = arith.cmpi eq, %c8_i32, %c0_i32 : i32
    %c1_i32 = arith.constant 1 : i32
    %146 = arith.select %145, %c1_i32, %c8_i32 : i32
    %147 = vector.broadcast %146 : i32 to vector<64x1xi32>
    %148 = arith.remsi %144, %147 : vector<64x1xi32>
    %c0_i32_40 = arith.constant 0 : i32
    %149 = vector.broadcast %c0_i32_40 : i32 to vector<64x1xi32>
    %150 = arith.cmpi ne, %148, %149 : vector<64x1xi32>
    %c0_i32_41 = arith.constant 0 : i32
    %151 = vector.broadcast %c0_i32_41 : i32 to vector<64x1xi32>
    %152 = arith.cmpi slt, %148, %151 : vector<64x1xi32>
    %c0_i32_42 = arith.constant 0 : i32
    %153 = arith.cmpi slt, %146, %c0_i32_42 : i32
    %154 = vector.broadcast %153 : i1 to vector<64x1xi1>
    %155 = vector.broadcast %154 : vector<64x1xi1> to vector<64x1xi1>
    %156 = arith.xori %152, %155 : vector<64x1xi1>
    %157 = arith.andi %156, %150 : vector<64x1xi1>
    %158 = vector.broadcast %146 : i32 to vector<64x1xi32>
    %159 = arith.addi %148, %158 : vector<64x1xi32>
    %160 = arith.select %157, %159, %148 : vector<64x1xi1>, vector<64x1xi32>
    %c1_i32_43 = arith.constant 1 : i32
    %161 = vector.broadcast %c1_i32_43 : i32 to vector<64x1xi32>
    %162 = arith.cmpi sge, %160, %161 : vector<64x1xi32>
    %c7_i32 = arith.constant 7 : i32
    %163 = vector.broadcast %c7_i32 : i32 to vector<64x1xi32>
    %164 = arith.cmpi slt, %160, %163 : vector<64x1xi32>
    %cst_44 = arith.constant 0.000000e+00 : f32
    %165 = vector.broadcast %cst_44 : f32 to vector<16x64xf32>
    %c0_45 = arith.constant 0 : index
    %c0_46 = arith.constant 0 : index
    %166 = vector.load %arg9[%c0_45, %c0_46] : memref<96x64xf32, #tpu.memory_space<vmem>>, vector<16x64xf32>
    tpu.vector_store %arg9[%c0_45, %c0_46], %165 {strides = array<i32>} : memref<96x64xf32, #tpu.memory_space<vmem>>, vector<16x64xf32>,
    %c80 = arith.constant 80 : index
    %c0_47 = arith.constant 0 : index
    %167 = vector.load %arg9[%c80, %c0_47] : memref<96x64xf32, #tpu.memory_space<vmem>>, vector<16x64xf32>
    tpu.vector_store %arg9[%c80, %c0_47], %165 {strides = array<i32>} : memref<96x64xf32, #tpu.memory_space<vmem>>, vector<16x64xf32>,
    %c16 = arith.constant 16 : index
    %c0_48 = arith.constant 0 : index
    %168 = vector.load %arg9[%c16, %c0_48] : memref<96x64xf32, #tpu.memory_space<vmem>>, vector<64x64xf32>
    tpu.vector_store %arg9[%c16, %c0_48], %12 {strides = array<i32>} : memref<96x64xf32, #tpu.memory_space<vmem>>, vector<64x64xf32>,
    %169 = vector.extract_strided_slice %143 {offsets = [4, 0], sizes = [1, 64], strides = [1, 1]} : vector<9x64xf32> to vector<1x64xf32>
    %170 = vector.broadcast %169 : vector<1x64xf32> to vector<64x64xf32>
    %171 = arith.mulf %12, %170 : vector<64x64xf32>
    %c7 = arith.constant 7 : index
    %c0_49 = arith.constant 0 : index
    %172 = vector.load %arg9[%c7, %c0_49] : memref<96x64xf32, #tpu.memory_space<vmem>>, vector<64x64xf32>
    %cst_50 = arith.constant 0.000000e+00 : f32
    %173 = vector.shape_cast %162 : vector<64x1xi1> to vector<64x1xi1>
    %174 = vector.broadcast %173 : vector<64x1xi1> to vector<64x64xi1>
    %175 = vector.broadcast %cst_50 : f32 to vector<64x64xf32>
    %176 = arith.select %174, %172, %175 : vector<64x64xi1>, vector<64x64xf32>
    %177 = vector.extract_strided_slice %143 {offsets = [0, 0], sizes = [1, 64], strides = [1, 1]} : vector<9x64xf32> to vector<1x64xf32>
    %178 = vector.broadcast %177 : vector<1x64xf32> to vector<64x64xf32>
    %179 = arith.mulf %176, %178 : vector<64x64xf32>
    %180 = arith.addf %171, %179 : vector<64x64xf32>
    %c8 = arith.constant 8 : index
    %c0_51 = arith.constant 0 : index
    %181 = vector.load %arg9[%c8, %c0_51] : memref<96x64xf32, #tpu.memory_space<vmem>>, vector<64x64xf32>
    %182 = vector.extract_strided_slice %143 {offsets = [1, 0], sizes = [1, 64], strides = [1, 1]} : vector<9x64xf32> to vector<1x64xf32>
    %183 = vector.broadcast %182 : vector<1x64xf32> to vector<64x64xf32>
    %184 = arith.mulf %181, %183 : vector<64x64xf32>
    %185 = arith.addf %180, %184 : vector<64x64xf32>
    %c9 = arith.constant 9 : index
    %c0_52 = arith.constant 0 : index
    %186 = vector.load %arg9[%c9, %c0_52] : memref<96x64xf32, #tpu.memory_space<vmem>>, vector<64x64xf32>
    %cst_53 = arith.constant 0.000000e+00 : f32
    %187 = vector.shape_cast %164 : vector<64x1xi1> to vector<64x1xi1>
    %188 = vector.broadcast %187 : vector<64x1xi1> to vector<64x64xi1>
    %189 = vector.broadcast %cst_53 : f32 to vector<64x64xf32>
    %190 = arith.select %188, %186, %189 : vector<64x64xi1>, vector<64x64xf32>
    %191 = vector.extract_strided_slice %143 {offsets = [2, 0], sizes = [1, 64], strides = [1, 1]} : vector<9x64xf32> to vector<1x64xf32>
    %192 = vector.broadcast %191 : vector<1x64xf32> to vector<64x64xf32>
    %193 = arith.mulf %190, %192 : vector<64x64xf32>
    %194 = arith.addf %185, %193 : vector<64x64xf32>
    %c15 = arith.constant 15 : index
    %c0_54 = arith.constant 0 : index
    %195 = vector.load %arg9[%c15, %c0_54] : memref<96x64xf32, #tpu.memory_space<vmem>>, vector<64x64xf32>
    %cst_55 = arith.constant 0.000000e+00 : f32
    %196 = vector.shape_cast %162 : vector<64x1xi1> to vector<64x1xi1>
    %197 = vector.broadcast %196 : vector<64x1xi1> to vector<64x64xi1>
    %198 = vector.broadcast %cst_55 : f32 to vector<64x64xf32>
    %199 = arith.select %197, %195, %198 : vector<64x64xi1>, vector<64x64xf32>
    %200 = vector.extract_strided_slice %143 {offsets = [3, 0], sizes = [1, 64], strides = [1, 1]} : vector<9x64xf32> to vector<1x64xf32>
    %201 = vector.broadcast %200 : vector<1x64xf32> to vector<64x64xf32>
    %202 = arith.mulf %199, %201 : vector<64x64xf32>
    %203 = arith.addf %194, %202 : vector<64x64xf32>
    %c17 = arith.constant 17 : index
    %c0_56 = arith.constant 0 : index
    %204 = vector.load %arg9[%c17, %c0_56] : memref<96x64xf32, #tpu.memory_space<vmem>>, vector<64x64xf32>
    %cst_57 = arith.constant 0.000000e+00 : f32
    %205 = vector.shape_cast %164 : vector<64x1xi1> to vector<64x1xi1>
    %206 = vector.broadcast %205 : vector<64x1xi1> to vector<64x64xi1>
    %207 = vector.broadcast %cst_57 : f32 to vector<64x64xf32>
    %208 = arith.select %206, %204, %207 : vector<64x64xi1>, vector<64x64xf32>
    %209 = vector.extract_strided_slice %143 {offsets = [5, 0], sizes = [1, 64], strides = [1, 1]} : vector<9x64xf32> to vector<1x64xf32>
    %210 = vector.broadcast %209 : vector<1x64xf32> to vector<64x64xf32>
    %211 = arith.mulf %208, %210 : vector<64x64xf32>
    %212 = arith.addf %203, %211 : vector<64x64xf32>
    %c23 = arith.constant 23 : index
    %c0_58 = arith.constant 0 : index
    %213 = vector.load %arg9[%c23, %c0_58] : memref<96x64xf32, #tpu.memory_space<vmem>>, vector<64x64xf32>
    %cst_59 = arith.constant 0.000000e+00 : f32
    %214 = vector.shape_cast %162 : vector<64x1xi1> to vector<64x1xi1>
    %215 = vector.broadcast %214 : vector<64x1xi1> to vector<64x64xi1>
    %216 = vector.broadcast %cst_59 : f32 to vector<64x64xf32>
    %217 = arith.select %215, %213, %216 : vector<64x64xi1>, vector<64x64xf32>
    %218 = vector.extract_strided_slice %143 {offsets = [6, 0], sizes = [1, 64], strides = [1, 1]} : vector<9x64xf32> to vector<1x64xf32>
    %219 = vector.broadcast %218 : vector<1x64xf32> to vector<64x64xf32>
    %220 = arith.mulf %217, %219 : vector<64x64xf32>
    %221 = arith.addf %212, %220 : vector<64x64xf32>
    %c24 = arith.constant 24 : index
    %c0_60 = arith.constant 0 : index
    %222 = vector.load %arg9[%c24, %c0_60] : memref<96x64xf32, #tpu.memory_space<vmem>>, vector<64x64xf32>
    %223 = vector.extract_strided_slice %143 {offsets = [7, 0], sizes = [1, 64], strides = [1, 1]} : vector<9x64xf32> to vector<1x64xf32>
    %224 = vector.broadcast %223 : vector<1x64xf32> to vector<64x64xf32>
    %225 = arith.mulf %222, %224 : vector<64x64xf32>
    %226 = arith.addf %221, %225 : vector<64x64xf32>
    %c25 = arith.constant 25 : index
    %c0_61 = arith.constant 0 : index
    %227 = vector.load %arg9[%c25, %c0_61] : memref<96x64xf32, #tpu.memory_space<vmem>>, vector<64x64xf32>
    %cst_62 = arith.constant 0.000000e+00 : f32
    %228 = vector.shape_cast %164 : vector<64x1xi1> to vector<64x1xi1>
    %229 = vector.broadcast %228 : vector<64x1xi1> to vector<64x64xi1>
    %230 = vector.broadcast %cst_62 : f32 to vector<64x64xf32>
    %231 = arith.select %229, %227, %230 : vector<64x64xi1>, vector<64x64xf32>
    %232 = vector.extract_strided_slice %143 {offsets = [8, 0], sizes = [1, 64], strides = [1, 1]} : vector<9x64xf32> to vector<1x64xf32>
    %233 = vector.broadcast %232 : vector<1x64xf32> to vector<64x64xf32>
    %234 = arith.mulf %231, %233 : vector<64x64xf32>
    %235 = arith.addf %226, %234 : vector<64x64xf32>
    %c0_63 = arith.constant 0 : index
    %c0_64 = arith.constant 0 : index
    %236 = vector.load %arg5[%c0_63, %c0_64] : memref<1x64xf32, #tpu.memory_space<vmem>>, vector<1x64xf32>
    %237 = vector.broadcast %236 : vector<1x64xf32> to vector<64x64xf32>
    %238 = arith.addf %235, %237 : vector<64x64xf32>
    %239 = arith.addf %142, %238 : vector<64x64xf32>
    %240 = arith.truncf %239 : vector<64x64xf32> to vector<64x64xbf16>
    %c0_65 = arith.constant 0 : index
    %c0_66 = arith.constant 0 : index
    %241 = vector.load %arg6[%c0_65, %c0_66] : memref<64x64xbf16, #tpu.memory_space<vmem>>, vector<64x64xbf16>
    %cst_67 = arith.constant dense<0.000000e+00> : vector<64x64xf32>
    %242 = tpu.matmul %240, %241, %cst_67 {dimension_numbers = #tpu.dot_dimension_numbers<[1], [0], [0], [1], [0, 0, 1, 1], [], []>} : vector<64x64xbf16>, vector<64x64xbf16>, vector<64x64xf32> -> vector<64x64xf32>
    %c0_68 = arith.constant 0 : index
    %c0_69 = arith.constant 0 : index
    %243 = vector.load %arg7[%c0_68, %c0_69] : memref<1x64xf32, #tpu.memory_space<vmem>>, vector<1x64xf32>
    %244 = vector.broadcast %243 : vector<1x64xf32> to vector<64x64xf32>
    %245 = arith.addf %242, %244 : vector<64x64xf32>
    %c0_70 = arith.constant 0 : index
    %c0_71 = arith.constant 0 : index
    %c0_72 = arith.constant 0 : index
    %246 = vector.load %arg8[%c0_70, %c0_71, %c0_72] : memref<1x64x64xf32, #tpu.memory_space<vmem>>, vector<1x64x64xf32>
    %247 = vector.shape_cast %246 : vector<1x64x64xf32> to vector<64x64xf32>
    %248 = vector.shape_cast %245 : vector<64x64xf32> to vector<1x64x64xf32>
    tpu.vector_store %arg8[%c0_70, %c0_71, %c0_72], %248 {strides = array<i32>} : memref<1x64x64xf32, #tpu.memory_space<vmem>>, vector<1x64x64xf32>,
    return
  }
  func.func @transform_0(%arg0: i32) -> (i32, i32, i32) {
    %c0_i32 = arith.constant 0 : i32
    %c0_i32_0 = arith.constant 0 : i32
    %c0_i32_1 = arith.constant 0 : i32
    return %arg0, %c0_i32, %c0_i32_0 : i32, i32, i32
  }
  func.func @transform_1(%arg0: i32) -> (i32, i32) {
    %c0_i32 = arith.constant 0 : i32
    %c0_i32_0 = arith.constant 0 : i32
    %c0_i32_1 = arith.constant 0 : i32
    return %c0_i32, %c0_i32_0 : i32, i32
  }
  func.func @transform_2(%arg0: i32) -> (i32, i32) {
    %c0_i32 = arith.constant 0 : i32
    %c0_i32_0 = arith.constant 0 : i32
    %c0_i32_1 = arith.constant 0 : i32
    return %c0_i32, %c0_i32_0 : i32, i32
  }
  func.func @transform_3(%arg0: i32) -> (i32, i32) {
    %c0_i32 = arith.constant 0 : i32
    %c0_i32_0 = arith.constant 0 : i32
    %c0_i32_1 = arith.constant 0 : i32
    return %c0_i32, %c0_i32_0 : i32, i32
  }
  func.func @transform_4(%arg0: i32) -> (i32, i32) {
    %c0_i32 = arith.constant 0 : i32
    %c0_i32_0 = arith.constant 0 : i32
    %c0_i32_1 = arith.constant 0 : i32
    return %c0_i32, %c0_i32_0 : i32, i32
  }
  func.func @transform_5(%arg0: i32) -> (i32, i32) {
    %c0_i32 = arith.constant 0 : i32
    %c0_i32_0 = arith.constant 0 : i32
    %c0_i32_1 = arith.constant 0 : i32
    return %c0_i32, %c0_i32_0 : i32, i32
  }
  func.func @transform_6(%arg0: i32) -> (i32, i32) {
    %c0_i32 = arith.constant 0 : i32
    %c0_i32_0 = arith.constant 0 : i32
    %c0_i32_1 = arith.constant 0 : i32
    return %c0_i32, %c0_i32_0 : i32, i32
  }
  func.func @transform_7(%arg0: i32) -> (i32, i32, i32) {
    %c0_i32 = arith.constant 0 : i32
    %c0_i32_0 = arith.constant 0 : i32
    %c0_i32_1 = arith.constant 0 : i32
    return %arg0, %c0_i32, %c0_i32_0 : i32, i32, i32
  }
}

</mosaic_0001>

<llo_original>
// kernel: tpu_custom_call.1
$region0: #{tpu_custom_call.1}
  #allocation0 [shape = 'u32[]', space=smem, size = 0x4, offset = 0x4, fixed_abs, tag = 'smem constant byte address 0x4 - core index']
  #allocation1 [shape = 'u32[144,128]{1,0:T(1,128)}', space=vmem, size = 0x12000, scoped, tag = 'internal scratch']
  #allocation2 [shape = 'f32[96,64]{1,0:T(8,128)}', space=vmem, size = 0xc000, scoped, tag = 'scratch operand']
  %s0 = inlined_call_operand.hbm [shape: f32[2,64,64], index: 0, kind: input, shape index: {}]
  %s1 = inlined_call_operand.hbm [shape: bf16[64,128], index: 1, kind: input, shape index: {}]
  %s2 = inlined_call_operand.vmem [shape: f32[1,128], index: 2, kind: input, shape index: {}]
  %s3 = inlined_call_operand.hbm [shape: f32[9,64], index: 3, kind: input, shape index: {}]
  %s4 = inlined_call_operand.vmem [shape: f32[1,64], index: 4, kind: input, shape index: {}]
  %s5 = inlined_call_operand.hbm [shape: bf16[64,64], index: 5, kind: input, shape index: {}]
  %s6 = inlined_call_operand.vmem [shape: f32[1,64], index: 6, kind: input, shape index: {}]
  %s7 = inlined_call_operand.hbm [shape: f32[2,64,64], index: 7, kind: output, shape index: {}]
  %s8 = sld [smem:[#allocation0]]
  $region77: #{tpu_custom_call.1} parent=0
    _
  %s10 = ssub.s32 1, %s8
  %s11 = scalar_select 0, %s10, %s8
  $region1: #{tpu_custom_call.1} parent=0
    #allocation3 [shape = 'u8[65536]{0}', space=vmem, size = 0x10000, scoped, tag = 'input window, operand 0']
    #allocation4 [shape = 's32[2]{0}', space=sflag, size = 0x8, scoped, tag = 'scoped memory for tpu_custom_call.1']
    #allocation5 [shape = 's32[2]{0}', space=sflag, size = 0x8, scoped, tag = 'scoped memory for tpu_custom_call.1']
    #allocation6 [shape = 'u8[16384]{0}', space=vmem, size = 0x4000, scoped, tag = 'input window, operand 1, single buffered']
    #allocation7 [shape = 's32[1]{0}', space=sflag, size = 0x4, scoped, tag = 'scoped memory for tpu_custom_call.1']
    #allocation8 [shape = 'u8[8192]{0}', space=vmem, size = 0x2000, scoped, tag = 'input window, operand 3, single buffered']
    #allocation9 [shape = 'u8[16384]{0}', space=vmem, size = 0x4000, scoped, tag = 'input window, operand 5, single buffered']
    #allocation10 [shape = 's32[1]{0}', space=sflag, size = 0x4, scoped, tag = 'scoped memory for tpu_custom_call.1']
    #allocation11 [shape = 'u8[65536]{0}', space=vmem, size = 0x10000, scoped, tag = 'output window, operand 0']
    %12 = vsyncpa [#allocation4], 0
    %s13 = scalar_lea.sflag [#allocation4], 1
    %14 = vsyncpa %s13, 0
    %15 = vsyncpa [#allocation7], 0
    %16 = vsyncpa [#allocation10], 0
    %17 = vsyncpa [#allocation5], 0
    %s18 = scalar_lea.sflag [#allocation5], 1
    %19 = vsyncpa %s18, 0
    loop: start=0, step=1, limit=4
    $region2: #{tpu_custom_call.1} parent=1 // loop_pre_header
      _
    $region3: #{tpu_custom_call.1} parent=1 // loop_header
      %s21 = sphi 0, %s25
      %p22 = scmp.ge.s32.totalorder %s21, 4
      %s31 = sphi 0, %s33
      %s34 = sphi 0, %s31
      %s35 = sphi 0, %s34
      %s51 = sphi 0, %s35
      %s55 = sphi 0, %s55
      %s57 = sphi 0, %s55
      %s58 = sphi 0, %s57
      %s72 = sphi 0, %s58
      %s76 = sphi 0, %s76
      %s78 = sphi 0, %s76
      %s79 = sphi 0, %s78
      %s93 = sphi 0, %s79
      %s97 = sphi 0, %s97
      %s99 = sphi 0, %s97
      %s100 = sphi 0, %s99
      %s114 = sphi 0, %s100
      %s118 = sphi 0, %s118
      %s120 = sphi 0, %s118
      %s121 = sphi 0, %s120
      %s135 = sphi 0, %s121
      %s139 = sphi 0, %s139
      %s141 = sphi 0, %s139
      %s142 = sphi 0, %s141
      %s156 = sphi 0, %s142
      %s160 = sphi 0, %s160
      %s162 = sphi 0, %s160
      %s163 = sphi 0, %s162
      %s177 = sphi 0, %s163
      %s183 = sphi 0, %s185
      %s186 = sphi 0, %s183
      %s187 = sphi 0, %s186
      %s203 = sphi 0, %s187
    $region4: #{tpu_custom_call.1} parent=1 // loop_header_branch
      %24 = sbr.rel (%p22) target = $region8
    $region5: #{tpu_custom_call.1} parent=1 // loop_body
      %s26 = ssub.s32 %s21, 1
      %s27 = ssub.s32 %s21, 2
      %s28 = sadd.s32 %s21, 1
      %s29 = ssub.s32 %s21, %s28
      %p30 = scmp.eq.s32.totalorder %s29, 0
      %s32 = sadd.s32 %s31, 1
      %s33 = scalar_select %p30, %s31, %s32
      %p36 = pneg %p30
      %p37 = scmp.eq.s32.totalorder %s21, 1
      %p38 = por %p36, %p37
      %p39 = scmp.ne.s32.totalorder %s31, %s34
      %p40 = scmp.eq.s32.totalorder %s21, 0
      %p41 = por %p39, %p40
      %p42 = scmp.ne.s32.totalorder %s31, %s34
      %p43 = scmp.eq.s32.totalorder %s26, 1
      %p44 = por %p42, %p43
      %p45 = scmp.ne.s32.totalorder %s34, %s35
      %p46 = scmp.eq.s32.totalorder %s26, 0
      %p47 = por %p45, %p46
      %p48 = scmp.ne.s32.totalorder %s34, %s35
      %p49 = scmp.eq.s32.totalorder %s27, 1
      %p50 = por %p48, %p49
      %p52 = scmp.ne.s32.totalorder %s35, %s51
      %p53 = scmp.eq.s32.totalorder %s27, 0
      %p54 = por %p52, %p53
      %s56 = sadd.s32 %s55, 1
      %p59 = scmp.eq.s32.totalorder %s21, 1
      %p60 = scmp.ne.s32.totalorder %s55, %s57
      %p61 = scmp.eq.s32.totalorder %s21, 0
      %p62 = por %p60, %p61
      %p63 = scmp.ne.s32.totalorder %s55, %s57
      %p64 = scmp.eq.s32.totalorder %s26, 1
      %p65 = por %p63, %p64
      %p66 = scmp.ne.s32.totalorder %s57, %s58
      %p67 = scmp.eq.s32.totalorder %s26, 0
      %p68 = por %p66, %p67
      %p69 = scmp.ne.s32.totalorder %s57, %s58
      %p70 = scmp.eq.s32.totalorder %s27, 1
      %p71 = por %p69, %p70
      %p73 = scmp.ne.s32.totalorder %s58, %s72
      %p74 = scmp.eq.s32.totalorder %s27, 0
      %p75 = por %p73, %p74
      %s77 = sadd.s32 %s76, 1
      %p80 = scmp.eq.s32.totalorder %s21, 1
      %p81 = scmp.ne.s32.totalorder %s76, %s78
      %p82 = scmp.eq.s32.totalorder %s21, 0
      %p83 = por %p81, %p82
      %p84 = scmp.ne.s32.totalorder %s76, %s78
      %p85 = scmp.eq.s32.totalorder %s26, 1
      %p86 = por %p84, %p85
      %p87 = scmp.ne.s32.totalorder %s78, %s79
      %p88 = scmp.eq.s32.totalorder %s26, 0
      %p89 = por %p87, %p88
      %p90 = scmp.ne.s32.totalorder %s78, %s79
      %p91 = scmp.eq.s32.totalorder %s27, 1
      %p92 = por %p90, %p91
      %p94 = scmp.ne.s32.totalorder %s79, %s93
      %p95 = scmp.eq.s32.totalorder %s27, 0
      %p96 = por %p94, %p95
      %s98 = sadd.s32 %s97, 1
      %p101 = scmp.eq.s32.totalorder %s21, 1
      %p102 = scmp.ne.s32.totalorder %s97, %s99
      %p103 = scmp.eq.s32.totalorder %s21, 0
      %p104 = por %p102, %p103
      %p105 = scmp.ne.s32.totalorder %s97, %s99
      %p106 = scmp.eq.s32.totalorder %s26, 1
      %p107 = por %p105, %p106
      %p108 = scmp.ne.s32.totalorder %s99, %s100
      %p109 = scmp.eq.s32.totalorder %s26, 0
      %p110 = por %p108, %p109
      %p111 = scmp.ne.s32.totalorder %s99, %s100
      %p112 = scmp.eq.s32.totalorder %s27, 1
      %p113 = por %p111, %p112
      %p115 = scmp.ne.s32.totalorder %s100, %s114
      %p116 = scmp.eq.s32.totalorder %s27, 0
      %p117 = por %p115, %p116
      %s119 = sadd.s32 %s118, 1
      %p122 = scmp.eq.s32.totalorder %s21, 1
      %p123 = scmp.ne.s32.totalorder %s118, %s120
      %p124 = scmp.eq.s32.totalorder %s21, 0
      %p125 = por %p123, %p124
      %p126 = scmp.ne.s32.totalorder %s118, %s120
      %p127 = scmp.eq.s32.totalorder %s26, 1
      %p128 = por %p126, %p127
      %p129 = scmp.ne.s32.totalorder %s120, %s121
      %p130 = scmp.eq.s32.totalorder %s26, 0
      %p131 = por %p129, %p130
      %p132 = scmp.ne.s32.totalorder %s120, %s121
      %p133 = scmp.eq.s32.totalorder %s27, 1
      %p134 = por %p132, %p133
      %p136 = scmp.ne.s32.totalorder %s121, %s135
      %p137 = scmp.eq.s32.totalorder %s27, 0
      %p138 = por %p136, %p137
      %s140 = sadd.s32 %s139, 1
      %p143 = scmp.eq.s32.totalorder %s21, 1
      %p144 = scmp.ne.s32.totalorder %s139, %s141
      %p145 = scmp.eq.s32.totalorder %s21, 0
      %p146 = por %p144, %p145
      %p147 = scmp.ne.s32.totalorder %s139, %s141
      %p148 = scmp.eq.s32.totalorder %s26, 1
      %p149 = por %p147, %p148
      %p150 = scmp.ne.s32.totalorder %s141, %s142
      %p151 = scmp.eq.s32.totalorder %s26, 0
      %p152 = por %p150, %p151
      %p153 = scmp.ne.s32.totalorder %s141, %s142
      %p154 = scmp.eq.s32.totalorder %s27, 1
      %p155 = por %p153, %p154
      %p157 = scmp.ne.s32.totalorder %s142, %s156
      %p158 = scmp.eq.s32.totalorder %s27, 0
      %p159 = por %p157, %p158
      %s161 = sadd.s32 %s160, 1
      %p164 = scmp.eq.s32.totalorder %s21, 1
      %p165 = scmp.ne.s32.totalorder %s160, %s162
      %p166 = scmp.eq.s32.totalorder %s21, 0
      %p167 = por %p165, %p166
      %p168 = scmp.ne.s32.totalorder %s160, %s162
      %p169 = scmp.eq.s32.totalorder %s26, 1
      %p170 = por %p168, %p169
      %p171 = scmp.ne.s32.totalorder %s162, %s163
      %p172 = scmp.eq.s32.totalorder %s26, 0
      %p173 = por %p171, %p172
      %p174 = scmp.ne.s32.totalorder %s162, %s163
      %p175 = scmp.eq.s32.totalorder %s27, 1
      %p176 = por %p174, %p175
      %p178 = scmp.ne.s32.totalorder %s163, %s177
      %p179 = scmp.eq.s32.totalorder %s27, 0
      %p180 = por %p178, %p179
      %s181 = ssub.s32 %s21, %s28
      %p182 = scmp.eq.s32.totalorder %s181, 0
      %s184 = sadd.s32 %s183, 1
      %s185 = scalar_select %p182, %s183, %s184
      %p188 = pneg %p182
      %p189 = scmp.eq.s32.totalorder %s21, 1
      %p190 = por %p188, %p189
      %p191 = scmp.ne.s32.totalorder %s183, %s186
      %p192 = scmp.eq.s32.totalorder %s21, 0
      %p193 = por %p191, %p192
      %p194 = scmp.ne.s32.totalorder %s183, %s186
      %p195 = scmp.eq.s32.totalorder %s26, 1
      %p196 = por %p194, %p195
      %p197 = scmp.ne.s32.totalorder %s186, %s187
      %p198 = scmp.eq.s32.totalorder %s26, 0
      %p199 = por %p197, %p198
      %p200 = scmp.ne.s32.totalorder %s186, %s187
      %p201 = scmp.eq.s32.totalorder %s27, 1
      %p202 = por %p200, %p201
      %p204 = scmp.ne.s32.totalorder %s187, %s203
      %p205 = scmp.eq.s32.totalorder %s27, 0
      %p206 = por %p204, %p205
      %p207 = scmp.le.s32.totalorder 1, %s21
      %p208 = scmp.lt.s32.totalorder %s21, 3
      %p209 = pnand %p207, %p208
      %p210 = pneg %p209
      // Predicated region
      $region9: #{tpu_custom_call.1} parent=5 // pred_check
        _
      $region10: #{tpu_custom_call.1} parent=5 // pred_check_branch
        %212 = sbr.rel (%p209) target = $region12
      $region11: #{tpu_custom_call.1} parent=5 // pred_region
        %s213 = ssub.s32 %s21, 1
        // Predicated region
        $region13: #{tpu_custom_call.1} parent=11 // pred_check
          %p214 = pneg %p68
        $region14: #{tpu_custom_call.1} parent=11 // pred_check_branch
          %216 = sbr.rel (%p214) target = $region16
        $region15: #{tpu_custom_call.1} parent=11 // pred_region
          %s218 = ssub.s32 512, 512
          %219 = vsyncadd [#allocation7], %s218
          %s220 = sshll.u32 [#allocation6], 4
          %s221 = int_to_ptr.vmem [resolvable:$true] %s220
          %226 = dma.hbm_to_vmem [thread:$0]  %s1, 512, %s221, [#allocation7], 64, 64, 4
        $region16: #{tpu_custom_call.1} parent=11 // pred_fallthru
          _
        // Predicated region
        $region17: #{tpu_custom_call.1} parent=11 // pred_check
          %p227 = pneg %p89
        $region18: #{tpu_custom_call.1} parent=11 // pred_check_branch
          %229 = sbr.rel (%p227) target = $region20
        $region19: #{tpu_custom_call.1} parent=11 // pred_region
          _
        $region20: #{tpu_custom_call.1} parent=11 // pred_fallthru
          _
        // Predicated region
        $region21: #{tpu_custom_call.1} parent=11 // pred_check
          %p230 = pneg %p110
        $region22: #{tpu_custom_call.1} parent=11 // pred_check_branch
          %232 = sbr.rel (%p230) target = $region24
        $region23: #{tpu_custom_call.1} parent=11 // pred_region
          %s234 = ssub.s32 256, 256
          %235 = vsyncadd [#allocation7], %s234
          %s236 = sshll.u32 [#allocation8], 4
          %s237 = int_to_ptr.vmem [resolvable:$true] %s236
          %242 = dma.hbm_to_vmem [thread:$0]  %s3, 256, %s237, [#allocation7], 128, 128, 8
        $region24: #{tpu_custom_call.1} parent=11 // pred_fallthru
          _
        // Predicated region
        $region25: #{tpu_custom_call.1} parent=11 // pred_check
          %p243 = pneg %p131
        $region26: #{tpu_custom_call.1} parent=11 // pred_check_branch
          %245 = sbr.rel (%p243) target = $region28
        $region27: #{tpu_custom_call.1} parent=11 // pred_region
          _
        $region28: #{tpu_custom_call.1} parent=11 // pred_fallthru
          _
        // Predicated region
        $region29: #{tpu_custom_call.1} parent=11 // pred_check
          %p246 = pneg %p152
        $region30: #{tpu_custom_call.1} parent=11 // pred_check_branch
          %248 = sbr.rel (%p246) target = $region32
        $region31: #{tpu_custom_call.1} parent=11 // pred_region
          %s250 = ssub.s32 512, 512
          %251 = vsyncadd [#allocation10], %s250
          %s252 = sshll.u32 [#allocation9], 4
          %s253 = int_to_ptr.vmem [resolvable:$true] %s252
          %258 = dma.hbm_to_vmem [thread:$0]  %s5, 512, %s253, [#allocation10], 64, 64, 4
        $region32: #{tpu_custom_call.1} parent=11 // pred_fallthru
          _
        // Predicated region
        $region33: #{tpu_custom_call.1} parent=11 // pred_check
          %p259 = pneg %p173
        $region34: #{tpu_custom_call.1} parent=11 // pred_check_branch
          %261 = sbr.rel (%p259) target = $region36
        $region35: #{tpu_custom_call.1} parent=11 // pred_region
          _
        $region36: #{tpu_custom_call.1} parent=11 // pred_fallthru
          _
      $region12: #{tpu_custom_call.1} parent=5 // pred_fallthru
        _
      %p262 = scmp.lt.s32.totalorder %s21, 2
      // Predicated region
      $region37: #{tpu_custom_call.1} parent=5 // pred_check
        %p263 = pneg %p262
      $region38: #{tpu_custom_call.1} parent=5 // pred_check_branch
        %265 = sbr.rel (%p263) target = $region40
      $region39: #{tpu_custom_call.1} parent=5 // pred_region
        // Predicated region
        $region41: #{tpu_custom_call.1} parent=39 // pred_check
          %p266 = pneg %p41
        $region42: #{tpu_custom_call.1} parent=39 // pred_check_branch
          %268 = sbr.rel (%p266) target = $region44
        $region43: #{tpu_custom_call.1} parent=39 // pred_region
          %s269 = sand.u32 %s31, 1
          %s270 = scalar_lea.sflag [#allocation4], %s269
          %s271 = sand.u32 %s31, 1
          %s272 = smul.addr %s271, 64
          %s273 = scalar_lea.vmem [#allocation3], %s272
          %s275 = ssub.s32 1024, 1024
          %276 = vsyncadd %s270, %s275
          %s277 = smul.addr %s21, 8
          %s278 = smul.addr %s277, 128
          %s279 = scalar_lea.hbm %s0, %s278
          %s280 = sshll.u32 %s273, 4
          %s281 = int_to_ptr.vmem [resolvable:$true] %s280
          %286 = dma.hbm_to_vmem [thread:$0]  %s279, 1024, %s281, %s270, 128, 128, 8
        $region44: #{tpu_custom_call.1} parent=39 // pred_fallthru
          _
      $region40: #{tpu_custom_call.1} parent=5 // pred_fallthru
        _
      %p287 = scmp.le.s32.totalorder 1, %s21
      %p288 = scmp.lt.s32.totalorder %s21, 3
      %p289 = pnand %p287, %p288
      %p290 = pneg %p289
      // Predicated region
      $region45: #{tpu_custom_call.1} parent=5 // pred_check
        _
      $region46: #{tpu_custom_call.1} parent=5 // pred_check_branch
        %292 = sbr.rel (%p289) target = $region48
      $region47: #{tpu_custom_call.1} parent=5 // pred_region
        %s293 = ssub.s32 %s21, 1
        %s294 = sand.u32 %s34, 1
        %s295 = scalar_lea.sflag [#allocation4], %s294
        %s296 = sand.u32 %s34, 1
        %s297 = smul.addr %s296, 64
        %s298 = scalar_lea.vmem [#allocation3], %s297
        // Predicated region
        $region49: #{tpu_custom_call.1} parent=47 // pred_check
          %p299 = pneg %p47
        $region50: #{tpu_custom_call.1} parent=47 // pred_check_branch
          %301 = sbr.rel (%p299) target = $region52
        $region51: #{tpu_custom_call.1} parent=47 // pred_region
          %302 = dma.done %s295, 1024
        $region52: #{tpu_custom_call.1} parent=47 // pred_fallthru
          _
        // Predicated region
        $region53: #{tpu_custom_call.1} parent=47 // pred_check
          %p303 = pneg %p68
        $region54: #{tpu_custom_call.1} parent=47 // pred_check_branch
          %305 = sbr.rel (%p303) target = $region56
        $region55: #{tpu_custom_call.1} parent=47 // pred_region
          %306 = dma.done [#allocation7], 512
        $region56: #{tpu_custom_call.1} parent=47 // pred_fallthru
          _
        // Predicated region
        $region57: #{tpu_custom_call.1} parent=47 // pred_check
          %p307 = pneg %p110
        $region58: #{tpu_custom_call.1} parent=47 // pred_check_branch
          %309 = sbr.rel (%p307) target = $region60
        $region59: #{tpu_custom_call.1} parent=47 // pred_region
          %310 = dma.done [#allocation7], 256
        $region60: #{tpu_custom_call.1} parent=47 // pred_fallthru
          _
        // Predicated region
        $region61: #{tpu_custom_call.1} parent=47 // pred_check
          %p311 = pneg %p152
        $region62: #{tpu_custom_call.1} parent=47 // pred_check_branch
          %313 = sbr.rel (%p311) target = $region64
        $region63: #{tpu_custom_call.1} parent=47 // pred_region
          %314 = dma.done [#allocation10], 512
        $region64: #{tpu_custom_call.1} parent=47 // pred_fallthru
          _
        %s315 = sand.u32 %s34, 1
        %s316 = scalar_lea.sflag [#allocation4], %s315
        %s317 = sand.u32 %s34, 1
        %s318 = smul.addr %s317, 64
        %s319 = scalar_lea.vmem [#allocation3], %s318
        %p320 = pneg %p47
        %p321 = pneg %p44
        %p322 = pneg %p68
        %p323 = pneg %p65
        %p324 = pneg %p89
        %p325 = pneg %p86
        %p326 = pneg %p110
        %p327 = pneg %p107
        %p328 = pneg %p131
        %p329 = pneg %p128
        %p330 = pneg %p152
        %p331 = pneg %p149
        %p332 = pneg %p173
        %p333 = pneg %p170
        %p334 = pneg %p199
        %p335 = pneg %p196
        %s336 = sand.u32 %s186, 1
        %s337 = scalar_lea.sflag [#allocation5], %s336
        %s338 = sand.u32 %s186, 1
        %s339 = smul.addr %s338, 64
        %s340 = scalar_lea.vmem [#allocation11], %s339
        %v342 = vld [vmem:[%s298] sm:$0xff]
        %v343 = vld [vmem:[%s298 + $0x8] sm:$0xff]
        %v344 = vld [vmem:[%s298 + $0x10] sm:$0xff]
        %v345 = vld [vmem:[%s298 + $0x18] sm:$0xff]
        %v346 = vld [vmem:[%s298 + $0x20] sm:$0xff]
        %v347 = vld [vmem:[%s298 + $0x28] sm:$0xff]
        %v348 = vld [vmem:[%s298 + $0x30] sm:$0xff]
        %v349 = vld [vmem:[%s298 + $0x38] sm:$0xff]
        %v350 = vpack.c.bf16 %v343, %v342
        %v351 = vpack.c.bf16 %v345, %v344
        %v352 = vpack.c.bf16 %v347, %v346
        %v353 = vpack.c.bf16 %v349, %v348
        %v354 = vld [vmem:[#allocation6] sm:$0xf]
        %v355 = vld [vmem:[#allocation6 + $0x4] sm:$0xf]
        %v356 = vld [vmem:[#allocation6 + $0x8] sm:$0xf]
        %v357 = vld [vmem:[#allocation6 + $0xc] sm:$0xf]
        %v358 = vld [vmem:[#allocation6 + $0x10] sm:$0xf]
        %v359 = vld [vmem:[#allocation6 + $0x14] sm:$0xf]
        %v360 = vld [vmem:[#allocation6 + $0x18] sm:$0xf]
        %v361 = vld [vmem:[#allocation6 + $0x1c] sm:$0xf]
        %v362 = vld [vmem:[%s2] sm:$0x1]
        %v364 = vlaneseq
        %v365 = vshrl.u32 %v364, 7
        %v366 = vsub.s32 0, %v365
        %v367 = vrot.slane %v362, %v366
        %v377 = vunpack.c.l.b16 %v354
        %v378 = vunpack.c.l.b16 %v355
        %v379 = vunpack.c.l.b16 %v356
        %v380 = vunpack.c.l.b16 %v357
        %v381 = vunpack.c.l.b16 %v358
        %v382 = vunpack.c.l.b16 %v359
        %v383 = vunpack.c.l.b16 %v360
        %v384 = vunpack.c.l.b16 %v361
        %v385 = vpack.c.b16 %v378, %v377
        %v386 = vpack.c.b16 %v380, %v379
        %v387 = vpack.c.b16 %v382, %v381
        %v388 = vpack.c.b16 %v384, %v383
        %vm393 = vcmask 523264
        %v395 = vsel %vm393, %v350, 0
        %v398 = vsel %vm393, %v351, 0
        %v401 = vsel %vm393, %v352, 0
        %v404 = vsel %vm393, %v353, 0
        %406 = vmatprep.subr.bf16.mxu0 0
        %407 = vmatpush1.bf16.msra.mxu0 %v385
        %408 = vmatprep.subr.bf16.mxu0 0
        %409 = vmatpush1.bf16.msra.mxu0 %v386
        %410 = vmatprep.subr.bf16.mxu0 0
        %411 = vmatpush1.bf16.msra.mxu0 %v387
        %412 = vmatprep.subr.bf16.mxu0 0
        %413 = vmatpush1.bf16.msra.mxu0 %v388
        %414 = vmatprep.subr.bf16.mxu0 0
        %415 = vmatpush1.bf16.msra.mxu0 0
        %416 = vmatprep.subr.bf16.mxu0 0
        %417 = vmatpush1.bf16.msra.mxu0 0
        %418 = vmatprep.subr.bf16.mxu0 0
        %419 = vmatpush1.bf16.msra.mxu0 0
        %420 = vmatprep.subr.bf16.mxu0 0
        %421 = vmatpush1.bf16.msra.mxu0 0
        %422 = vmatprep.subr.bf16.mxu0 0
        %423 = vmatpush1.bf16.msra.mxu0 0
        %424 = vmatprep.subr.bf16.mxu0 0
        %425 = vmatpush1.bf16.msra.mxu0 0
        %426 = vmatprep.subr.bf16.mxu0 0
        %427 = vmatpush1.bf16.msra.mxu0 0
        %428 = vmatprep.subr.bf16.mxu0 0
        %429 = vmatpush1.bf16.msra.mxu0 0
        %430 = vmatprep.subr.bf16.mxu0 0
        %431 = vmatpush1.bf16.msra.mxu0 0
        %432 = vmatprep.subr.bf16.mxu0 0
        %433 = vmatpush1.bf16.msra.mxu0 0
        %434 = vmatprep.subr.bf16.mxu0 0
        %435 = vmatpush1.bf16.msra.mxu0 0
        %436 = vmatprep.subr.bf16.mxu0 0
        %437 = vmatpush1.bf16.msra.mxu0 0
        %438 = vmatprep.mubr.bf16.mxu0 0
        %439 = vmatmul.mubr.bf16.gmra.mrb[0].mxu0 %v395
        %v440 = vpop.f32.mrb[0].mxu0
        %v441 = vadd.f32 %v367, %v440
        %v442 = vpop.f32.mrb[0].mxu0
        %v443 = vpop.f32.mrb[0].mxu0
        %v444 = vadd.f32 %v367, %v443
        %v445 = vpop.f32.mrb[0].mxu0
        %446 = vmatprep.mubr.bf16.mxu0 0
        %447 = vmatmul.mubr.bf16.gmra.mrb[0].mxu0 %v398
        %v448 = vpop.f32.mrb[0].mxu0
        %v449 = vadd.f32 %v367, %v448
        %v450 = vpop.f32.mrb[0].mxu0
        %v451 = vpop.f32.mrb[0].mxu0
        %v452 = vadd.f32 %v367, %v451
        %v453 = vpop.f32.mrb[0].mxu0
        %454 = vmatprep.mubr.bf16.mxu0 0
        %455 = vmatmul.mubr.bf16.gmra.mrb[0].mxu0 %v401
        %v456 = vpop.f32.mrb[0].mxu0
        %v457 = vadd.f32 %v367, %v456
        %v458 = vpop.f32.mrb[0].mxu0
        %v459 = vpop.f32.mrb[0].mxu0
        %v460 = vadd.f32 %v367, %v459
        %v461 = vpop.f32.mrb[0].mxu0
        %462 = vmatprep.mubr.bf16.mxu0 0
        %463 = vmatmul.mubr.bf16.gmra.mrb[0].mxu0 %v404
        %v464 = vpop.f32.mrb[0].mxu0
        %v465 = vadd.f32 %v367, %v464
        %v466 = vpop.f32.mrb[0].mxu0
        %v467 = vpop.f32.mrb[0].mxu0
        %v468 = vadd.f32 %v367, %v467
        %v469 = vpop.f32.mrb[0].mxu0
        %470 = vdwg.mxu0
        %v471 = vpack.c.bf16 %v444, %v441
        %v472 = vpack.c.bf16 %v452, %v449
        %v473 = vpack.c.bf16 %v460, %v457
        %v474 = vpack.c.bf16 %v468, %v465
        %479 = vrot.lane.b32.xlu0 %v471, 96
        %v480 = vpop.permute.xlu0 %479
        %481 = vrot.lane.b32.xlu0 %v472, 96
        %v482 = vpop.permute.xlu0 %481
        %483 = vrot.lane.b32.xlu0 %v473, 96
        %v484 = vpop.permute.xlu0 %483
        %485 = vrot.lane.b32.xlu0 %v474, 96
        %v486 = vpop.permute.xlu0 %485
        %vm487 = vcmask 31744
        %v489 = vsel %vm487, %v471, 0
        %v492 = vsel %vm487, %v472, 0
        %v495 = vsel %vm487, %v473, 0
        %v498 = vsel %vm487, %v474, 0
        %v501 = vsel %vm487, %v480, 0
        %v504 = vsel %vm487, %v482, 0
        %v507 = vsel %vm487, %v484, 0
        %v510 = vsel %vm487, %v486, 0
        %512 = vmatprep.subr.bf16.mxu0 0
        %513 = vmatpush1.bf16.xpose.msra.mxu0 %v501
        %514 = vmatprep.subr.bf16.mxu0 0
        %515 = vmatpush1.bf16.xpose.msra.mxu0 %v504
        %516 = vmatprep.subr.bf16.mxu0 0
        %517 = vmatpush1.bf16.xpose.msra.mxu0 %v507
        %518 = vmatprep.subr.bf16.mxu0 0
        %519 = vmatpush1.bf16.xpose.msra.mxu0 %v510
        %520 = vmatprep.subr.bf16.mxu0 0
        %521 = vmatpush1.bf16.xpose.msra.mxu0 0
        %522 = vmatprep.subr.bf16.mxu0 0
        %523 = vmatpush1.bf16.xpose.msra.mxu0 0
        %524 = vmatprep.subr.bf16.mxu0 0
        %525 = vmatpush1.bf16.xpose.msra.mxu0 0
        %526 = vmatprep.subr.bf16.mxu0 0
        %527 = vmatpush1.bf16.xpose.msra.mxu0 0
        %528 = vmatprep.subr.bf16.mxu0 0
        %529 = vmatpush1.bf16.xpose.msra.mxu0 0
        %530 = vmatprep.subr.bf16.mxu0 0
        %531 = vmatpush1.bf16.xpose.msra.mxu0 0
        %532 = vmatprep.subr.bf16.mxu0 0
        %533 = vmatpush1.bf16.xpose.msra.mxu0 0
        %534 = vmatprep.subr.bf16.mxu0 0
        %535 = vmatpush1.bf16.xpose.msra.mxu0 0
        %536 = vmatprep.subr.bf16.mxu0 0
        %537 = vmatpush1.bf16.xpose.msra.mxu0 0
        %538 = vmatprep.subr.bf16.mxu0 0
        %539 = vmatpush1.bf16.xpose.msra.mxu0 0
        %540 = vmatprep.subr.bf16.mxu0 0
        %541 = vmatpush1.bf16.xpose.msra.mxu0 0
        %542 = vmatprep.subr.bf16.mxu0 0
        %543 = vmatpush1.bf16.xpose.msra.mxu0 0
        %544 = vmatprep.mubr.bf16.mxu0 0
        %545 = vmatmul.mubr.bf16.gmra.mrb[0].mxu0 %v489
        %v546 = vpop.f32.mrb[0].mxu0
        %v547 = vadd.f32 0.0, %v546
        %v548 = vpop.f32.mrb[0].mxu0
        %v549 = vpop.f32.mrb[0].mxu0
        %v550 = vadd.f32 0.0, %v549
        %v551 = vpop.f32.mrb[0].mxu0
        %552 = vmatprep.mubr.bf16.mxu0 0
        %553 = vmatmul.mubr.bf16.gmra.mrb[0].mxu0 %v492
        %v554 = vpop.f32.mrb[0].mxu0
        %v555 = vadd.f32 0.0, %v554
        %v556 = vpop.f32.mrb[0].mxu0
        %v557 = vpop.f32.mrb[0].mxu0
        %v558 = vadd.f32 0.0, %v557
        %v559 = vpop.f32.mrb[0].mxu0
        %560 = vmatprep.mubr.bf16.mxu0 0
        %561 = vmatmul.mubr.bf16.gmra.mrb[0].mxu0 %v495
        %v562 = vpop.f32.mrb[0].mxu0
        %v563 = vadd.f32 0.0, %v562
        %v564 = vpop.f32.mrb[0].mxu0
        %v565 = vpop.f32.mrb[0].mxu0
        %v566 = vadd.f32 0.0, %v565
        %v567 = vpop.f32.mrb[0].mxu0
        %568 = vmatprep.mubr.bf16.mxu0 0
        %569 = vmatmul.mubr.bf16.gmra.mrb[0].mxu0 %v498
        %v570 = vpop.f32.mrb[0].mxu0
        %v571 = vadd.f32 0.0, %v570
        %v572 = vpop.f32.mrb[0].mxu0
        %v573 = vpop.f32.mrb[0].mxu0
        %v574 = vadd.f32 0.0, %v573
        %v575 = vpop.f32.mrb[0].mxu0
        %576 = vdwg.mxu0
        %v577 = vsel %vm393, %v547, -inf
        %578 = vmax.xlane.f32.xlu0 %v577
        %v579 = vpop.xlane.xlu0 %578
        %v580 = vsel %vm393, %v550, -inf
        %581 = vmax.xlane.f32.xlu0 %v580
        %v582 = vpop.xlane.xlu0 %581
        %v583 = vsel %vm393, %v555, -inf
        %584 = vmax.xlane.f32.xlu0 %v583
        %v585 = vpop.xlane.xlu0 %584
        %v586 = vsel %vm393, %v558, -inf
        %587 = vmax.xlane.f32.xlu0 %v586
        %v588 = vpop.xlane.xlu0 %587
        %v589 = vsel %vm393, %v563, -inf
        %590 = vmax.xlane.f32.xlu0 %v589
        %v591 = vpop.xlane.xlu0 %590
        %v592 = vsel %vm393, %v566, -inf
        %593 = vmax.xlane.f32.xlu0 %v592
        %v594 = vpop.xlane.xlu0 %593
        %v595 = vsel %vm393, %v571, -inf
        %596 = vmax.xlane.f32.xlu0 %v595
        %v597 = vpop.xlane.xlu0 %596
        %v598 = vsel %vm393, %v574, -inf
        %599 = vmax.xlane.f32.xlu0 %v598
        %v600 = vpop.xlane.xlu0 %599
        %v601 = vsub.f32 %v547, %v579
        %v602 = vsub.f32 %v550, %v582
        %v603 = vsub.f32 %v555, %v585
        %v604 = vsub.f32 %v558, %v588
        %v605 = vsub.f32 %v563, %v591
        %v606 = vsub.f32 %v566, %v594
        %v607 = vsub.f32 %v571, %v597
        %v608 = vsub.f32 %v574, %v600
        %v609 = vmul.f32 %v601, 1.442695
        %v610 = vpow.pop %v609
        %v611 = vmul.f32 %v602, 1.442695
        %v612 = vpow.pop %v611
        %v613 = vmul.f32 %v603, 1.442695
        %v614 = vpow.pop %v613
        %v615 = vmul.f32 %v604, 1.442695
        %v616 = vpow.pop %v615
        %v617 = vmul.f32 %v605, 1.442695
        %v618 = vpow.pop %v617
        %v619 = vmul.f32 %v606, 1.442695
        %v620 = vpow.pop %v619
        %v621 = vmul.f32 %v607, 1.442695
        %v622 = vpow.pop %v621
        %v623 = vmul.f32 %v608, 1.442695
        %v624 = vpow.pop %v623
        %v625 = vsel %vm393, %v610, 0.0
        %626 = vadd.xlane.f32.xlu0 %v625
        %v627 = vpop.xlane.xlu0 %626
        %v628 = vsel %vm393, %v612, 0.0
        %629 = vadd.xlane.f32.xlu0 %v628
        %v630 = vpop.xlane.xlu0 %629
        %v631 = vsel %vm393, %v614, 0.0
        %632 = vadd.xlane.f32.xlu0 %v631
        %v633 = vpop.xlane.xlu0 %632
        %v634 = vsel %vm393, %v616, 0.0
        %635 = vadd.xlane.f32.xlu0 %v634
        %v636 = vpop.xlane.xlu0 %635
        %v637 = vsel %vm393, %v618, 0.0
        %638 = vadd.xlane.f32.xlu0 %v637
        %v639 = vpop.xlane.xlu0 %638
        %v640 = vsel %vm393, %v620, 0.0
        %641 = vadd.xlane.f32.xlu0 %v640
        %v642 = vpop.xlane.xlu0 %641
        %v643 = vsel %vm393, %v622, 0.0
        %644 = vadd.xlane.f32.xlu0 %v643
        %v645 = vpop.xlane.xlu0 %644
        %v646 = vsel %vm393, %v624, 0.0
        %647 = vadd.xlane.f32.xlu0 %v646
        %v648 = vpop.xlane.xlu0 %647
        %v649 = vrcp.pop %v627
        %v650 = vrcp.pop %v630
        %v651 = vrcp.pop %v633
        %v652 = vrcp.pop %v636
        %v653 = vrcp.pop %v639
        %v654 = vrcp.pop %v642
        %v655 = vrcp.pop %v645
        %v656 = vrcp.pop %v648
        %v657 = vmul.f32 %v610, %v649
        %v658 = vmul.f32 %v612, %v650
        %v659 = vmul.f32 %v614, %v651
        %v660 = vmul.f32 %v616, %v652
        %v661 = vmul.f32 %v618, %v653
        %v662 = vmul.f32 %v620, %v654
        %v663 = vmul.f32 %v622, %v655
        %v664 = vmul.f32 %v624, %v656
        %v665 = vpack.c.bf16 %v658, %v657
        %v666 = vpack.c.bf16 %v660, %v659
        %v667 = vpack.c.bf16 %v662, %v661
        %v668 = vpack.c.bf16 %v664, %v663
        %669 = vrot.lane.b32.xlu0 %v471, 64
        %v670 = vpop.permute.xlu0 %669
        %671 = vrot.lane.b32.xlu0 %v472, 64
        %v672 = vpop.permute.xlu0 %671
        %673 = vrot.lane.b32.xlu0 %v473, 64
        %v674 = vpop.permute.xlu0 %673
        %675 = vrot.lane.b32.xlu0 %v474, 64
        %v676 = vpop.permute.xlu0 %675
        %v682 = vsel %vm393, %v665, 0
        %v685 = vsel %vm393, %v666, 0
        %v688 = vsel %vm393, %v667, 0
        %v691 = vsel %vm393, %v668, 0
        %693 = vmatprep.subr.bf16.mxu0 0
        %694 = vmatpush1.bf16.msra.mxu0 %v670
        %695 = vmatprep.subr.bf16.mxu0 0
        %696 = vmatpush1.bf16.msra.mxu0 %v672
        %697 = vmatprep.subr.bf16.mxu0 0
        %698 = vmatpush1.bf16.msra.mxu0 %v674
        %699 = vmatprep.subr.bf16.mxu0 0
        %700 = vmatpush1.bf16.msra.mxu0 %v676
        %701 = vmatprep.subr.bf16.mxu0 0
        %702 = vmatpush1.bf16.msra.mxu0 0
        %703 = vmatprep.subr.bf16.mxu0 0
        %704 = vmatpush1.bf16.msra.mxu0 0
        %705 = vmatprep.subr.bf16.mxu0 0
        %706 = vmatpush1.bf16.msra.mxu0 0
        %707 = vmatprep.subr.bf16.mxu0 0
        %708 = vmatpush1.bf16.msra.mxu0 0
        %709 = vmatprep.subr.bf16.mxu0 0
        %710 = vmatpush1.bf16.msra.mxu0 0
        %711 = vmatprep.subr.bf16.mxu0 0
        %712 = vmatpush1.bf16.msra.mxu0 0
        %713 = vmatprep.subr.bf16.mxu0 0
        %714 = vmatpush1.bf16.msra.mxu0 0
        %715 = vmatprep.subr.bf16.mxu0 0
        %716 = vmatpush1.bf16.msra.mxu0 0
        %717 = vmatprep.subr.bf16.mxu0 0
        %718 = vmatpush1.bf16.msra.mxu0 0
        %719 = vmatprep.subr.bf16.mxu0 0
        %720 = vmatpush1.bf16.msra.mxu0 0
        %721 = vmatprep.subr.bf16.mxu0 0
        %722 = vmatpush1.bf16.msra.mxu0 0
        %723 = vmatprep.subr.bf16.mxu0 0
        %724 = vmatpush1.bf16.msra.mxu0 0
        %725 = vmatprep.mubr.bf16.mxu0 0
        %726 = vmatmul.mubr.bf16.gmra.mrb[0].mxu0 %v682
        %v727 = vpop.f32.mrb[0].mxu0
        %v728 = vadd.f32 0.0, %v727
        %v729 = vpop.f32.mrb[0].mxu0
        %v730 = vpop.f32.mrb[0].mxu0
        %v731 = vadd.f32 0.0, %v730
        %v732 = vpop.f32.mrb[0].mxu0
        %733 = vmatprep.mubr.bf16.mxu0 0
        %734 = vmatmul.mubr.bf16.gmra.mrb[0].mxu0 %v685
        %v735 = vpop.f32.mrb[0].mxu0
        %v736 = vadd.f32 0.0, %v735
        %v737 = vpop.f32.mrb[0].mxu0
        %v738 = vpop.f32.mrb[0].mxu0
        %v739 = vadd.f32 0.0, %v738
        %v740 = vpop.f32.mrb[0].mxu0
        %741 = vmatprep.mubr.bf16.mxu0 0
        %742 = vmatmul.mubr.bf16.gmra.mrb[0].mxu0 %v688
        %v743 = vpop.f32.mrb[0].mxu0
        %v744 = vadd.f32 0.0, %v743
        %v745 = vpop.f32.mrb[0].mxu0
        %v746 = vpop.f32.mrb[0].mxu0
        %v747 = vadd.f32 0.0, %v746
        %v748 = vpop.f32.mrb[0].mxu0
        %749 = vmatprep.mubr.bf16.mxu0 0
        %750 = vmatmul.mubr.bf16.gmra.mrb[0].mxu0 %v691
        %v751 = vpop.f32.mrb[0].mxu0
        %v752 = vadd.f32 0.0, %v751
        %v753 = vpop.f32.mrb[0].mxu0
        %v754 = vpop.f32.mrb[0].mxu0
        %v755 = vadd.f32 0.0, %v754
        %v756 = vpop.f32.mrb[0].mxu0
        %757 = vdwg.mxu0
        %758 = vrot.lane.b32.xlu0 %v471, 124
        %v759 = vpop.permute.xlu0 %758
        %760 = vrot.lane.b32.xlu0 %v472, 124
        %v761 = vpop.permute.xlu0 %760
        %762 = vrot.lane.b32.xlu0 %v473, 124
        %v763 = vpop.permute.xlu0 %762
        %764 = vrot.lane.b32.xlu0 %v474, 124
        %v765 = vpop.permute.xlu0 %764
        %766 = vrot.lane.b32.xlu0 %v471, 92
        %v767 = vpop.permute.xlu0 %766
        %768 = vrot.lane.b32.xlu0 %v472, 92
        %v769 = vpop.permute.xlu0 %768
        %770 = vrot.lane.b32.xlu0 %v473, 92
        %v771 = vpop.permute.xlu0 %770
        %772 = vrot.lane.b32.xlu0 %v474, 92
        %v773 = vpop.permute.xlu0 %772
        %v775 = vsel %vm487, %v759, 0
        %v778 = vsel %vm487, %v761, 0
        %v781 = vsel %vm487, %v763, 0
        %v784 = vsel %vm487, %v765, 0
        %v787 = vsel %vm487, %v767, 0
        %v790 = vsel %vm487, %v769, 0
        %v793 = vsel %vm487, %v771, 0
        %v796 = vsel %vm487, %v773, 0
        %798 = vmatprep.subr.bf16.mxu0 0
        %799 = vmatpush1.bf16.xpose.msra.mxu0 %v787
        %800 = vmatprep.subr.bf16.mxu0 0
        %801 = vmatpush1.bf16.xpose.msra.mxu0 %v790
        %802 = vmatprep.subr.bf16.mxu0 0
        %803 = vmatpush1.bf16.xpose.msra.mxu0 %v793
        %804 = vmatprep.subr.bf16.mxu0 0
        %805 = vmatpush1.bf16.xpose.msra.mxu0 %v796
        %806 = vmatprep.subr.bf16.mxu0 0
        %807 = vmatpush1.bf16.xpose.msra.mxu0 0
        %808 = vmatprep.subr.bf16.mxu0 0
        %809 = vmatpush1.bf16.xpose.msra.mxu0 0
        %810 = vmatprep.subr.bf16.mxu0 0
        %811 = vmatpush1.bf16.xpose.msra.mxu0 0
        %812 = vmatprep.subr.bf16.mxu0 0
        %813 = vmatpush1.bf16.xpose.msra.mxu0 0
        %814 = vmatprep.subr.bf16.mxu0 0
        %815 = vmatpush1.bf16.xpose.msra.mxu0 0
        %816 = vmatprep.subr.bf16.mxu0 0
        %817 = vmatpush1.bf16.xpose.msra.mxu0 0
        %818 = vmatprep.subr.bf16.mxu0 0
        %819 = vmatpush1.bf16.xpose.msra.mxu0 0
        %820 = vmatprep.subr.bf16.mxu0 0
        %821 = vmatpush1.bf16.xpose.msra.mxu0 0
        %822 = vmatprep.subr.bf16.mxu0 0
        %823 = vmatpush1.bf16.xpose.msra.mxu0 0
        %824 = vmatprep.subr.bf16.mxu0 0
        %825 = vmatpush1.bf16.xpose.msra.mxu0 0
        %826 = vmatprep.subr.bf16.mxu0 0
        %827 = vmatpush1.bf16.xpose.msra.mxu0 0
        %828 = vmatprep.subr.bf16.mxu0 0
        %829 = vmatpush1.bf16.xpose.msra.mxu0 0
        %830 = vmatprep.mubr.bf16.mxu0 0
        %831 = vmatmul.mubr.bf16.gmra.mrb[0].mxu0 %v775
        %v832 = vpop.f32.mrb[0].mxu0
        %v833 = vadd.f32 0.0, %v832
        %v834 = vpop.f32.mrb[0].mxu0
        %v835 = vpop.f32.mrb[0].mxu0
        %v836 = vadd.f32 0.0, %v835
        %v837 = vpop.f32.mrb[0].mxu0
        %838 = vmatprep.mubr.bf16.mxu0 0
        %839 = vmatmul.mubr.bf16.gmra.mrb[0].mxu0 %v778
        %v840 = vpop.f32.mrb[0].mxu0
        %v841 = vadd.f32 0.0, %v840
        %v842 = vpop.f32.mrb[0].mxu0
        %v843 = vpop.f32.mrb[0].mxu0
        %v844 = vadd.f32 0.0, %v843
        %v845 = vpop.f32.mrb[0].mxu0
        %846 = vmatprep.mubr.bf16.mxu0 0
        %847 = vmatmul.mubr.bf16.gmra.mrb[0].mxu0 %v781
        %v848 = vpop.f32.mrb[0].mxu0
        %v849 = vadd.f32 0.0, %v848
        %v850 = vpop.f32.mrb[0].mxu0
        %v851 = vpop.f32.mrb[0].mxu0
        %v852 = vadd.f32 0.0, %v851
        %v853 = vpop.f32.mrb[0].mxu0
        %854 = vmatprep.mubr.bf16.mxu0 0
        %855 = vmatmul.mubr.bf16.gmra.mrb[0].mxu0 %v784
        %v856 = vpop.f32.mrb[0].mxu0
        %v857 = vadd.f32 0.0, %v856
        %v858 = vpop.f32.mrb[0].mxu0
        %v859 = vpop.f32.mrb[0].mxu0
        %v860 = vadd.f32 0.0, %v859
        %v861 = vpop.f32.mrb[0].mxu0
        %862 = vdwg.mxu0
        %v863 = vsel %vm393, %v833, -inf
        %864 = vmax.xlane.f32.xlu0 %v863
        %v865 = vpop.xlane.xlu0 %864
        %v866 = vsel %vm393, %v836, -inf
        %867 = vmax.xlane.f32.xlu0 %v866
        %v868 = vpop.xlane.xlu0 %867
        %v869 = vsel %vm393, %v841, -inf
        %870 = vmax.xlane.f32.xlu0 %v869
        %v871 = vpop.xlane.xlu0 %870
        %v872 = vsel %vm393, %v844, -inf
        %873 = vmax.xlane.f32.xlu0 %v872
        %v874 = vpop.xlane.xlu0 %873
        %v875 = vsel %vm393, %v849, -inf
        %876 = vmax.xlane.f32.xlu0 %v875
        %v877 = vpop.xlane.xlu0 %876
        %v878 = vsel %vm393, %v852, -inf
        %879 = vmax.xlane.f32.xlu0 %v878
        %v880 = vpop.xlane.xlu0 %879
        %v881 = vsel %vm393, %v857, -inf
        %882 = vmax.xlane.f32.xlu0 %v881
        %v883 = vpop.xlane.xlu0 %882
        %v884 = vsel %vm393, %v860, -inf
        %885 = vmax.xlane.f32.xlu0 %v884
        %v886 = vpop.xlane.xlu0 %885
        %v887 = vsub.f32 %v833, %v865
        %v888 = vsub.f32 %v836, %v868
        %v889 = vsub.f32 %v841, %v871
        %v890 = vsub.f32 %v844, %v874
        %v891 = vsub.f32 %v849, %v877
        %v892 = vsub.f32 %v852, %v880
        %v893 = vsub.f32 %v857, %v883
        %v894 = vsub.f32 %v860, %v886
        %v895 = vmul.f32 %v887, 1.442695
        %v896 = vpow.pop %v895
        %v897 = vmul.f32 %v888, 1.442695
        %v898 = vpow.pop %v897
        %v899 = vmul.f32 %v889, 1.442695
        %v900 = vpow.pop %v899
        %v901 = vmul.f32 %v890, 1.442695
        %v902 = vpow.pop %v901
        %v903 = vmul.f32 %v891, 1.442695
        %v904 = vpow.pop %v903
        %v905 = vmul.f32 %v892, 1.442695
        %v906 = vpow.pop %v905
        %v907 = vmul.f32 %v893, 1.442695
        %v908 = vpow.pop %v907
        %v909 = vmul.f32 %v894, 1.442695
        %v910 = vpow.pop %v909
        %v911 = vsel %vm393, %v896, 0.0
        %912 = vadd.xlane.f32.xlu0 %v911
        %v913 = vpop.xlane.xlu0 %912
        %v914 = vsel %vm393, %v898, 0.0
        %915 = vadd.xlane.f32.xlu0 %v914
        %v916 = vpop.xlane.xlu0 %915
        %v917 = vsel %vm393, %v900, 0.0
        %918 = vadd.xlane.f32.xlu0 %v917
        %v919 = vpop.xlane.xlu0 %918
        %v920 = vsel %vm393, %v902, 0.0
        %921 = vadd.xlane.f32.xlu0 %v920
        %v922 = vpop.xlane.xlu0 %921
        %v923 = vsel %vm393, %v904, 0.0
        %924 = vadd.xlane.f32.xlu0 %v923
        %v925 = vpop.xlane.xlu0 %924
        %v926 = vsel %vm393, %v906, 0.0
        %927 = vadd.xlane.f32.xlu0 %v926
        %v928 = vpop.xlane.xlu0 %927
        %v929 = vsel %vm393, %v908, 0.0
        %930 = vadd.xlane.f32.xlu0 %v929
        %v931 = vpop.xlane.xlu0 %930
        %v932 = vsel %vm393, %v910, 0.0
        %933 = vadd.xlane.f32.xlu0 %v932
        %v934 = vpop.xlane.xlu0 %933
        %v935 = vrcp.pop %v913
        %v936 = vrcp.pop %v916
        %v937 = vrcp.pop %v919
        %v938 = vrcp.pop %v922
        %v939 = vrcp.pop %v925
        %v940 = vrcp.pop %v928
        %v941 = vrcp.pop %v931
        %v942 = vrcp.pop %v934
        %v943 = vmul.f32 %v896, %v935
        %v944 = vmul.f32 %v898, %v936
        %v945 = vmul.f32 %v900, %v937
        %v946 = vmul.f32 %v902, %v938
        %v947 = vmul.f32 %v904, %v939
        %v948 = vmul.f32 %v906, %v940
        %v949 = vmul.f32 %v908, %v941
        %v950 = vmul.f32 %v910, %v942
        %v951 = vpack.c.bf16 %v944, %v943
        %v952 = vpack.c.bf16 %v946, %v945
        %v953 = vpack.c.bf16 %v948, %v947
        %v954 = vpack.c.bf16 %v950, %v949
        %955 = vrot.lane.b32.xlu0 %v471, 56
        %v956 = vpop.permute.xlu0 %955
        %957 = vrot.lane.b32.xlu0 %v472, 56
        %v958 = vpop.permute.xlu0 %957
        %959 = vrot.lane.b32.xlu0 %v473, 56
        %v960 = vpop.permute.xlu0 %959
        %961 = vrot.lane.b32.xlu0 %v474, 56
        %v962 = vpop.permute.xlu0 %961
        %v968 = vsel %vm393, %v951, 0
        %v971 = vsel %vm393, %v952, 0
        %v974 = vsel %vm393, %v953, 0
        %v977 = vsel %vm393, %v954, 0
        %979 = vmatprep.subr.bf16.mxu0 0
        %980 = vmatpush1.bf16.msra.mxu0 %v956
        %981 = vmatprep.subr.bf16.mxu0 0
        %982 = vmatpush1.bf16.msra.mxu0 %v958
        %983 = vmatprep.subr.bf16.mxu0 0
        %984 = vmatpush1.bf16.msra.mxu0 %v960
        %985 = vmatprep.subr.bf16.mxu0 0
        %986 = vmatpush1.bf16.msra.mxu0 %v962
        %987 = vmatprep.subr.bf16.mxu0 0
        %988 = vmatpush1.bf16.msra.mxu0 0
        %989 = vmatprep.subr.bf16.mxu0 0
        %990 = vmatpush1.bf16.msra.mxu0 0
        %991 = vmatprep.subr.bf16.mxu0 0
        %992 = vmatpush1.bf16.msra.mxu0 0
        %993 = vmatprep.subr.bf16.mxu0 0
        %994 = vmatpush1.bf16.msra.mxu0 0
        %995 = vmatprep.subr.bf16.mxu0 0
        %996 = vmatpush1.bf16.msra.mxu0 0
        %997 = vmatprep.subr.bf16.mxu0 0
        %998 = vmatpush1.bf16.msra.mxu0 0
        %999 = vmatprep.subr.bf16.mxu0 0
        %1000 = vmatpush1.bf16.msra.mxu0 0
        %1001 = vmatprep.subr.bf16.mxu0 0
        %1002 = vmatpush1.bf16.msra.mxu0 0
        %1003 = vmatprep.subr.bf16.mxu0 0
        %1004 = vmatpush1.bf16.msra.mxu0 0
        %1005 = vmatprep.subr.bf16.mxu0 0
        %1006 = vmatpush1.bf16.msra.mxu0 0
        %1007 = vmatprep.subr.bf16.mxu0 0
        %1008 = vmatpush1.bf16.msra.mxu0 0
        %1009 = vmatprep.subr.bf16.mxu0 0
        %1010 = vmatpush1.bf16.msra.mxu0 0
        %1011 = vmatprep.mubr.bf16.mxu0 0
        %1012 = vmatmul.mubr.bf16.gmra.mrb[0].mxu0 %v968
        %v1013 = vpop.f32.mrb[0].mxu0
        %v1014 = vadd.f32 0.0, %v1013
        %v1015 = vpop.f32.mrb[0].mxu0
        %v1016 = vpop.f32.mrb[0].mxu0
        %v1017 = vadd.f32 0.0, %v1016
        %v1018 = vpop.f32.mrb[0].mxu0
        %1019 = vmatprep.mubr.bf16.mxu0 0
        %1020 = vmatmul.mubr.bf16.gmra.mrb[0].mxu0 %v971
        %v1021 = vpop.f32.mrb[0].mxu0
        %v1022 = vadd.f32 0.0, %v1021
        %v1023 = vpop.f32.mrb[0].mxu0
        %v1024 = vpop.f32.mrb[0].mxu0
        %v1025 = vadd.f32 0.0, %v1024
        %v1026 = vpop.f32.mrb[0].mxu0
        %1027 = vmatprep.mubr.bf16.mxu0 0
        %1028 = vmatmul.mubr.bf16.gmra.mrb[0].mxu0 %v974
        %v1029 = vpop.f32.mrb[0].mxu0
        %v1030 = vadd.f32 0.0, %v1029
        %v1031 = vpop.f32.mrb[0].mxu0
        %v1032 = vpop.f32.mrb[0].mxu0
        %v1033 = vadd.f32 0.0, %v1032
        %v1034 = vpop.f32.mrb[0].mxu0
        %1035 = vmatprep.mubr.bf16.mxu0 0
        %1036 = vmatmul.mubr.bf16.gmra.mrb[0].mxu0 %v977
        %v1037 = vpop.f32.mrb[0].mxu0
        %v1038 = vadd.f32 0.0, %v1037
        %v1039 = vpop.f32.mrb[0].mxu0
        %v1040 = vpop.f32.mrb[0].mxu0
        %v1041 = vadd.f32 0.0, %v1040
        %v1042 = vpop.f32.mrb[0].mxu0
        %1043 = vdwg.mxu0
        %1044 = vrot.lane.b32.xlu0 %v471, 120
        %v1045 = vpop.permute.xlu0 %1044
        %1046 = vrot.lane.b32.xlu0 %v472, 120
        %v1047 = vpop.permute.xlu0 %1046
        %1048 = vrot.lane.b32.xlu0 %v473, 120
        %v1049 = vpop.permute.xlu0 %1048
        %1050 = vrot.lane.b32.xlu0 %v474, 120
        %v1051 = vpop.permute.xlu0 %1050
        %1052 = vrot.lane.b32.xlu0 %v471, 88
        %v1053 = vpop.permute.xlu0 %1052
        %1054 = vrot.lane.b32.xlu0 %v472, 88
        %v1055 = vpop.permute.xlu0 %1054
        %1056 = vrot.lane.b32.xlu0 %v473, 88
        %v1057 = vpop.permute.xlu0 %1056
        %1058 = vrot.lane.b32.xlu0 %v474, 88
        %v1059 = vpop.permute.xlu0 %1058
        %v1061 = vsel %vm487, %v1045, 0
        %v1064 = vsel %vm487, %v1047, 0
        %v1067 = vsel %vm487, %v1049, 0
        %v1070 = vsel %vm487, %v1051, 0
        %v1073 = vsel %vm487, %v1053, 0
        %v1076 = vsel %vm487, %v1055, 0
        %v1079 = vsel %vm487, %v1057, 0
        %v1082 = vsel %vm487, %v1059, 0
        %1084 = vmatprep.subr.bf16.mxu0 0
        %1085 = vmatpush1.bf16.xpose.msra.mxu0 %v1073
        %1086 = vmatprep.subr.bf16.mxu0 0
        %1087 = vmatpush1.bf16.xpose.msra.mxu0 %v1076
        %1088 = vmatprep.subr.bf16.mxu0 0
        %1089 = vmatpush1.bf16.xpose.msra.mxu0 %v1079
        %1090 = vmatprep.subr.bf16.mxu0 0
        %1091 = vmatpush1.bf16.xpose.msra.mxu0 %v1082
        %1092 = vmatprep.subr.bf16.mxu0 0
        %1093 = vmatpush1.bf16.xpose.msra.mxu0 0
        %1094 = vmatprep.subr.bf16.mxu0 0
        %1095 = vmatpush1.bf16.xpose.msra.mxu0 0
        %1096 = vmatprep.subr.bf16.mxu0 0
        %1097 = vmatpush1.bf16.xpose.msra.mxu0 0
        %1098 = vmatprep.subr.bf16.mxu0 0
        %1099 = vmatpush1.bf16.xpose.msra.mxu0 0
        %1100 = vmatprep.subr.bf16.mxu0 0
        %1101 = vmatpush1.bf16.xpose.msra.mxu0 0
        %1102 = vmatprep.subr.bf16.mxu0 0
        %1103 = vmatpush1.bf16.xpose.msra.mxu0 0
        %1104 = vmatprep.subr.bf16.mxu0 0
        %1105 = vmatpush1.bf16.xpose.msra.mxu0 0
        %1106 = vmatprep.subr.bf16.mxu0 0
        %1107 = vmatpush1.bf16.xpose.msra.mxu0 0
        %1108 = vmatprep.subr.bf16.mxu0 0
        %1109 = vmatpush1.bf16.xpose.msra.mxu0 0
        %1110 = vmatprep.subr.bf16.mxu0 0
        %1111 = vmatpush1.bf16.xpose.msra.mxu0 0
        %1112 = vmatprep.subr.bf16.mxu0 0
        %1113 = vmatpush1.bf16.xpose.msra.mxu0 0
        %1114 = vmatprep.subr.bf16.mxu0 0
        %1115 = vmatpush1.bf16.xpose.msra.mxu0 0
        %1116 = vmatprep.mubr.bf16.mxu0 0
        %1117 = vmatmul.mubr.bf16.gmra.mrb[0].mxu0 %v1061
        %v1118 = vpop.f32.mrb[0].mxu0
        %v1119 = vadd.f32 0.0, %v1118
        %v1120 = vpop.f32.mrb[0].mxu0
        %v1121 = vpop.f32.mrb[0].mxu0
        %v1122 = vadd.f32 0.0, %v1121
        %v1123 = vpop.f32.mrb[0].mxu0
        %1124 = vmatprep.mubr.bf16.mxu0 0
        %1125 = vmatmul.mubr.bf16.gmra.mrb[0].mxu0 %v1064
        %v1126 = vpop.f32.mrb[0].mxu0
        %v1127 = vadd.f32 0.0, %v1126
        %v1128 = vpop.f32.mrb[0].mxu0
        %v1129 = vpop.f32.mrb[0].mxu0
        %v1130 = vadd.f32 0.0, %v1129
        %v1131 = vpop.f32.mrb[0].mxu0
        %1132 = vmatprep.mubr.bf16.mxu0 0
        %1133 = vmatmul.mubr.bf16.gmra.mrb[0].mxu0 %v1067
        %v1134 = vpop.f32.mrb[0].mxu0
        %v1135 = vadd.f32 0.0, %v1134
        %v1136 = vpop.f32.mrb[0].mxu0
        %v1137 = vpop.f32.mrb[0].mxu0
        %v1138 = vadd.f32 0.0, %v1137
        %v1139 = vpop.f32.mrb[0].mxu0
        %1140 = vmatprep.mubr.bf16.mxu0 0
        %1141 = vmatmul.mubr.bf16.gmra.mrb[0].mxu0 %v1070
        %v1142 = vpop.f32.mrb[0].mxu0
        %v1143 = vadd.f32 0.0, %v1142
        %v1144 = vpop.f32.mrb[0].mxu0
        %v1145 = vpop.f32.mrb[0].mxu0
        %v1146 = vadd.f32 0.0, %v1145
        %v1147 = vpop.f32.mrb[0].mxu0
        %1148 = vdwg.mxu0
        %v1149 = vsel %vm393, %v1119, -inf
        %1150 = vmax.xlane.f32.xlu0 %v1149
        %v1151 = vpop.xlane.xlu0 %1150
        %v1152 = vsel %vm393, %v1122, -inf
        %1153 = vmax.xlane.f32.xlu0 %v1152
        %v1154 = vpop.xlane.xlu0 %1153
        %v1155 = vsel %vm393, %v1127, -inf
        %1156 = vmax.xlane.f32.xlu0 %v1155
        %v1157 = vpop.xlane.xlu0 %1156
        %v1158 = vsel %vm393, %v1130, -inf
        %1159 = vmax.xlane.f32.xlu0 %v1158
        %v1160 = vpop.xlane.xlu0 %1159
        %v1161 = vsel %vm393, %v1135, -inf
        %1162 = vmax.xlane.f32.xlu0 %v1161
        %v1163 = vpop.xlane.xlu0 %1162
        %v1164 = vsel %vm393, %v1138, -inf
        %1165 = vmax.xlane.f32.xlu0 %v1164
        %v1166 = vpop.xlane.xlu0 %1165
        %v1167 = vsel %vm393, %v1143, -inf
        %1168 = vmax.xlane.f32.xlu0 %v1167
        %v1169 = vpop.xlane.xlu0 %1168
        %v1170 = vsel %vm393, %v1146, -inf
        %1171 = vmax.xlane.f32.xlu0 %v1170
        %v1172 = vpop.xlane.xlu0 %1171
        %v1173 = vsub.f32 %v1119, %v1151
        %v1174 = vsub.f32 %v1122, %v1154
        %v1175 = vsub.f32 %v1127, %v1157
        %v1176 = vsub.f32 %v1130, %v1160
        %v1177 = vsub.f32 %v1135, %v1163
        %v1178 = vsub.f32 %v1138, %v1166
        %v1179 = vsub.f32 %v1143, %v1169
        %v1180 = vsub.f32 %v1146, %v1172
        %v1181 = vmul.f32 %v1173, 1.442695
        %v1182 = vpow.pop %v1181
        %v1183 = vmul.f32 %v1174, 1.442695
        %v1184 = vpow.pop %v1183
        %v1185 = vmul.f32 %v1175, 1.442695
        %v1186 = vpow.pop %v1185
        %v1187 = vmul.f32 %v1176, 1.442695
        %v1188 = vpow.pop %v1187
        %v1189 = vmul.f32 %v1177, 1.442695
        %v1190 = vpow.pop %v1189
        %v1191 = vmul.f32 %v1178, 1.442695
        %v1192 = vpow.pop %v1191
        %v1193 = vmul.f32 %v1179, 1.442695
        %v1194 = vpow.pop %v1193
        %v1195 = vmul.f32 %v1180, 1.442695
        %v1196 = vpow.pop %v1195
        %v1197 = vsel %vm393, %v1182, 0.0
        %1198 = vadd.xlane.f32.xlu0 %v1197
        %v1199 = vpop.xlane.xlu0 %1198
        %v1200 = vsel %vm393, %v1184, 0.0
        %1201 = vadd.xlane.f32.xlu0 %v1200
        %v1202 = vpop.xlane.xlu0 %1201
        %v1203 = vsel %vm393, %v1186, 0.0
        %1204 = vadd.xlane.f32.xlu0 %v1203
        %v1205 = vpop.xlane.xlu0 %1204
        %v1206 = vsel %vm393, %v1188, 0.0
        %1207 = vadd.xlane.f32.xlu0 %v1206
        %v1208 = vpop.xlane.xlu0 %1207
        %v1209 = vsel %vm393, %v1190, 0.0
        %1210 = vadd.xlane.f32.xlu0 %v1209
        %v1211 = vpop.xlane.xlu0 %1210
        %v1212 = vsel %vm393, %v1192, 0.0
        %1213 = vadd.xlane.f32.xlu0 %v1212
        %v1214 = vpop.xlane.xlu0 %1213
        %v1215 = vsel %vm393, %v1194, 0.0
        %1216 = vadd.xlane.f32.xlu0 %v1215
        %v1217 = vpop.xlane.xlu0 %1216
        %v1218 = vsel %vm393, %v1196, 0.0
        %1219 = vadd.xlane.f32.xlu0 %v1218
        %v1220 = vpop.xlane.xlu0 %1219
        %v1221 = vrcp.pop %v1199
        %v1222 = vrcp.pop %v1202
        %v1223 = vrcp.pop %v1205
        %v1224 = vrcp.pop %v1208
        %v1225 = vrcp.pop %v1211
        %v1226 = vrcp.pop %v1214
        %v1227 = vrcp.pop %v1217
        %v1228 = vrcp.pop %v1220
        %v1229 = vmul.f32 %v1182, %v1221
        %v1230 = vmul.f32 %v1184, %v1222
        %v1231 = vmul.f32 %v1186, %v1223
        %v1232 = vmul.f32 %v1188, %v1224
        %v1233 = vmul.f32 %v1190, %v1225
        %v1234 = vmul.f32 %v1192, %v1226
        %v1235 = vmul.f32 %v1194, %v1227
        %v1236 = vmul.f32 %v1196, %v1228
        %v1237 = vpack.c.bf16 %v1230, %v1229
        %v1238 = vpack.c.bf16 %v1232, %v1231
        %v1239 = vpack.c.bf16 %v1234, %v1233
        %v1240 = vpack.c.bf16 %v1236, %v1235
        %1241 = vrot.lane.b32.xlu0 %v471, 48
        %v1242 = vpop.permute.xlu0 %1241
        %1243 = vrot.lane.b32.xlu0 %v472, 48
        %v1244 = vpop.permute.xlu0 %1243
        %1245 = vrot.lane.b32.xlu0 %v473, 48
        %v1246 = vpop.permute.xlu0 %1245
        %1247 = vrot.lane.b32.xlu0 %v474, 48
        %v1248 = vpop.permute.xlu0 %1247
        %v1254 = vsel %vm393, %v1237, 0
        %v1257 = vsel %vm393, %v1238, 0
        %v1260 = vsel %vm393, %v1239, 0
        %v1263 = vsel %vm393, %v1240, 0
        %1265 = vmatprep.subr.bf16.mxu0 0
        %1266 = vmatpush1.bf16.msra.mxu0 %v1242
        %1267 = vmatprep.subr.bf16.mxu0 0
        %1268 = vmatpush1.bf16.msra.mxu0 %v1244
        %1269 = vmatprep.subr.bf16.mxu0 0
        %1270 = vmatpush1.bf16.msra.mxu0 %v1246
        %1271 = vmatprep.subr.bf16.mxu0 0
        %1272 = vmatpush1.bf16.msra.mxu0 %v1248
        %1273 = vmatprep.subr.bf16.mxu0 0
        %1274 = vmatpush1.bf16.msra.mxu0 0
        %1275 = vmatprep.subr.bf16.mxu0 0
        %1276 = vmatpush1.bf16.msra.mxu0 0
        %1277 = vmatprep.subr.bf16.mxu0 0
        %1278 = vmatpush1.bf16.msra.mxu0 0
        %1279 = vmatprep.subr.bf16.mxu0 0
        %1280 = vmatpush1.bf16.msra.mxu0 0
        %1281 = vmatprep.subr.bf16.mxu0 0
        %1282 = vmatpush1.bf16.msra.mxu0 0
        %1283 = vmatprep.subr.bf16.mxu0 0
        %1284 = vmatpush1.bf16.msra.mxu0 0
        %1285 = vmatprep.subr.bf16.mxu0 0
        %1286 = vmatpush1.bf16.msra.mxu0 0
        %1287 = vmatprep.subr.bf16.mxu0 0
        %1288 = vmatpush1.bf16.msra.mxu0 0
        %1289 = vmatprep.subr.bf16.mxu0 0
        %1290 = vmatpush1.bf16.msra.mxu0 0
        %1291 = vmatprep.subr.bf16.mxu0 0
        %1292 = vmatpush1.bf16.msra.mxu0 0
        %1293 = vmatprep.subr.bf16.mxu0 0
        %1294 = vmatpush1.bf16.msra.mxu0 0
        %1295 = vmatprep.subr.bf16.mxu0 0
        %1296 = vmatpush1.bf16.msra.mxu0 0
        %1297 = vmatprep.mubr.bf16.mxu0 0
        %1298 = vmatmul.mubr.bf16.gmra.mrb[0].mxu0 %v1254
        %v1299 = vpop.f32.mrb[0].mxu0
        %v1300 = vadd.f32 0.0, %v1299
        %v1301 = vpop.f32.mrb[0].mxu0
        %v1302 = vpop.f32.mrb[0].mxu0
        %v1303 = vadd.f32 0.0, %v1302
        %v1304 = vpop.f32.mrb[0].mxu0
        %1305 = vmatprep.mubr.bf16.mxu0 0
        %1306 = vmatmul.mubr.bf16.gmra.mrb[0].mxu0 %v1257
        %v1307 = vpop.f32.mrb[0].mxu0
        %v1308 = vadd.f32 0.0, %v1307
        %v1309 = vpop.f32.mrb[0].mxu0
        %v1310 = vpop.f32.mrb[0].mxu0
        %v1311 = vadd.f32 0.0, %v1310
        %v1312 = vpop.f32.mrb[0].mxu0
        %1313 = vmatprep.mubr.bf16.mxu0 0
        %1314 = vmatmul.mubr.bf16.gmra.mrb[0].mxu0 %v1260
        %v1315 = vpop.f32.mrb[0].mxu0
        %v1316 = vadd.f32 0.0, %v1315
        %v1317 = vpop.f32.mrb[0].mxu0
        %v1318 = vpop.f32.mrb[0].mxu0
        %v1319 = vadd.f32 0.0, %v1318
        %v1320 = vpop.f32.mrb[0].mxu0
        %1321 = vmatprep.mubr.bf16.mxu0 0
        %1322 = vmatmul.mubr.bf16.gmra.mrb[0].mxu0 %v1263
        %v1323 = vpop.f32.mrb[0].mxu0
        %v1324 = vadd.f32 0.0, %v1323
        %v1325 = vpop.f32.mrb[0].mxu0
        %v1326 = vpop.f32.mrb[0].mxu0
        %v1327 = vadd.f32 0.0, %v1326
        %v1328 = vpop.f32.mrb[0].mxu0
        %1329 = vdwg.mxu0
        %1330 = vrot.lane.b32.xlu0 %v471, 116
        %v1331 = vpop.permute.xlu0 %1330
        %1332 = vrot.lane.b32.xlu0 %v472, 116
        %v1333 = vpop.permute.xlu0 %1332
        %1334 = vrot.lane.b32.xlu0 %v473, 116
        %v1335 = vpop.permute.xlu0 %1334
        %1336 = vrot.lane.b32.xlu0 %v474, 116
        %v1337 = vpop.permute.xlu0 %1336
        %1338 = vrot.lane.b32.xlu0 %v471, 84
        %v1339 = vpop.permute.xlu0 %1338
        %1340 = vrot.lane.b32.xlu0 %v472, 84
        %v1341 = vpop.permute.xlu0 %1340
        %1342 = vrot.lane.b32.xlu0 %v473, 84
        %v1343 = vpop.permute.xlu0 %1342
        %1344 = vrot.lane.b32.xlu0 %v474, 84
        %v1345 = vpop.permute.xlu0 %1344
        %v1347 = vsel %vm487, %v1331, 0
        %v1350 = vsel %vm487, %v1333, 0
        %v1353 = vsel %vm487, %v1335, 0
        %v1356 = vsel %vm487, %v1337, 0
        %v1359 = vsel %vm487, %v1339, 0
        %v1362 = vsel %vm487, %v1341, 0
        %v1365 = vsel %vm487, %v1343, 0
        %v1368 = vsel %vm487, %v1345, 0
        %1370 = vmatprep.subr.bf16.mxu0 0
        %1371 = vmatpush1.bf16.xpose.msra.mxu0 %v1359
        %1372 = vmatprep.subr.bf16.mxu0 0
        %1373 = vmatpush1.bf16.xpose.msra.mxu0 %v1362
        %1374 = vmatprep.subr.bf16.mxu0 0
        %1375 = vmatpush1.bf16.xpose.msra.mxu0 %v1365
        %1376 = vmatprep.subr.bf16.mxu0 0
        %1377 = vmatpush1.bf16.xpose.msra.mxu0 %v1368
        %1378 = vmatprep.subr.bf16.mxu0 0
        %1379 = vmatpush1.bf16.xpose.msra.mxu0 0
        %1380 = vmatprep.subr.bf16.mxu0 0
        %1381 = vmatpush1.bf16.xpose.msra.mxu0 0
        %1382 = vmatprep.subr.bf16.mxu0 0
        %1383 = vmatpush1.bf16.xpose.msra.mxu0 0
        %1384 = vmatprep.subr.bf16.mxu0 0
        %1385 = vmatpush1.bf16.xpose.msra.mxu0 0
        %1386 = vmatprep.subr.bf16.mxu0 0
        %1387 = vmatpush1.bf16.xpose.msra.mxu0 0
        %1388 = vmatprep.subr.bf16.mxu0 0
        %1389 = vmatpush1.bf16.xpose.msra.mxu0 0
        %1390 = vmatprep.subr.bf16.mxu0 0
        %1391 = vmatpush1.bf16.xpose.msra.mxu0 0
        %1392 = vmatprep.subr.bf16.mxu0 0
        %1393 = vmatpush1.bf16.xpose.msra.mxu0 0
        %1394 = vmatprep.subr.bf16.mxu0 0
        %1395 = vmatpush1.bf16.xpose.msra.mxu0 0
        %1396 = vmatprep.subr.bf16.mxu0 0
        %1397 = vmatpush1.bf16.xpose.msra.mxu0 0
        %1398 = vmatprep.subr.bf16.mxu0 0
        %1399 = vmatpush1.bf16.xpose.msra.mxu0 0
        %1400 = vmatprep.subr.bf16.mxu0 0
        %1401 = vmatpush1.bf16.xpose.msra.mxu0 0
        %1402 = vmatprep.mubr.bf16.mxu0 0
        %1403 = vmatmul.mubr.bf16.gmra.mrb[0].mxu0 %v1347
        %v1404 = vpop.f32.mrb[0].mxu0
        %v1405 = vadd.f32 0.0, %v1404
        %v1406 = vpop.f32.mrb[0].mxu0
        %v1407 = vpop.f32.mrb[0].mxu0
        %v1408 = vadd.f32 0.0, %v1407
        %v1409 = vpop.f32.mrb[0].mxu0
        %1410 = vmatprep.mubr.bf16.mxu0 0
        %1411 = vmatmul.mubr.bf16.gmra.mrb[0].mxu0 %v1350
        %v1412 = vpop.f32.mrb[0].mxu0
        %v1413 = vadd.f32 0.0, %v1412
        %v1414 = vpop.f32.mrb[0].mxu0
        %v1415 = vpop.f32.mrb[0].mxu0
        %v1416 = vadd.f32 0.0, %v1415
        %v1417 = vpop.f32.mrb[0].mxu0
        %1418 = vmatprep.mubr.bf16.mxu0 0
        %1419 = vmatmul.mubr.bf16.gmra.mrb[0].mxu0 %v1353
        %v1420 = vpop.f32.mrb[0].mxu0
        %v1421 = vadd.f32 0.0, %v1420
        %v1422 = vpop.f32.mrb[0].mxu0
        %v1423 = vpop.f32.mrb[0].mxu0
        %v1424 = vadd.f32 0.0, %v1423
        %v1425 = vpop.f32.mrb[0].mxu0
        %1426 = vmatprep.mubr.bf16.mxu0 0
        %1427 = vmatmul.mubr.bf16.gmra.mrb[0].mxu0 %v1356
        %v1428 = vpop.f32.mrb[0].mxu0
        %v1429 = vadd.f32 0.0, %v1428
        %v1430 = vpop.f32.mrb[0].mxu0
        %v1431 = vpop.f32.mrb[0].mxu0
        %v1432 = vadd.f32 0.0, %v1431
        %v1433 = vpop.f32.mrb[0].mxu0
        %1434 = vdwg.mxu0
        %v1435 = vsel %vm393, %v1405, -inf
        %1436 = vmax.xlane.f32.xlu0 %v1435
        %v1437 = vpop.xlane.xlu0 %1436
        %v1438 = vsel %vm393, %v1408, -inf
        %1439 = vmax.xlane.f32.xlu0 %v1438
        %v1440 = vpop.xlane.xlu0 %1439
        %v1441 = vsel %vm393, %v1413, -inf
        %1442 = vmax.xlane.f32.xlu0 %v1441
        %v1443 = vpop.xlane.xlu0 %1442
        %v1444 = vsel %vm393, %v1416, -inf
        %1445 = vmax.xlane.f32.xlu0 %v1444
        %v1446 = vpop.xlane.xlu0 %1445
        %v1447 = vsel %vm393, %v1421, -inf
        %1448 = vmax.xlane.f32.xlu0 %v1447
        %v1449 = vpop.xlane.xlu0 %1448
        %v1450 = vsel %vm393, %v1424, -inf
        %1451 = vmax.xlane.f32.xlu0 %v1450
        %v1452 = vpop.xlane.xlu0 %1451
        %v1453 = vsel %vm393, %v1429, -inf
        %1454 = vmax.xlane.f32.xlu0 %v1453
        %v1455 = vpop.xlane.xlu0 %1454
        %v1456 = vsel %vm393, %v1432, -inf
        %1457 = vmax.xlane.f32.xlu0 %v1456
        %v1458 = vpop.xlane.xlu0 %1457
        %v1459 = vsub.f32 %v1405, %v1437
        %v1460 = vsub.f32 %v1408, %v1440
        %v1461 = vsub.f32 %v1413, %v1443
        %v1462 = vsub.f32 %v1416, %v1446
        %v1463 = vsub.f32 %v1421, %v1449
        %v1464 = vsub.f32 %v1424, %v1452
        %v1465 = vsub.f32 %v1429, %v1455
        %v1466 = vsub.f32 %v1432, %v1458
        %v1467 = vmul.f32 %v1459, 1.442695
        %v1468 = vpow.pop %v1467
        %v1469 = vmul.f32 %v1460, 1.442695
        %v1470 = vpow.pop %v1469
        %v1471 = vmul.f32 %v1461, 1.442695
        %v1472 = vpow.pop %v1471
        %v1473 = vmul.f32 %v1462, 1.442695
        %v1474 = vpow.pop %v1473
        %v1475 = vmul.f32 %v1463, 1.442695
        %v1476 = vpow.pop %v1475
        %v1477 = vmul.f32 %v1464, 1.442695
        %v1478 = vpow.pop %v1477
        %v1479 = vmul.f32 %v1465, 1.442695
        %v1480 = vpow.pop %v1479
        %v1481 = vmul.f32 %v1466, 1.442695
        %v1482 = vpow.pop %v1481
        %v1483 = vsel %vm393, %v1468, 0.0
        %1484 = vadd.xlane.f32.xlu0 %v1483
        %v1485 = vpop.xlane.xlu0 %1484
        %v1486 = vsel %vm393, %v1470, 0.0
        %1487 = vadd.xlane.f32.xlu0 %v1486
        %v1488 = vpop.xlane.xlu0 %1487
        %v1489 = vsel %vm393, %v1472, 0.0
        %1490 = vadd.xlane.f32.xlu0 %v1489
        %v1491 = vpop.xlane.xlu0 %1490
        %v1492 = vsel %vm393, %v1474, 0.0
        %1493 = vadd.xlane.f32.xlu0 %v1492
        %v1494 = vpop.xlane.xlu0 %1493
        %v1495 = vsel %vm393, %v1476, 0.0
        %1496 = vadd.xlane.f32.xlu0 %v1495
        %v1497 = vpop.xlane.xlu0 %1496
        %v1498 = vsel %vm393, %v1478, 0.0
        %1499 = vadd.xlane.f32.xlu0 %v1498
        %v1500 = vpop.xlane.xlu0 %1499
        %v1501 = vsel %vm393, %v1480, 0.0
        %1502 = vadd.xlane.f32.xlu0 %v1501
        %v1503 = vpop.xlane.xlu0 %1502
        %v1504 = vsel %vm393, %v1482, 0.0
        %1505 = vadd.xlane.f32.xlu0 %v1504
        %v1506 = vpop.xlane.xlu0 %1505
        %v1507 = vrcp.pop %v1485
        %v1508 = vrcp.pop %v1488
        %v1509 = vrcp.pop %v1491
        %v1510 = vrcp.pop %v1494
        %v1511 = vrcp.pop %v1497
        %v1512 = vrcp.pop %v1500
        %v1513 = vrcp.pop %v1503
        %v1514 = vrcp.pop %v1506
        %v1515 = vmul.f32 %v1468, %v1507
        %v1516 = vmul.f32 %v1470, %v1508
        %v1517 = vmul.f32 %v1472, %v1509
        %v1518 = vmul.f32 %v1474, %v1510
        %v1519 = vmul.f32 %v1476, %v1511
        %v1520 = vmul.f32 %v1478, %v1512
        %v1521 = vmul.f32 %v1480, %v1513
        %v1522 = vmul.f32 %v1482, %v1514
        %v1523 = vpack.c.bf16 %v1516, %v1515
        %v1524 = vpack.c.bf16 %v1518, %v1517
        %v1525 = vpack.c.bf16 %v1520, %v1519
        %v1526 = vpack.c.bf16 %v1522, %v1521
        %1527 = vrot.lane.b32.xlu0 %v471, 40
        %v1528 = vpop.permute.xlu0 %1527
        %1529 = vrot.lane.b32.xlu0 %v472, 40
        %v1530 = vpop.permute.xlu0 %1529
        %1531 = vrot.lane.b32.xlu0 %v473, 40
        %v1532 = vpop.permute.xlu0 %1531
        %1533 = vrot.lane.b32.xlu0 %v474, 40
        %v1534 = vpop.permute.xlu0 %1533
        %v1540 = vsel %vm393, %v1523, 0
        %v1543 = vsel %vm393, %v1524, 0
        %v1546 = vsel %vm393, %v1525, 0
        %v1549 = vsel %vm393, %v1526, 0
        %1551 = vmatprep.subr.bf16.mxu0 0
        %1552 = vmatpush1.bf16.msra.mxu0 %v1528
        %1553 = vmatprep.subr.bf16.mxu0 0
        %1554 = vmatpush1.bf16.msra.mxu0 %v1530
        %1555 = vmatprep.subr.bf16.mxu0 0
        %1556 = vmatpush1.bf16.msra.mxu0 %v1532
        %1557 = vmatprep.subr.bf16.mxu0 0
        %1558 = vmatpush1.bf16.msra.mxu0 %v1534
        %1559 = vmatprep.subr.bf16.mxu0 0
        %1560 = vmatpush1.bf16.msra.mxu0 0
        %1561 = vmatprep.subr.bf16.mxu0 0
        %1562 = vmatpush1.bf16.msra.mxu0 0
        %1563 = vmatprep.subr.bf16.mxu0 0
        %1564 = vmatpush1.bf16.msra.mxu0 0
        %1565 = vmatprep.subr.bf16.mxu0 0
        %1566 = vmatpush1.bf16.msra.mxu0 0
        %1567 = vmatprep.subr.bf16.mxu0 0
        %1568 = vmatpush1.bf16.msra.mxu0 0
        %1569 = vmatprep.subr.bf16.mxu0 0
        %1570 = vmatpush1.bf16.msra.mxu0 0
        %1571 = vmatprep.subr.bf16.mxu0 0
        %1572 = vmatpush1.bf16.msra.mxu0 0
        %1573 = vmatprep.subr.bf16.mxu0 0
        %1574 = vmatpush1.bf16.msra.mxu0 0
        %1575 = vmatprep.subr.bf16.mxu0 0
        %1576 = vmatpush1.bf16.msra.mxu0 0
        %1577 = vmatprep.subr.bf16.mxu0 0
        %1578 = vmatpush1.bf16.msra.mxu0 0
        %1579 = vmatprep.subr.bf16.mxu0 0
        %1580 = vmatpush1.bf16.msra.mxu0 0
        %1581 = vmatprep.subr.bf16.mxu0 0
        %1582 = vmatpush1.bf16.msra.mxu0 0
        %1583 = vmatprep.mubr.bf16.mxu0 0
        %1584 = vmatmul.mubr.bf16.gmra.mrb[0].mxu0 %v1540
        %v1585 = vpop.f32.mrb[0].mxu0
        %v1586 = vadd.f32 0.0, %v1585
        %v1587 = vpop.f32.mrb[0].mxu0
        %v1588 = vpop.f32.mrb[0].mxu0
        %v1589 = vadd.f32 0.0, %v1588
        %v1590 = vpop.f32.mrb[0].mxu0
        %1591 = vmatprep.mubr.bf16.mxu0 0
        %1592 = vmatmul.mubr.bf16.gmra.mrb[0].mxu0 %v1543
        %v1593 = vpop.f32.mrb[0].mxu0
        %v1594 = vadd.f32 0.0, %v1593
        %v1595 = vpop.f32.mrb[0].mxu0
        %v1596 = vpop.f32.mrb[0].mxu0
        %v1597 = vadd.f32 0.0, %v1596
        %v1598 = vpop.f32.mrb[0].mxu0
        %1599 = vmatprep.mubr.bf16.mxu0 0
        %1600 = vmatmul.mubr.bf16.gmra.mrb[0].mxu0 %v1546
        %v1601 = vpop.f32.mrb[0].mxu0
        %v1602 = vadd.f32 0.0, %v1601
        %v1603 = vpop.f32.mrb[0].mxu0
        %v1604 = vpop.f32.mrb[0].mxu0
        %v1605 = vadd.f32 0.0, %v1604
        %v1606 = vpop.f32.mrb[0].mxu0
        %1607 = vmatprep.mubr.bf16.mxu0 0
        %1608 = vmatmul.mubr.bf16.gmra.mrb[0].mxu0 %v1549
        %v1609 = vpop.f32.mrb[0].mxu0
        %v1610 = vadd.f32 0.0, %v1609
        %v1611 = vpop.f32.mrb[0].mxu0
        %v1612 = vpop.f32.mrb[0].mxu0
        %v1613 = vadd.f32 0.0, %v1612
        %v1614 = vpop.f32.mrb[0].mxu0
        %1615 = vdwg.mxu0
        %1616 = vrot.lane.b32.xlu0 %v471, 112
        %v1617 = vpop.permute.xlu0 %1616
        %1618 = vrot.lane.b32.xlu0 %v472, 112
        %v1619 = vpop.permute.xlu0 %1618
        %1620 = vrot.lane.b32.xlu0 %v473, 112
        %v1621 = vpop.permute.xlu0 %1620
        %1622 = vrot.lane.b32.xlu0 %v474, 112
        %v1623 = vpop.permute.xlu0 %1622
        %1624 = vrot.lane.b32.xlu0 %v471, 80
        %v1625 = vpop.permute.xlu0 %1624
        %1626 = vrot.lane.b32.xlu0 %v472, 80
        %v1627 = vpop.permute.xlu0 %1626
        %1628 = vrot.lane.b32.xlu0 %v473, 80
        %v1629 = vpop.permute.xlu0 %1628
        %1630 = vrot.lane.b32.xlu0 %v474, 80
        %v1631 = vpop.permute.xlu0 %1630
        %v1633 = vsel %vm487, %v1617, 0
        %v1636 = vsel %vm487, %v1619, 0
        %v1639 = vsel %vm487, %v1621, 0
        %v1642 = vsel %vm487, %v1623, 0
        %v1645 = vsel %vm487, %v1625, 0
        %v1648 = vsel %vm487, %v1627, 0
        %v1651 = vsel %vm487, %v1629, 0
        %v1654 = vsel %vm487, %v1631, 0
        %1656 = vmatprep.subr.bf16.mxu0 0
        %1657 = vmatpush1.bf16.xpose.msra.mxu0 %v1645
        %1658 = vmatprep.subr.bf16.mxu0 0
        %1659 = vmatpush1.bf16.xpose.msra.mxu0 %v1648
        %1660 = vmatprep.subr.bf16.mxu0 0
        %1661 = vmatpush1.bf16.xpose.msra.mxu0 %v1651
        %1662 = vmatprep.subr.bf16.mxu0 0
        %1663 = vmatpush1.bf16.xpose.msra.mxu0 %v1654
        %1664 = vmatprep.subr.bf16.mxu0 0
        %1665 = vmatpush1.bf16.xpose.msra.mxu0 0
        %1666 = vmatprep.subr.bf16.mxu0 0
        %1667 = vmatpush1.bf16.xpose.msra.mxu0 0
        %1668 = vmatprep.subr.bf16.mxu0 0
        %1669 = vmatpush1.bf16.xpose.msra.mxu0 0
        %1670 = vmatprep.subr.bf16.mxu0 0
        %1671 = vmatpush1.bf16.xpose.msra.mxu0 0
        %1672 = vmatprep.subr.bf16.mxu0 0
        %1673 = vmatpush1.bf16.xpose.msra.mxu0 0
        %1674 = vmatprep.subr.bf16.mxu0 0
        %1675 = vmatpush1.bf16.xpose.msra.mxu0 0
        %1676 = vmatprep.subr.bf16.mxu0 0
        %1677 = vmatpush1.bf16.xpose.msra.mxu0 0
        %1678 = vmatprep.subr.bf16.mxu0 0
        %1679 = vmatpush1.bf16.xpose.msra.mxu0 0
        %1680 = vmatprep.subr.bf16.mxu0 0
        %1681 = vmatpush1.bf16.xpose.msra.mxu0 0
        %1682 = vmatprep.subr.bf16.mxu0 0
        %1683 = vmatpush1.bf16.xpose.msra.mxu0 0
        %1684 = vmatprep.subr.bf16.mxu0 0
        %1685 = vmatpush1.bf16.xpose.msra.mxu0 0
        %1686 = vmatprep.subr.bf16.mxu0 0
        %1687 = vmatpush1.bf16.xpose.msra.mxu0 0
        %1688 = vmatprep.mubr.bf16.mxu0 0
        %1689 = vmatmul.mubr.bf16.gmra.mrb[0].mxu0 %v1633
        %v1690 = vpop.f32.mrb[0].mxu0
        %v1691 = vadd.f32 0.0, %v1690
        %v1692 = vpop.f32.mrb[0].mxu0
        %v1693 = vpop.f32.mrb[0].mxu0
        %v1694 = vadd.f32 0.0, %v1693
        %v1695 = vpop.f32.mrb[0].mxu0
        %1696 = vmatprep.mubr.bf16.mxu0 0
        %1697 = vmatmul.mubr.bf16.gmra.mrb[0].mxu0 %v1636
        %v1698 = vpop.f32.mrb[0].mxu0
        %v1699 = vadd.f32 0.0, %v1698
        %v1700 = vpop.f32.mrb[0].mxu0
        %v1701 = vpop.f32.mrb[0].mxu0
        %v1702 = vadd.f32 0.0, %v1701
        %v1703 = vpop.f32.mrb[0].mxu0
        %1704 = vmatprep.mubr.bf16.mxu0 0
        %1705 = vmatmul.mubr.bf16.gmra.mrb[0].mxu0 %v1639
        %v1706 = vpop.f32.mrb[0].mxu0
        %v1707 = vadd.f32 0.0, %v1706
        %v1708 = vpop.f32.mrb[0].mxu0
        %v1709 = vpop.f32.mrb[0].mxu0
        %v1710 = vadd.f32 0.0, %v1709
        %v1711 = vpop.f32.mrb[0].mxu0
        %1712 = vmatprep.mubr.bf16.mxu0 0
        %1713 = vmatmul.mubr.bf16.gmra.mrb[0].mxu0 %v1642
        %v1714 = vpop.f32.mrb[0].mxu0
        %v1715 = vadd.f32 0.0, %v1714
        %v1716 = vpop.f32.mrb[0].mxu0
        %v1717 = vpop.f32.mrb[0].mxu0
        %v1718 = vadd.f32 0.0, %v1717
        %v1719 = vpop.f32.mrb[0].mxu0
        %1720 = vdwg.mxu0
        %v1721 = vsel %vm393, %v1691, -inf
        %1722 = vmax.xlane.f32.xlu0 %v1721
        %v1723 = vpop.xlane.xlu0 %1722
        %v1724 = vsel %vm393, %v1694, -inf
        %1725 = vmax.xlane.f32.xlu0 %v1724
        %v1726 = vpop.xlane.xlu0 %1725
        %v1727 = vsel %vm393, %v1699, -inf
        %1728 = vmax.xlane.f32.xlu0 %v1727
        %v1729 = vpop.xlane.xlu0 %1728
        %v1730 = vsel %vm393, %v1702, -inf
        %1731 = vmax.xlane.f32.xlu0 %v1730
        %v1732 = vpop.xlane.xlu0 %1731
        %v1733 = vsel %vm393, %v1707, -inf
        %1734 = vmax.xlane.f32.xlu0 %v1733
        %v1735 = vpop.xlane.xlu0 %1734
        %v1736 = vsel %vm393, %v1710, -inf
        %1737 = vmax.xlane.f32.xlu0 %v1736
        %v1738 = vpop.xlane.xlu0 %1737
        %v1739 = vsel %vm393, %v1715, -inf
        %1740 = vmax.xlane.f32.xlu0 %v1739
        %v1741 = vpop.xlane.xlu0 %1740
        %v1742 = vsel %vm393, %v1718, -inf
        %1743 = vmax.xlane.f32.xlu0 %v1742
        %v1744 = vpop.xlane.xlu0 %1743
        %v1745 = vsub.f32 %v1691, %v1723
        %v1746 = vsub.f32 %v1694, %v1726
        %v1747 = vsub.f32 %v1699, %v1729
        %v1748 = vsub.f32 %v1702, %v1732
        %v1749 = vsub.f32 %v1707, %v1735
        %v1750 = vsub.f32 %v1710, %v1738
        %v1751 = vsub.f32 %v1715, %v1741
        %v1752 = vsub.f32 %v1718, %v1744
        %v1753 = vmul.f32 %v1745, 1.442695
        %v1754 = vpow.pop %v1753
        %v1755 = vmul.f32 %v1746, 1.442695
        %v1756 = vpow.pop %v1755
        %v1757 = vmul.f32 %v1747, 1.442695
        %v1758 = vpow.pop %v1757
        %v1759 = vmul.f32 %v1748, 1.442695
        %v1760 = vpow.pop %v1759
        %v1761 = vmul.f32 %v1749, 1.442695
        %v1762 = vpow.pop %v1761
        %v1763 = vmul.f32 %v1750, 1.442695
        %v1764 = vpow.pop %v1763
        %v1765 = vmul.f32 %v1751, 1.442695
        %v1766 = vpow.pop %v1765
        %v1767 = vmul.f32 %v1752, 1.442695
        %v1768 = vpow.pop %v1767
        %v1769 = vsel %vm393, %v1754, 0.0
        %1770 = vadd.xlane.f32.xlu0 %v1769
        %v1771 = vpop.xlane.xlu0 %1770
        %v1772 = vsel %vm393, %v1756, 0.0
        %1773 = vadd.xlane.f32.xlu0 %v1772
        %v1774 = vpop.xlane.xlu0 %1773
        %v1775 = vsel %vm393, %v1758, 0.0
        %1776 = vadd.xlane.f32.xlu0 %v1775
        %v1777 = vpop.xlane.xlu0 %1776
        %v1778 = vsel %vm393, %v1760, 0.0
        %1779 = vadd.xlane.f32.xlu0 %v1778
        %v1780 = vpop.xlane.xlu0 %1779
        %v1781 = vsel %vm393, %v1762, 0.0
        %1782 = vadd.xlane.f32.xlu0 %v1781
        %v1783 = vpop.xlane.xlu0 %1782
        %v1784 = vsel %vm393, %v1764, 0.0
        %1785 = vadd.xlane.f32.xlu0 %v1784
        %v1786 = vpop.xlane.xlu0 %1785
        %v1787 = vsel %vm393, %v1766, 0.0
        %1788 = vadd.xlane.f32.xlu0 %v1787
        %v1789 = vpop.xlane.xlu0 %1788
        %v1790 = vsel %vm393, %v1768, 0.0
        %1791 = vadd.xlane.f32.xlu0 %v1790
        %v1792 = vpop.xlane.xlu0 %1791
        %v1793 = vrcp.pop %v1771
        %v1794 = vrcp.pop %v1774
        %v1795 = vrcp.pop %v1777
        %v1796 = vrcp.pop %v1780
        %v1797 = vrcp.pop %v1783
        %v1798 = vrcp.pop %v1786
        %v1799 = vrcp.pop %v1789
        %v1800 = vrcp.pop %v1792
        %v1801 = vmul.f32 %v1754, %v1793
        %v1802 = vmul.f32 %v1756, %v1794
        %v1803 = vmul.f32 %v1758, %v1795
        %v1804 = vmul.f32 %v1760, %v1796
        %v1805 = vmul.f32 %v1762, %v1797
        %v1806 = vmul.f32 %v1764, %v1798
        %v1807 = vmul.f32 %v1766, %v1799
        %v1808 = vmul.f32 %v1768, %v1800
        %v1809 = vpack.c.bf16 %v1802, %v1801
        %v1810 = vpack.c.bf16 %v1804, %v1803
        %v1811 = vpack.c.bf16 %v1806, %v1805
        %v1812 = vpack.c.bf16 %v1808, %v1807
        %1813 = vrot.lane.b32.xlu0 %v471, 32
        %v1814 = vpop.permute.xlu0 %1813
        %1815 = vrot.lane.b32.xlu0 %v472, 32
        %v1816 = vpop.permute.xlu0 %1815
        %1817 = vrot.lane.b32.xlu0 %v473, 32
        %v1818 = vpop.permute.xlu0 %1817
        %1819 = vrot.lane.b32.xlu0 %v474, 32
        %v1820 = vpop.permute.xlu0 %1819
        %v1826 = vsel %vm393, %v1809, 0
        %v1829 = vsel %vm393, %v1810, 0
        %v1832 = vsel %vm393, %v1811, 0
        %v1835 = vsel %vm393, %v1812, 0
        %1837 = vmatprep.subr.bf16.mxu0 0
        %1838 = vmatpush1.bf16.msra.mxu0 %v1814
        %1839 = vmatprep.subr.bf16.mxu0 0
        %1840 = vmatpush1.bf16.msra.mxu0 %v1816
        %1841 = vmatprep.subr.bf16.mxu0 0
        %1842 = vmatpush1.bf16.msra.mxu0 %v1818
        %1843 = vmatprep.subr.bf16.mxu0 0
        %1844 = vmatpush1.bf16.msra.mxu0 %v1820
        %1845 = vmatprep.subr.bf16.mxu0 0
        %1846 = vmatpush1.bf16.msra.mxu0 0
        %1847 = vmatprep.subr.bf16.mxu0 0
        %1848 = vmatpush1.bf16.msra.mxu0 0
        %1849 = vmatprep.subr.bf16.mxu0 0
        %1850 = vmatpush1.bf16.msra.mxu0 0
        %1851 = vmatprep.subr.bf16.mxu0 0
        %1852 = vmatpush1.bf16.msra.mxu0 0
        %1853 = vmatprep.subr.bf16.mxu0 0
        %1854 = vmatpush1.bf16.msra.mxu0 0
        %1855 = vmatprep.subr.bf16.mxu0 0
        %1856 = vmatpush1.bf16.msra.mxu0 0
        %1857 = vmatprep.subr.bf16.mxu0 0
        %1858 = vmatpush1.bf16.msra.mxu0 0
        %1859 = vmatprep.subr.bf16.mxu0 0
        %1860 = vmatpush1.bf16.msra.mxu0 0
        %1861 = vmatprep.subr.bf16.mxu0 0
        %1862 = vmatpush1.bf16.msra.mxu0 0
        %1863 = vmatprep.subr.bf16.mxu0 0
        %1864 = vmatpush1.bf16.msra.mxu0 0
        %1865 = vmatprep.subr.bf16.mxu0 0
        %1866 = vmatpush1.bf16.msra.mxu0 0
        %1867 = vmatprep.subr.bf16.mxu0 0
        %1868 = vmatpush1.bf16.msra.mxu0 0
        %1869 = vmatprep.mubr.bf16.mxu0 0
        %1870 = vmatmul.mubr.bf16.gmra.mrb[0].mxu0 %v1826
        %v1871 = vpop.f32.mrb[0].mxu0
        %v1872 = vadd.f32 0.0, %v1871
        %v1873 = vpop.f32.mrb[0].mxu0
        %v1874 = vpop.f32.mrb[0].mxu0
        %v1875 = vadd.f32 0.0, %v1874
        %v1876 = vpop.f32.mrb[0].mxu0
        %1877 = vmatprep.mubr.bf16.mxu0 0
        %1878 = vmatmul.mubr.bf16.gmra.mrb[0].mxu0 %v1829
        %v1879 = vpop.f32.mrb[0].mxu0
        %v1880 = vadd.f32 0.0, %v1879
        %v1881 = vpop.f32.mrb[0].mxu0
        %v1882 = vpop.f32.mrb[0].mxu0
        %v1883 = vadd.f32 0.0, %v1882
        %v1884 = vpop.f32.mrb[0].mxu0
        %1885 = vmatprep.mubr.bf16.mxu0 0
        %1886 = vmatmul.mubr.bf16.gmra.mrb[0].mxu0 %v1832
        %v1887 = vpop.f32.mrb[0].mxu0
        %v1888 = vadd.f32 0.0, %v1887
        %v1889 = vpop.f32.mrb[0].mxu0
        %v1890 = vpop.f32.mrb[0].mxu0
        %v1891 = vadd.f32 0.0, %v1890
        %v1892 = vpop.f32.mrb[0].mxu0
        %1893 = vmatprep.mubr.bf16.mxu0 0
        %1894 = vmatmul.mubr.bf16.gmra.mrb[0].mxu0 %v1835
        %v1895 = vpop.f32.mrb[0].mxu0
        %v1896 = vadd.f32 0.0, %v1895
        %v1897 = vpop.f32.mrb[0].mxu0
        %v1898 = vpop.f32.mrb[0].mxu0
        %v1899 = vadd.f32 0.0, %v1898
        %v1900 = vpop.f32.mrb[0].mxu0
        %1901 = vdwg.mxu0
        %1902 = vrot.lane.b32.xlu0 %v471, 108
        %v1903 = vpop.permute.xlu0 %1902
        %1904 = vrot.lane.b32.xlu0 %v472, 108
        %v1905 = vpop.permute.xlu0 %1904
        %1906 = vrot.lane.b32.xlu0 %v473, 108
        %v1907 = vpop.permute.xlu0 %1906
        %1908 = vrot.lane.b32.xlu0 %v474, 108
        %v1909 = vpop.permute.xlu0 %1908
        %1910 = vrot.lane.b32.xlu0 %v471, 76
        %v1911 = vpop.permute.xlu0 %1910
        %1912 = vrot.lane.b32.xlu0 %v472, 76
        %v1913 = vpop.permute.xlu0 %1912
        %1914 = vrot.lane.b32.xlu0 %v473, 76
        %v1915 = vpop.permute.xlu0 %1914
        %1916 = vrot.lane.b32.xlu0 %v474, 76
        %v1917 = vpop.permute.xlu0 %1916
        %v1919 = vsel %vm487, %v1903, 0
        %v1922 = vsel %vm487, %v1905, 0
        %v1925 = vsel %vm487, %v1907, 0
        %v1928 = vsel %vm487, %v1909, 0
        %v1931 = vsel %vm487, %v1911, 0
        %v1934 = vsel %vm487, %v1913, 0
        %v1937 = vsel %vm487, %v1915, 0
        %v1940 = vsel %vm487, %v1917, 0
        %1942 = vmatprep.subr.bf16.mxu0 0
        %1943 = vmatpush1.bf16.xpose.msra.mxu0 %v1931
        %1944 = vmatprep.subr.bf16.mxu0 0
        %1945 = vmatpush1.bf16.xpose.msra.mxu0 %v1934
        %1946 = vmatprep.subr.bf16.mxu0 0
        %1947 = vmatpush1.bf16.xpose.msra.mxu0 %v1937
        %1948 = vmatprep.subr.bf16.mxu0 0
        %1949 = vmatpush1.bf16.xpose.msra.mxu0 %v1940
        %1950 = vmatprep.subr.bf16.mxu0 0
        %1951 = vmatpush1.bf16.xpose.msra.mxu0 0
        %1952 = vmatprep.subr.bf16.mxu0 0
        %1953 = vmatpush1.bf16.xpose.msra.mxu0 0
        %1954 = vmatprep.subr.bf16.mxu0 0
        %1955 = vmatpush1.bf16.xpose.msra.mxu0 0
        %1956 = vmatprep.subr.bf16.mxu0 0
        %1957 = vmatpush1.bf16.xpose.msra.mxu0 0
        %1958 = vmatprep.subr.bf16.mxu0 0
        %1959 = vmatpush1.bf16.xpose.msra.mxu0 0
        %1960 = vmatprep.subr.bf16.mxu0 0
        %1961 = vmatpush1.bf16.xpose.msra.mxu0 0
        %1962 = vmatprep.subr.bf16.mxu0 0
        %1963 = vmatpush1.bf16.xpose.msra.mxu0 0
        %1964 = vmatprep.subr.bf16.mxu0 0
        %1965 = vmatpush1.bf16.xpose.msra.mxu0 0
        %1966 = vmatprep.subr.bf16.mxu0 0
        %1967 = vmatpush1.bf16.xpose.msra.mxu0 0
        %1968 = vmatprep.subr.bf16.mxu0 0
        %1969 = vmatpush1.bf16.xpose.msra.mxu0 0
        %1970 = vmatprep.subr.bf16.mxu0 0
        %1971 = vmatpush1.bf16.xpose.msra.mxu0 0
        %1972 = vmatprep.subr.bf16.mxu0 0
        %1973 = vmatpush1.bf16.xpose.msra.mxu0 0
        %1974 = vmatprep.mubr.bf16.mxu0 0
        %1975 = vmatmul.mubr.bf16.gmra.mrb[0].mxu0 %v1919
        %v1976 = vpop.f32.mrb[0].mxu0
        %v1977 = vadd.f32 0.0, %v1976
        %v1978 = vpop.f32.mrb[0].mxu0
        %v1979 = vpop.f32.mrb[0].mxu0
        %v1980 = vadd.f32 0.0, %v1979
        %v1981 = vpop.f32.mrb[0].mxu0
        %1982 = vmatprep.mubr.bf16.mxu0 0
        %1983 = vmatmul.mubr.bf16.gmra.mrb[0].mxu0 %v1922
        %v1984 = vpop.f32.mrb[0].mxu0
        %v1985 = vadd.f32 0.0, %v1984
        %v1986 = vpop.f32.mrb[0].mxu0
        %v1987 = vpop.f32.mrb[0].mxu0
        %v1988 = vadd.f32 0.0, %v1987
        %v1989 = vpop.f32.mrb[0].mxu0
        %1990 = vmatprep.mubr.bf16.mxu0 0
        %1991 = vmatmul.mubr.bf16.gmra.mrb[0].mxu0 %v1925
        %v1992 = vpop.f32.mrb[0].mxu0
        %v1993 = vadd.f32 0.0, %v1992
        %v1994 = vpop.f32.mrb[0].mxu0
        %v1995 = vpop.f32.mrb[0].mxu0
        %v1996 = vadd.f32 0.0, %v1995
        %v1997 = vpop.f32.mrb[0].mxu0
        %1998 = vmatprep.mubr.bf16.mxu0 0
        %1999 = vmatmul.mubr.bf16.gmra.mrb[0].mxu0 %v1928
        %v2000 = vpop.f32.mrb[0].mxu0
        %v2001 = vadd.f32 0.0, %v2000
        %v2002 = vpop.f32.mrb[0].mxu0
        %v2003 = vpop.f32.mrb[0].mxu0
        %v2004 = vadd.f32 0.0, %v2003
        %v2005 = vpop.f32.mrb[0].mxu0
        %2006 = vdwg.mxu0
        %v2007 = vsel %vm393, %v1977, -inf
        %2008 = vmax.xlane.f32.xlu0 %v2007
        %v2009 = vpop.xlane.xlu0 %2008
        %v2010 = vsel %vm393, %v1980, -inf
        %2011 = vmax.xlane.f32.xlu0 %v2010
        %v2012 = vpop.xlane.xlu0 %2011
        %v2013 = vsel %vm393, %v1985, -inf
        %2014 = vmax.xlane.f32.xlu0 %v2013
        %v2015 = vpop.xlane.xlu0 %2014
        %v2016 = vsel %vm393, %v1988, -inf
        %2017 = vmax.xlane.f32.xlu0 %v2016
        %v2018 = vpop.xlane.xlu0 %2017
        %v2019 = vsel %vm393, %v1993, -inf
        %2020 = vmax.xlane.f32.xlu0 %v2019
        %v2021 = vpop.xlane.xlu0 %2020
        %v2022 = vsel %vm393, %v1996, -inf
        %2023 = vmax.xlane.f32.xlu0 %v2022
        %v2024 = vpop.xlane.xlu0 %2023
        %v2025 = vsel %vm393, %v2001, -inf
        %2026 = vmax.xlane.f32.xlu0 %v2025
        %v2027 = vpop.xlane.xlu0 %2026
        %v2028 = vsel %vm393, %v2004, -inf
        %2029 = vmax.xlane.f32.xlu0 %v2028
        %v2030 = vpop.xlane.xlu0 %2029
        %v2031 = vsub.f32 %v1977, %v2009
        %v2032 = vsub.f32 %v1980, %v2012
        %v2033 = vsub.f32 %v1985, %v2015
        %v2034 = vsub.f32 %v1988, %v2018
        %v2035 = vsub.f32 %v1993, %v2021
        %v2036 = vsub.f32 %v1996, %v2024
        %v2037 = vsub.f32 %v2001, %v2027
        %v2038 = vsub.f32 %v2004, %v2030
        %v2039 = vmul.f32 %v2031, 1.442695
        %v2040 = vpow.pop %v2039
        %v2041 = vmul.f32 %v2032, 1.442695
        %v2042 = vpow.pop %v2041
        %v2043 = vmul.f32 %v2033, 1.442695
        %v2044 = vpow.pop %v2043
        %v2045 = vmul.f32 %v2034, 1.442695
        %v2046 = vpow.pop %v2045
        %v2047 = vmul.f32 %v2035, 1.442695
        %v2048 = vpow.pop %v2047
        %v2049 = vmul.f32 %v2036, 1.442695
        %v2050 = vpow.pop %v2049
        %v2051 = vmul.f32 %v2037, 1.442695
        %v2052 = vpow.pop %v2051
        %v2053 = vmul.f32 %v2038, 1.442695
        %v2054 = vpow.pop %v2053
        %v2055 = vsel %vm393, %v2040, 0.0
        %2056 = vadd.xlane.f32.xlu0 %v2055
        %v2057 = vpop.xlane.xlu0 %2056
        %v2058 = vsel %vm393, %v2042, 0.0
        %2059 = vadd.xlane.f32.xlu0 %v2058
        %v2060 = vpop.xlane.xlu0 %2059
        %v2061 = vsel %vm393, %v2044, 0.0
        %2062 = vadd.xlane.f32.xlu0 %v2061
        %v2063 = vpop.xlane.xlu0 %2062
        %v2064 = vsel %vm393, %v2046, 0.0
        %2065 = vadd.xlane.f32.xlu0 %v2064
        %v2066 = vpop.xlane.xlu0 %2065
        %v2067 = vsel %vm393, %v2048, 0.0
        %2068 = vadd.xlane.f32.xlu0 %v2067
        %v2069 = vpop.xlane.xlu0 %2068
        %v2070 = vsel %vm393, %v2050, 0.0
        %2071 = vadd.xlane.f32.xlu0 %v2070
        %v2072 = vpop.xlane.xlu0 %2071
        %v2073 = vsel %vm393, %v2052, 0.0
        %2074 = vadd.xlane.f32.xlu0 %v2073
        %v2075 = vpop.xlane.xlu0 %2074
        %v2076 = vsel %vm393, %v2054, 0.0
        %2077 = vadd.xlane.f32.xlu0 %v2076
        %v2078 = vpop.xlane.xlu0 %2077
        %v2079 = vrcp.pop %v2057
        %v2080 = vrcp.pop %v2060
        %v2081 = vrcp.pop %v2063
        %v2082 = vrcp.pop %v2066
        %v2083 = vrcp.pop %v2069
        %v2084 = vrcp.pop %v2072
        %v2085 = vrcp.pop %v2075
        %v2086 = vrcp.pop %v2078
        %v2087 = vmul.f32 %v2040, %v2079
        %v2088 = vmul.f32 %v2042, %v2080
        %v2089 = vmul.f32 %v2044, %v2081
        %v2090 = vmul.f32 %v2046, %v2082
        %v2091 = vmul.f32 %v2048, %v2083
        %v2092 = vmul.f32 %v2050, %v2084
        %v2093 = vmul.f32 %v2052, %v2085
        %v2094 = vmul.f32 %v2054, %v2086
        %v2095 = vpack.c.bf16 %v2088, %v2087
        %v2096 = vpack.c.bf16 %v2090, %v2089
        %v2097 = vpack.c.bf16 %v2092, %v2091
        %v2098 = vpack.c.bf16 %v2094, %v2093
        %2099 = vrot.lane.b32.xlu0 %v471, 24
        %v2100 = vpop.permute.xlu0 %2099
        %2101 = vrot.lane.b32.xlu0 %v472, 24
        %v2102 = vpop.permute.xlu0 %2101
        %2103 = vrot.lane.b32.xlu0 %v473, 24
        %v2104 = vpop.permute.xlu0 %2103
        %2105 = vrot.lane.b32.xlu0 %v474, 24
        %v2106 = vpop.permute.xlu0 %2105
        %v2112 = vsel %vm393, %v2095, 0
        %v2115 = vsel %vm393, %v2096, 0
        %v2118 = vsel %vm393, %v2097, 0
        %v2121 = vsel %vm393, %v2098, 0
        %2123 = vmatprep.subr.bf16.mxu0 0
        %2124 = vmatpush1.bf16.msra.mxu0 %v2100
        %2125 = vmatprep.subr.bf16.mxu0 0
        %2126 = vmatpush1.bf16.msra.mxu0 %v2102
        %2127 = vmatprep.subr.bf16.mxu0 0
        %2128 = vmatpush1.bf16.msra.mxu0 %v2104
        %2129 = vmatprep.subr.bf16.mxu0 0
        %2130 = vmatpush1.bf16.msra.mxu0 %v2106
        %2131 = vmatprep.subr.bf16.mxu0 0
        %2132 = vmatpush1.bf16.msra.mxu0 0
        %2133 = vmatprep.subr.bf16.mxu0 0
        %2134 = vmatpush1.bf16.msra.mxu0 0
        %2135 = vmatprep.subr.bf16.mxu0 0
        %2136 = vmatpush1.bf16.msra.mxu0 0
        %2137 = vmatprep.subr.bf16.mxu0 0
        %2138 = vmatpush1.bf16.msra.mxu0 0
        %2139 = vmatprep.subr.bf16.mxu0 0
        %2140 = vmatpush1.bf16.msra.mxu0 0
        %2141 = vmatprep.subr.bf16.mxu0 0
        %2142 = vmatpush1.bf16.msra.mxu0 0
        %2143 = vmatprep.subr.bf16.mxu0 0
        %2144 = vmatpush1.bf16.msra.mxu0 0
        %2145 = vmatprep.subr.bf16.mxu0 0
        %2146 = vmatpush1.bf16.msra.mxu0 0
        %2147 = vmatprep.subr.bf16.mxu0 0
        %2148 = vmatpush1.bf16.msra.mxu0 0
        %2149 = vmatprep.subr.bf16.mxu0 0
        %2150 = vmatpush1.bf16.msra.mxu0 0
        %2151 = vmatprep.subr.bf16.mxu0 0
        %2152 = vmatpush1.bf16.msra.mxu0 0
        %2153 = vmatprep.subr.bf16.mxu0 0
        %2154 = vmatpush1.bf16.msra.mxu0 0
        %2155 = vmatprep.mubr.bf16.mxu0 0
        %2156 = vmatmul.mubr.bf16.gmra.mrb[0].mxu0 %v2112
        %v2157 = vpop.f32.mrb[0].mxu0
        %v2158 = vadd.f32 0.0, %v2157
        %v2159 = vpop.f32.mrb[0].mxu0
        %v2160 = vpop.f32.mrb[0].mxu0
        %v2161 = vadd.f32 0.0, %v2160
        %v2162 = vpop.f32.mrb[0].mxu0
        %2163 = vmatprep.mubr.bf16.mxu0 0
        %2164 = vmatmul.mubr.bf16.gmra.mrb[0].mxu0 %v2115
        %v2165 = vpop.f32.mrb[0].mxu0
        %v2166 = vadd.f32 0.0, %v2165
        %v2167 = vpop.f32.mrb[0].mxu0
        %v2168 = vpop.f32.mrb[0].mxu0
        %v2169 = vadd.f32 0.0, %v2168
        %v2170 = vpop.f32.mrb[0].mxu0
        %2171 = vmatprep.mubr.bf16.mxu0 0
        %2172 = vmatmul.mubr.bf16.gmra.mrb[0].mxu0 %v2118
        %v2173 = vpop.f32.mrb[0].mxu0
        %v2174 = vadd.f32 0.0, %v2173
        %v2175 = vpop.f32.mrb[0].mxu0
        %v2176 = vpop.f32.mrb[0].mxu0
        %v2177 = vadd.f32 0.0, %v2176
        %v2178 = vpop.f32.mrb[0].mxu0
        %2179 = vmatprep.mubr.bf16.mxu0 0
        %2180 = vmatmul.mubr.bf16.gmra.mrb[0].mxu0 %v2121
        %v2181 = vpop.f32.mrb[0].mxu0
        %v2182 = vadd.f32 0.0, %v2181
        %v2183 = vpop.f32.mrb[0].mxu0
        %v2184 = vpop.f32.mrb[0].mxu0
        %v2185 = vadd.f32 0.0, %v2184
        %v2186 = vpop.f32.mrb[0].mxu0
        %2187 = vdwg.mxu0
        %2188 = vrot.lane.b32.xlu0 %v471, 104
        %v2189 = vpop.permute.xlu0 %2188
        %2190 = vrot.lane.b32.xlu0 %v472, 104
        %v2191 = vpop.permute.xlu0 %2190
        %2192 = vrot.lane.b32.xlu0 %v473, 104
        %v2193 = vpop.permute.xlu0 %2192
        %2194 = vrot.lane.b32.xlu0 %v474, 104
        %v2195 = vpop.permute.xlu0 %2194
        %2196 = vrot.lane.b32.xlu0 %v471, 72
        %v2197 = vpop.permute.xlu0 %2196
        %2198 = vrot.lane.b32.xlu0 %v472, 72
        %v2199 = vpop.permute.xlu0 %2198
        %2200 = vrot.lane.b32.xlu0 %v473, 72
        %v2201 = vpop.permute.xlu0 %2200
        %2202 = vrot.lane.b32.xlu0 %v474, 72
        %v2203 = vpop.permute.xlu0 %2202
        %v2205 = vsel %vm487, %v2189, 0
        %v2208 = vsel %vm487, %v2191, 0
        %v2211 = vsel %vm487, %v2193, 0
        %v2214 = vsel %vm487, %v2195, 0
        %v2217 = vsel %vm487, %v2197, 0
        %v2220 = vsel %vm487, %v2199, 0
        %v2223 = vsel %vm487, %v2201, 0
        %v2226 = vsel %vm487, %v2203, 0
        %2228 = vmatprep.subr.bf16.mxu0 0
        %2229 = vmatpush1.bf16.xpose.msra.mxu0 %v2217
        %2230 = vmatprep.subr.bf16.mxu0 0
        %2231 = vmatpush1.bf16.xpose.msra.mxu0 %v2220
        %2232 = vmatprep.subr.bf16.mxu0 0
        %2233 = vmatpush1.bf16.xpose.msra.mxu0 %v2223
        %2234 = vmatprep.subr.bf16.mxu0 0
        %2235 = vmatpush1.bf16.xpose.msra.mxu0 %v2226
        %2236 = vmatprep.subr.bf16.mxu0 0
        %2237 = vmatpush1.bf16.xpose.msra.mxu0 0
        %2238 = vmatprep.subr.bf16.mxu0 0
        %2239 = vmatpush1.bf16.xpose.msra.mxu0 0
        %2240 = vmatprep.subr.bf16.mxu0 0
        %2241 = vmatpush1.bf16.xpose.msra.mxu0 0
        %2242 = vmatprep.subr.bf16.mxu0 0
        %2243 = vmatpush1.bf16.xpose.msra.mxu0 0
        %2244 = vmatprep.subr.bf16.mxu0 0
        %2245 = vmatpush1.bf16.xpose.msra.mxu0 0
        %2246 = vmatprep.subr.bf16.mxu0 0
        %2247 = vmatpush1.bf16.xpose.msra.mxu0 0
        %2248 = vmatprep.subr.bf16.mxu0 0
        %2249 = vmatpush1.bf16.xpose.msra.mxu0 0
        %2250 = vmatprep.subr.bf16.mxu0 0
        %2251 = vmatpush1.bf16.xpose.msra.mxu0 0
        %2252 = vmatprep.subr.bf16.mxu0 0
        %2253 = vmatpush1.bf16.xpose.msra.mxu0 0
        %2254 = vmatprep.subr.bf16.mxu0 0
        %2255 = vmatpush1.bf16.xpose.msra.mxu0 0
        %2256 = vmatprep.subr.bf16.mxu0 0
        %2257 = vmatpush1.bf16.xpose.msra.mxu0 0
        %2258 = vmatprep.subr.bf16.mxu0 0
        %2259 = vmatpush1.bf16.xpose.msra.mxu0 0
        %2260 = vmatprep.mubr.bf16.mxu0 0
        %2261 = vmatmul.mubr.bf16.gmra.mrb[0].mxu0 %v2205
        %v2262 = vpop.f32.mrb[0].mxu0
        %v2263 = vadd.f32 0.0, %v2262
        %v2264 = vpop.f32.mrb[0].mxu0
        %v2265 = vpop.f32.mrb[0].mxu0
        %v2266 = vadd.f32 0.0, %v2265
        %v2267 = vpop.f32.mrb[0].mxu0
        %2268 = vmatprep.mubr.bf16.mxu0 0
        %2269 = vmatmul.mubr.bf16.gmra.mrb[0].mxu0 %v2208
        %v2270 = vpop.f32.mrb[0].mxu0
        %v2271 = vadd.f32 0.0, %v2270
        %v2272 = vpop.f32.mrb[0].mxu0
        %v2273 = vpop.f32.mrb[0].mxu0
        %v2274 = vadd.f32 0.0, %v2273
        %v2275 = vpop.f32.mrb[0].mxu0
        %2276 = vmatprep.mubr.bf16.mxu0 0
        %2277 = vmatmul.mubr.bf16.gmra.mrb[0].mxu0 %v2211
        %v2278 = vpop.f32.mrb[0].mxu0
        %v2279 = vadd.f32 0.0, %v2278
        %v2280 = vpop.f32.mrb[0].mxu0
        %v2281 = vpop.f32.mrb[0].mxu0
        %v2282 = vadd.f32 0.0, %v2281
        %v2283 = vpop.f32.mrb[0].mxu0
        %2284 = vmatprep.mubr.bf16.mxu0 0
        %2285 = vmatmul.mubr.bf16.gmra.mrb[0].mxu0 %v2214
        %v2286 = vpop.f32.mrb[0].mxu0
        %v2287 = vadd.f32 0.0, %v2286
        %v2288 = vpop.f32.mrb[0].mxu0
        %v2289 = vpop.f32.mrb[0].mxu0
        %v2290 = vadd.f32 0.0, %v2289
        %v2291 = vpop.f32.mrb[0].mxu0
        %2292 = vdwg.mxu0
        %v2293 = vsel %vm393, %v2263, -inf
        %2294 = vmax.xlane.f32.xlu0 %v2293
        %v2295 = vpop.xlane.xlu0 %2294
        %v2296 = vsel %vm393, %v2266, -inf
        %2297 = vmax.xlane.f32.xlu0 %v2296
        %v2298 = vpop.xlane.xlu0 %2297
        %v2299 = vsel %vm393, %v2271, -inf
        %2300 = vmax.xlane.f32.xlu0 %v2299
        %v2301 = vpop.xlane.xlu0 %2300
        %v2302 = vsel %vm393, %v2274, -inf
        %2303 = vmax.xlane.f32.xlu0 %v2302
        %v2304 = vpop.xlane.xlu0 %2303
        %v2305 = vsel %vm393, %v2279, -inf
        %2306 = vmax.xlane.f32.xlu0 %v2305
        %v2307 = vpop.xlane.xlu0 %2306
        %v2308 = vsel %vm393, %v2282, -inf
        %2309 = vmax.xlane.f32.xlu0 %v2308
        %v2310 = vpop.xlane.xlu0 %2309
        %v2311 = vsel %vm393, %v2287, -inf
        %2312 = vmax.xlane.f32.xlu0 %v2311
        %v2313 = vpop.xlane.xlu0 %2312
        %v2314 = vsel %vm393, %v2290, -inf
        %2315 = vmax.xlane.f32.xlu0 %v2314
        %v2316 = vpop.xlane.xlu0 %2315
        %v2317 = vsub.f32 %v2263, %v2295
        %v2318 = vsub.f32 %v2266, %v2298
        %v2319 = vsub.f32 %v2271, %v2301
        %v2320 = vsub.f32 %v2274, %v2304
        %v2321 = vsub.f32 %v2279, %v2307
        %v2322 = vsub.f32 %v2282, %v2310
        %v2323 = vsub.f32 %v2287, %v2313
        %v2324 = vsub.f32 %v2290, %v2316
        %v2325 = vmul.f32 %v2317, 1.442695
        %v2326 = vpow.pop %v2325
        %v2327 = vmul.f32 %v2318, 1.442695
        %v2328 = vpow.pop %v2327
        %v2329 = vmul.f32 %v2319, 1.442695
        %v2330 = vpow.pop %v2329
        %v2331 = vmul.f32 %v2320, 1.442695
        %v2332 = vpow.pop %v2331
        %v2333 = vmul.f32 %v2321, 1.442695
        %v2334 = vpow.pop %v2333
        %v2335 = vmul.f32 %v2322, 1.442695
        %v2336 = vpow.pop %v2335
        %v2337 = vmul.f32 %v2323, 1.442695
        %v2338 = vpow.pop %v2337
        %v2339 = vmul.f32 %v2324, 1.442695
        %v2340 = vpow.pop %v2339
        %v2341 = vsel %vm393, %v2326, 0.0
        %2342 = vadd.xlane.f32.xlu0 %v2341
        %v2343 = vpop.xlane.xlu0 %2342
        %v2344 = vsel %vm393, %v2328, 0.0
        %2345 = vadd.xlane.f32.xlu0 %v2344
        %v2346 = vpop.xlane.xlu0 %2345
        %v2347 = vsel %vm393, %v2330, 0.0
        %2348 = vadd.xlane.f32.xlu0 %v2347
        %v2349 = vpop.xlane.xlu0 %2348
        %v2350 = vsel %vm393, %v2332, 0.0
        %2351 = vadd.xlane.f32.xlu0 %v2350
        %v2352 = vpop.xlane.xlu0 %2351
        %v2353 = vsel %vm393, %v2334, 0.0
        %2354 = vadd.xlane.f32.xlu0 %v2353
        %v2355 = vpop.xlane.xlu0 %2354
        %v2356 = vsel %vm393, %v2336, 0.0
        %2357 = vadd.xlane.f32.xlu0 %v2356
        %v2358 = vpop.xlane.xlu0 %2357
        %v2359 = vsel %vm393, %v2338, 0.0
        %2360 = vadd.xlane.f32.xlu0 %v2359
        %v2361 = vpop.xlane.xlu0 %2360
        %v2362 = vsel %vm393, %v2340, 0.0
        %2363 = vadd.xlane.f32.xlu0 %v2362
        %v2364 = vpop.xlane.xlu0 %2363
        %v2365 = vrcp.pop %v2343
        %v2366 = vrcp.pop %v2346
        %v2367 = vrcp.pop %v2349
        %v2368 = vrcp.pop %v2352
        %v2369 = vrcp.pop %v2355
        %v2370 = vrcp.pop %v2358
        %v2371 = vrcp.pop %v2361
        %v2372 = vrcp.pop %v2364
        %v2373 = vmul.f32 %v2326, %v2365
        %v2374 = vmul.f32 %v2328, %v2366
        %v2375 = vmul.f32 %v2330, %v2367
        %v2376 = vmul.f32 %v2332, %v2368
        %v2377 = vmul.f32 %v2334, %v2369
        %v2378 = vmul.f32 %v2336, %v2370
        %v2379 = vmul.f32 %v2338, %v2371
        %v2380 = vmul.f32 %v2340, %v2372
        %v2381 = vpack.c.bf16 %v2374, %v2373
        %v2382 = vpack.c.bf16 %v2376, %v2375
        %v2383 = vpack.c.bf16 %v2378, %v2377
        %v2384 = vpack.c.bf16 %v2380, %v2379
        %2385 = vrot.lane.b32.xlu0 %v471, 16
        %v2386 = vpop.permute.xlu0 %2385
        %2387 = vrot.lane.b32.xlu0 %v472, 16
        %v2388 = vpop.permute.xlu0 %2387
        %2389 = vrot.lane.b32.xlu0 %v473, 16
        %v2390 = vpop.permute.xlu0 %2389
        %2391 = vrot.lane.b32.xlu0 %v474, 16
        %v2392 = vpop.permute.xlu0 %2391
        %v2398 = vsel %vm393, %v2381, 0
        %v2401 = vsel %vm393, %v2382, 0
        %v2404 = vsel %vm393, %v2383, 0
        %v2407 = vsel %vm393, %v2384, 0
        %2409 = vmatprep.subr.bf16.mxu0 0
        %2410 = vmatpush1.bf16.msra.mxu0 %v2386
        %2411 = vmatprep.subr.bf16.mxu0 0
        %2412 = vmatpush1.bf16.msra.mxu0 %v2388
        %2413 = vmatprep.subr.bf16.mxu0 0
        %2414 = vmatpush1.bf16.msra.mxu0 %v2390
        %2415 = vmatprep.subr.bf16.mxu0 0
        %2416 = vmatpush1.bf16.msra.mxu0 %v2392
        %2417 = vmatprep.subr.bf16.mxu0 0
        %2418 = vmatpush1.bf16.msra.mxu0 0
        %2419 = vmatprep.subr.bf16.mxu0 0
        %2420 = vmatpush1.bf16.msra.mxu0 0
        %2421 = vmatprep.subr.bf16.mxu0 0
        %2422 = vmatpush1.bf16.msra.mxu0 0
        %2423 = vmatprep.subr.bf16.mxu0 0
        %2424 = vmatpush1.bf16.msra.mxu0 0
        %2425 = vmatprep.subr.bf16.mxu0 0
        %2426 = vmatpush1.bf16.msra.mxu0 0
        %2427 = vmatprep.subr.bf16.mxu0 0
        %2428 = vmatpush1.bf16.msra.mxu0 0
        %2429 = vmatprep.subr.bf16.mxu0 0
        %2430 = vmatpush1.bf16.msra.mxu0 0
        %2431 = vmatprep.subr.bf16.mxu0 0
        %2432 = vmatpush1.bf16.msra.mxu0 0
        %2433 = vmatprep.subr.bf16.mxu0 0
        %2434 = vmatpush1.bf16.msra.mxu0 0
        %2435 = vmatprep.subr.bf16.mxu0 0
        %2436 = vmatpush1.bf16.msra.mxu0 0
        %2437 = vmatprep.subr.bf16.mxu0 0
        %2438 = vmatpush1.bf16.msra.mxu0 0
        %2439 = vmatprep.subr.bf16.mxu0 0
        %2440 = vmatpush1.bf16.msra.mxu0 0
        %2441 = vmatprep.mubr.bf16.mxu0 0
        %2442 = vmatmul.mubr.bf16.gmra.mrb[0].mxu0 %v2398
        %v2443 = vpop.f32.mrb[0].mxu0
        %v2444 = vadd.f32 0.0, %v2443
        %v2445 = vpop.f32.mrb[0].mxu0
        %v2446 = vpop.f32.mrb[0].mxu0
        %v2447 = vadd.f32 0.0, %v2446
        %v2448 = vpop.f32.mrb[0].mxu0
        %2449 = vmatprep.mubr.bf16.mxu0 0
        %2450 = vmatmul.mubr.bf16.gmra.mrb[0].mxu0 %v2401
        %v2451 = vpop.f32.mrb[0].mxu0
        %v2452 = vadd.f32 0.0, %v2451
        %v2453 = vpop.f32.mrb[0].mxu0
        %v2454 = vpop.f32.mrb[0].mxu0
        %v2455 = vadd.f32 0.0, %v2454
        %v2456 = vpop.f32.mrb[0].mxu0
        %2457 = vmatprep.mubr.bf16.mxu0 0
        %2458 = vmatmul.mubr.bf16.gmra.mrb[0].mxu0 %v2404
        %v2459 = vpop.f32.mrb[0].mxu0
        %v2460 = vadd.f32 0.0, %v2459
        %v2461 = vpop.f32.mrb[0].mxu0
        %v2462 = vpop.f32.mrb[0].mxu0
        %v2463 = vadd.f32 0.0, %v2462
        %v2464 = vpop.f32.mrb[0].mxu0
        %2465 = vmatprep.mubr.bf16.mxu0 0
        %2466 = vmatmul.mubr.bf16.gmra.mrb[0].mxu0 %v2407
        %v2467 = vpop.f32.mrb[0].mxu0
        %v2468 = vadd.f32 0.0, %v2467
        %v2469 = vpop.f32.mrb[0].mxu0
        %v2470 = vpop.f32.mrb[0].mxu0
        %v2471 = vadd.f32 0.0, %v2470
        %v2472 = vpop.f32.mrb[0].mxu0
        %2473 = vdwg.mxu0
        %2474 = vrot.lane.b32.xlu0 %v471, 100
        %v2475 = vpop.permute.xlu0 %2474
        %2476 = vrot.lane.b32.xlu0 %v472, 100
        %v2477 = vpop.permute.xlu0 %2476
        %2478 = vrot.lane.b32.xlu0 %v473, 100
        %v2479 = vpop.permute.xlu0 %2478
        %2480 = vrot.lane.b32.xlu0 %v474, 100
        %v2481 = vpop.permute.xlu0 %2480
        %2482 = vrot.lane.b32.xlu0 %v471, 68
        %v2483 = vpop.permute.xlu0 %2482
        %2484 = vrot.lane.b32.xlu0 %v472, 68
        %v2485 = vpop.permute.xlu0 %2484
        %2486 = vrot.lane.b32.xlu0 %v473, 68
        %v2487 = vpop.permute.xlu0 %2486
        %2488 = vrot.lane.b32.xlu0 %v474, 68
        %v2489 = vpop.permute.xlu0 %2488
        %v2491 = vsel %vm487, %v2475, 0
        %v2494 = vsel %vm487, %v2477, 0
        %v2497 = vsel %vm487, %v2479, 0
        %v2500 = vsel %vm487, %v2481, 0
        %v2503 = vsel %vm487, %v2483, 0
        %v2506 = vsel %vm487, %v2485, 0
        %v2509 = vsel %vm487, %v2487, 0
        %v2512 = vsel %vm487, %v2489, 0
        %2514 = vmatprep.subr.bf16.mxu0 0
        %2515 = vmatpush1.bf16.xpose.msra.mxu0 %v2503
        %2516 = vmatprep.subr.bf16.mxu0 0
        %2517 = vmatpush1.bf16.xpose.msra.mxu0 %v2506
        %2518 = vmatprep.subr.bf16.mxu0 0
        %2519 = vmatpush1.bf16.xpose.msra.mxu0 %v2509
        %2520 = vmatprep.subr.bf16.mxu0 0
        %2521 = vmatpush1.bf16.xpose.msra.mxu0 %v2512
        %2522 = vmatprep.subr.bf16.mxu0 0
        %2523 = vmatpush1.bf16.xpose.msra.mxu0 0
        %2524 = vmatprep.subr.bf16.mxu0 0
        %2525 = vmatpush1.bf16.xpose.msra.mxu0 0
        %2526 = vmatprep.subr.bf16.mxu0 0
        %2527 = vmatpush1.bf16.xpose.msra.mxu0 0
        %2528 = vmatprep.subr.bf16.mxu0 0
        %2529 = vmatpush1.bf16.xpose.msra.mxu0 0
        %2530 = vmatprep.subr.bf16.mxu0 0
        %2531 = vmatpush1.bf16.xpose.msra.mxu0 0
        %2532 = vmatprep.subr.bf16.mxu0 0
        %2533 = vmatpush1.bf16.xpose.msra.mxu0 0
        %2534 = vmatprep.subr.bf16.mxu0 0
        %2535 = vmatpush1.bf16.xpose.msra.mxu0 0
        %2536 = vmatprep.subr.bf16.mxu0 0
        %2537 = vmatpush1.bf16.xpose.msra.mxu0 0
        %2538 = vmatprep.subr.bf16.mxu0 0
        %2539 = vmatpush1.bf16.xpose.msra.mxu0 0
        %2540 = vmatprep.subr.bf16.mxu0 0
        %2541 = vmatpush1.bf16.xpose.msra.mxu0 0
        %2542 = vmatprep.subr.bf16.mxu0 0
        %2543 = vmatpush1.bf16.xpose.msra.mxu0 0
        %2544 = vmatprep.subr.bf16.mxu0 0
        %2545 = vmatpush1.bf16.xpose.msra.mxu0 0
        %2546 = vmatprep.mubr.bf16.mxu0 0
        %2547 = vmatmul.mubr.bf16.gmra.mrb[0].mxu0 %v2491
        %v2548 = vpop.f32.mrb[0].mxu0
        %v2549 = vadd.f32 0.0, %v2548
        %v2550 = vpop.f32.mrb[0].mxu0
        %v2551 = vpop.f32.mrb[0].mxu0
        %v2552 = vadd.f32 0.0, %v2551
        %v2553 = vpop.f32.mrb[0].mxu0
        %2554 = vmatprep.mubr.bf16.mxu0 0
        %2555 = vmatmul.mubr.bf16.gmra.mrb[0].mxu0 %v2494
        %v2556 = vpop.f32.mrb[0].mxu0
        %v2557 = vadd.f32 0.0, %v2556
        %v2558 = vpop.f32.mrb[0].mxu0
        %v2559 = vpop.f32.mrb[0].mxu0
        %v2560 = vadd.f32 0.0, %v2559
        %v2561 = vpop.f32.mrb[0].mxu0
        %2562 = vmatprep.mubr.bf16.mxu0 0
        %2563 = vmatmul.mubr.bf16.gmra.mrb[0].mxu0 %v2497
        %v2564 = vpop.f32.mrb[0].mxu0
        %v2565 = vadd.f32 0.0, %v2564
        %v2566 = vpop.f32.mrb[0].mxu0
        %v2567 = vpop.f32.mrb[0].mxu0
        %v2568 = vadd.f32 0.0, %v2567
        %v2569 = vpop.f32.mrb[0].mxu0
        %2570 = vmatprep.mubr.bf16.mxu0 0
        %2571 = vmatmul.mubr.bf16.gmra.mrb[0].mxu0 %v2500
        %v2572 = vpop.f32.mrb[0].mxu0
        %v2573 = vadd.f32 0.0, %v2572
        %v2574 = vpop.f32.mrb[0].mxu0
        %v2575 = vpop.f32.mrb[0].mxu0
        %v2576 = vadd.f32 0.0, %v2575
        %v2577 = vpop.f32.mrb[0].mxu0
        %2578 = vdwg.mxu0
        %v2579 = vsel %vm393, %v2549, -inf
        %2580 = vmax.xlane.f32.xlu0 %v2579
        %v2581 = vpop.xlane.xlu0 %2580
        %v2582 = vsel %vm393, %v2552, -inf
        %2583 = vmax.xlane.f32.xlu0 %v2582
        %v2584 = vpop.xlane.xlu0 %2583
        %v2585 = vsel %vm393, %v2557, -inf
        %2586 = vmax.xlane.f32.xlu0 %v2585
        %v2587 = vpop.xlane.xlu0 %2586
        %v2588 = vsel %vm393, %v2560, -inf
        %2589 = vmax.xlane.f32.xlu0 %v2588
        %v2590 = vpop.xlane.xlu0 %2589
        %v2591 = vsel %vm393, %v2565, -inf
        %2592 = vmax.xlane.f32.xlu0 %v2591
        %v2593 = vpop.xlane.xlu0 %2592
        %v2594 = vsel %vm393, %v2568, -inf
        %2595 = vmax.xlane.f32.xlu0 %v2594
        %v2596 = vpop.xlane.xlu0 %2595
        %v2597 = vsel %vm393, %v2573, -inf
        %2598 = vmax.xlane.f32.xlu0 %v2597
        %v2599 = vpop.xlane.xlu0 %2598
        %v2600 = vsel %vm393, %v2576, -inf
        %2601 = vmax.xlane.f32.xlu0 %v2600
        %v2602 = vpop.xlane.xlu0 %2601
        %v2603 = vsub.f32 %v2549, %v2581
        %v2604 = vsub.f32 %v2552, %v2584
        %v2605 = vsub.f32 %v2557, %v2587
        %v2606 = vsub.f32 %v2560, %v2590
        %v2607 = vsub.f32 %v2565, %v2593
        %v2608 = vsub.f32 %v2568, %v2596
        %v2609 = vsub.f32 %v2573, %v2599
        %v2610 = vsub.f32 %v2576, %v2602
        %v2611 = vmul.f32 %v2603, 1.442695
        %v2612 = vpow.pop %v2611
        %v2613 = vmul.f32 %v2604, 1.442695
        %v2614 = vpow.pop %v2613
        %v2615 = vmul.f32 %v2605, 1.442695
        %v2616 = vpow.pop %v2615
        %v2617 = vmul.f32 %v2606, 1.442695
        %v2618 = vpow.pop %v2617
        %v2619 = vmul.f32 %v2607, 1.442695
        %v2620 = vpow.pop %v2619
        %v2621 = vmul.f32 %v2608, 1.442695
        %v2622 = vpow.pop %v2621
        %v2623 = vmul.f32 %v2609, 1.442695
        %v2624 = vpow.pop %v2623
        %v2625 = vmul.f32 %v2610, 1.442695
        %v2626 = vpow.pop %v2625
        %v2627 = vsel %vm393, %v2612, 0.0
        %2628 = vadd.xlane.f32.xlu0 %v2627
        %v2629 = vpop.xlane.xlu0 %2628
        %v2630 = vsel %vm393, %v2614, 0.0
        %2631 = vadd.xlane.f32.xlu0 %v2630
        %v2632 = vpop.xlane.xlu0 %2631
        %v2633 = vsel %vm393, %v2616, 0.0
        %2634 = vadd.xlane.f32.xlu0 %v2633
        %v2635 = vpop.xlane.xlu0 %2634
        %v2636 = vsel %vm393, %v2618, 0.0
        %2637 = vadd.xlane.f32.xlu0 %v2636
        %v2638 = vpop.xlane.xlu0 %2637
        %v2639 = vsel %vm393, %v2620, 0.0
        %2640 = vadd.xlane.f32.xlu0 %v2639
        %v2641 = vpop.xlane.xlu0 %2640
        %v2642 = vsel %vm393, %v2622, 0.0
        %2643 = vadd.xlane.f32.xlu0 %v2642
        %v2644 = vpop.xlane.xlu0 %2643
        %v2645 = vsel %vm393, %v2624, 0.0
        %2646 = vadd.xlane.f32.xlu0 %v2645
        %v2647 = vpop.xlane.xlu0 %2646
        %v2648 = vsel %vm393, %v2626, 0.0
        %2649 = vadd.xlane.f32.xlu0 %v2648
        %v2650 = vpop.xlane.xlu0 %2649
        %v2651 = vrcp.pop %v2629
        %v2652 = vrcp.pop %v2632
        %v2653 = vrcp.pop %v2635
        %v2654 = vrcp.pop %v2638
        %v2655 = vrcp.pop %v2641
        %v2656 = vrcp.pop %v2644
        %v2657 = vrcp.pop %v2647
        %v2658 = vrcp.pop %v2650
        %v2659 = vmul.f32 %v2612, %v2651
        %v2660 = vmul.f32 %v2614, %v2652
        %v2661 = vmul.f32 %v2616, %v2653
        %v2662 = vmul.f32 %v2618, %v2654
        %v2663 = vmul.f32 %v2620, %v2655
        %v2664 = vmul.f32 %v2622, %v2656
        %v2665 = vmul.f32 %v2624, %v2657
        %v2666 = vmul.f32 %v2626, %v2658
        %v2667 = vpack.c.bf16 %v2660, %v2659
        %v2668 = vpack.c.bf16 %v2662, %v2661
        %v2669 = vpack.c.bf16 %v2664, %v2663
        %v2670 = vpack.c.bf16 %v2666, %v2665
        %2671 = vrot.lane.b32.xlu0 %v471, 8
        %v2672 = vpop.permute.xlu0 %2671
        %2673 = vrot.lane.b32.xlu0 %v472, 8
        %v2674 = vpop.permute.xlu0 %2673
        %2675 = vrot.lane.b32.xlu0 %v473, 8
        %v2676 = vpop.permute.xlu0 %2675
        %2677 = vrot.lane.b32.xlu0 %v474, 8
        %v2678 = vpop.permute.xlu0 %2677
        %v2684 = vsel %vm393, %v2667, 0
        %v2687 = vsel %vm393, %v2668, 0
        %v2690 = vsel %vm393, %v2669, 0
        %v2693 = vsel %vm393, %v2670, 0
        %2695 = vmatprep.subr.bf16.mxu0 0
        %2696 = vmatpush1.bf16.msra.mxu0 %v2672
        %2697 = vmatprep.subr.bf16.mxu0 0
        %2698 = vmatpush1.bf16.msra.mxu0 %v2674
        %2699 = vmatprep.subr.bf16.mxu0 0
        %2700 = vmatpush1.bf16.msra.mxu0 %v2676
        %2701 = vmatprep.subr.bf16.mxu0 0
        %2702 = vmatpush1.bf16.msra.mxu0 %v2678
        %2703 = vmatprep.subr.bf16.mxu0 0
        %2704 = vmatpush1.bf16.msra.mxu0 0
        %2705 = vmatprep.subr.bf16.mxu0 0
        %2706 = vmatpush1.bf16.msra.mxu0 0
        %2707 = vmatprep.subr.bf16.mxu0 0
        %2708 = vmatpush1.bf16.msra.mxu0 0
        %2709 = vmatprep.subr.bf16.mxu0 0
        %2710 = vmatpush1.bf16.msra.mxu0 0
        %2711 = vmatprep.subr.bf16.mxu0 0
        %2712 = vmatpush1.bf16.msra.mxu0 0
        %2713 = vmatprep.subr.bf16.mxu0 0
        %2714 = vmatpush1.bf16.msra.mxu0 0
        %2715 = vmatprep.subr.bf16.mxu0 0
        %2716 = vmatpush1.bf16.msra.mxu0 0
        %2717 = vmatprep.subr.bf16.mxu0 0
        %2718 = vmatpush1.bf16.msra.mxu0 0
        %2719 = vmatprep.subr.bf16.mxu0 0
        %2720 = vmatpush1.bf16.msra.mxu0 0
        %2721 = vmatprep.subr.bf16.mxu0 0
        %2722 = vmatpush1.bf16.msra.mxu0 0
        %2723 = vmatprep.subr.bf16.mxu0 0
        %2724 = vmatpush1.bf16.msra.mxu0 0
        %2725 = vmatprep.subr.bf16.mxu0 0
        %2726 = vmatpush1.bf16.msra.mxu0 0
        %2727 = vmatprep.mubr.bf16.mxu0 0
        %2728 = vmatmul.mubr.bf16.gmra.mrb[0].mxu0 %v2684
        %v2729 = vpop.f32.mrb[0].mxu0
        %v2730 = vadd.f32 0.0, %v2729
        %v2731 = vpop.f32.mrb[0].mxu0
        %v2732 = vpop.f32.mrb[0].mxu0
        %v2733 = vadd.f32 0.0, %v2732
        %v2734 = vpop.f32.mrb[0].mxu0
        %2735 = vmatprep.mubr.bf16.mxu0 0
        %2736 = vmatmul.mubr.bf16.gmra.mrb[0].mxu0 %v2687
        %v2737 = vpop.f32.mrb[0].mxu0
        %v2738 = vadd.f32 0.0, %v2737
        %v2739 = vpop.f32.mrb[0].mxu0
        %v2740 = vpop.f32.mrb[0].mxu0
        %v2741 = vadd.f32 0.0, %v2740
        %v2742 = vpop.f32.mrb[0].mxu0
        %2743 = vmatprep.mubr.bf16.mxu0 0
        %2744 = vmatmul.mubr.bf16.gmra.mrb[0].mxu0 %v2690
        %v2745 = vpop.f32.mrb[0].mxu0
        %v2746 = vadd.f32 0.0, %v2745
        %v2747 = vpop.f32.mrb[0].mxu0
        %v2748 = vpop.f32.mrb[0].mxu0
        %v2749 = vadd.f32 0.0, %v2748
        %v2750 = vpop.f32.mrb[0].mxu0
        %2751 = vmatprep.mubr.bf16.mxu0 0
        %2752 = vmatmul.mubr.bf16.gmra.mrb[0].mxu0 %v2693
        %v2753 = vpop.f32.mrb[0].mxu0
        %v2754 = vadd.f32 0.0, %v2753
        %v2755 = vpop.f32.mrb[0].mxu0
        %v2756 = vpop.f32.mrb[0].mxu0
        %v2757 = vadd.f32 0.0, %v2756
        %v2758 = vpop.f32.mrb[0].mxu0
        %2759 = vdwg.mxu0
        %2768 = vrot.lane.b32.xlu0 %v1014, 8
        %v2769 = vpop.permute.xlu0 %2768
        %2770 = vrot.lane.b32.xlu0 %v1017, 8
        %v2771 = vpop.permute.xlu0 %2770
        %2772 = vrot.lane.b32.xlu0 %v1022, 8
        %v2773 = vpop.permute.xlu0 %2772
        %2774 = vrot.lane.b32.xlu0 %v1025, 8
        %v2775 = vpop.permute.xlu0 %2774
        %2776 = vrot.lane.b32.xlu0 %v1030, 8
        %v2777 = vpop.permute.xlu0 %2776
        %2778 = vrot.lane.b32.xlu0 %v1033, 8
        %v2779 = vpop.permute.xlu0 %2778
        %2780 = vrot.lane.b32.xlu0 %v1038, 8
        %v2781 = vpop.permute.xlu0 %2780
        %2782 = vrot.lane.b32.xlu0 %v1041, 8
        %v2783 = vpop.permute.xlu0 %2782
        %2800 = vrot.lane.b32.xlu0 %v1300, 16
        %v2801 = vpop.permute.xlu0 %2800
        %2802 = vrot.lane.b32.xlu0 %v1303, 16
        %v2803 = vpop.permute.xlu0 %2802
        %2804 = vrot.lane.b32.xlu0 %v1308, 16
        %v2805 = vpop.permute.xlu0 %2804
        %2806 = vrot.lane.b32.xlu0 %v1311, 16
        %v2807 = vpop.permute.xlu0 %2806
        %2808 = vrot.lane.b32.xlu0 %v1316, 16
        %v2809 = vpop.permute.xlu0 %2808
        %2810 = vrot.lane.b32.xlu0 %v1319, 16
        %v2811 = vpop.permute.xlu0 %2810
        %2812 = vrot.lane.b32.xlu0 %v1324, 16
        %v2813 = vpop.permute.xlu0 %2812
        %2814 = vrot.lane.b32.xlu0 %v1327, 16
        %v2815 = vpop.permute.xlu0 %2814
        %2832 = vrot.lane.b32.xlu0 %v1586, 24
        %v2833 = vpop.permute.xlu0 %2832
        %2834 = vrot.lane.b32.xlu0 %v1589, 24
        %v2835 = vpop.permute.xlu0 %2834
        %2836 = vrot.lane.b32.xlu0 %v1594, 24
        %v2837 = vpop.permute.xlu0 %2836
        %2838 = vrot.lane.b32.xlu0 %v1597, 24
        %v2839 = vpop.permute.xlu0 %2838
        %2840 = vrot.lane.b32.xlu0 %v1602, 24
        %v2841 = vpop.permute.xlu0 %2840
        %2842 = vrot.lane.b32.xlu0 %v1605, 24
        %v2843 = vpop.permute.xlu0 %2842
        %2844 = vrot.lane.b32.xlu0 %v1610, 24
        %v2845 = vpop.permute.xlu0 %2844
        %2846 = vrot.lane.b32.xlu0 %v1613, 24
        %v2847 = vpop.permute.xlu0 %2846
        %2864 = vrot.lane.b32.xlu0 %v1872, 32
        %v2865 = vpop.permute.xlu0 %2864
        %2866 = vrot.lane.b32.xlu0 %v1875, 32
        %v2867 = vpop.permute.xlu0 %2866
        %2868 = vrot.lane.b32.xlu0 %v1880, 32
        %v2869 = vpop.permute.xlu0 %2868
        %2870 = vrot.lane.b32.xlu0 %v1883, 32
        %v2871 = vpop.permute.xlu0 %2870
        %2872 = vrot.lane.b32.xlu0 %v1888, 32
        %v2873 = vpop.permute.xlu0 %2872
        %2874 = vrot.lane.b32.xlu0 %v1891, 32
        %v2875 = vpop.permute.xlu0 %2874
        %2876 = vrot.lane.b32.xlu0 %v1896, 32
        %v2877 = vpop.permute.xlu0 %2876
        %2878 = vrot.lane.b32.xlu0 %v1899, 32
        %v2879 = vpop.permute.xlu0 %2878
        %2896 = vrot.lane.b32.xlu0 %v2158, 40
        %v2897 = vpop.permute.xlu0 %2896
        %2898 = vrot.lane.b32.xlu0 %v2161, 40
        %v2899 = vpop.permute.xlu0 %2898
        %2900 = vrot.lane.b32.xlu0 %v2166, 40
        %v2901 = vpop.permute.xlu0 %2900
        %2902 = vrot.lane.b32.xlu0 %v2169, 40
        %v2903 = vpop.permute.xlu0 %2902
        %2904 = vrot.lane.b32.xlu0 %v2174, 40
        %v2905 = vpop.permute.xlu0 %2904
        %2906 = vrot.lane.b32.xlu0 %v2177, 40
        %v2907 = vpop.permute.xlu0 %2906
        %2908 = vrot.lane.b32.xlu0 %v2182, 40
        %v2909 = vpop.permute.xlu0 %2908
        %2910 = vrot.lane.b32.xlu0 %v2185, 40
        %v2911 = vpop.permute.xlu0 %2910
        %2928 = vrot.lane.b32.xlu0 %v2444, 48
        %v2929 = vpop.permute.xlu0 %2928
        %2930 = vrot.lane.b32.xlu0 %v2447, 48
        %v2931 = vpop.permute.xlu0 %2930
        %2932 = vrot.lane.b32.xlu0 %v2452, 48
        %v2933 = vpop.permute.xlu0 %2932
        %2934 = vrot.lane.b32.xlu0 %v2455, 48
        %v2935 = vpop.permute.xlu0 %2934
        %2936 = vrot.lane.b32.xlu0 %v2460, 48
        %v2937 = vpop.permute.xlu0 %2936
        %2938 = vrot.lane.b32.xlu0 %v2463, 48
        %v2939 = vpop.permute.xlu0 %2938
        %2940 = vrot.lane.b32.xlu0 %v2468, 48
        %v2941 = vpop.permute.xlu0 %2940
        %2942 = vrot.lane.b32.xlu0 %v2471, 48
        %v2943 = vpop.permute.xlu0 %2942
        %2960 = vrot.lane.b32.xlu0 %v2730, 56
        %v2961 = vpop.permute.xlu0 %2960
        %2962 = vrot.lane.b32.xlu0 %v2733, 56
        %v2963 = vpop.permute.xlu0 %2962
        %2964 = vrot.lane.b32.xlu0 %v2738, 56
        %v2965 = vpop.permute.xlu0 %2964
        %2966 = vrot.lane.b32.xlu0 %v2741, 56
        %v2967 = vpop.permute.xlu0 %2966
        %2968 = vrot.lane.b32.xlu0 %v2746, 56
        %v2969 = vpop.permute.xlu0 %2968
        %2970 = vrot.lane.b32.xlu0 %v2749, 56
        %v2971 = vpop.permute.xlu0 %2970
        %2972 = vrot.lane.b32.xlu0 %v2754, 56
        %v2973 = vpop.permute.xlu0 %2972
        %2974 = vrot.lane.b32.xlu0 %v2757, 56
        %v2975 = vpop.permute.xlu0 %2974
        %vm2984 = vcmask 64512
        %v2985 = vsel %vm2984, %v728, %v2769
        %v2986 = vsel %vm2984, %v731, %v2771
        %v2987 = vsel %vm2984, %v736, %v2773
        %v2988 = vsel %vm2984, %v739, %v2775
        %v2989 = vsel %vm2984, %v744, %v2777
        %v2990 = vsel %vm2984, %v747, %v2779
        %v2991 = vsel %vm2984, %v752, %v2781
        %v2992 = vsel %vm2984, %v755, %v2783
        %vm2993 = vcmask 130048
        %v2994 = vsel %vm2993, %v2985, %v2801
        %v2995 = vsel %vm2993, %v2986, %v2803
        %v2996 = vsel %vm2993, %v2987, %v2805
        %v2997 = vsel %vm2993, %v2988, %v2807
        %v2998 = vsel %vm2993, %v2989, %v2809
        %v2999 = vsel %vm2993, %v2990, %v2811
        %v3000 = vsel %vm2993, %v2991, %v2813
        %v3001 = vsel %vm2993, %v2992, %v2815
        %vm3002 = vcmask 195584
        %v3003 = vsel %vm3002, %v2994, %v2833
        %v3004 = vsel %vm3002, %v2995, %v2835
        %v3005 = vsel %vm3002, %v2996, %v2837
        %v3006 = vsel %vm3002, %v2997, %v2839
        %v3007 = vsel %vm3002, %v2998, %v2841
        %v3008 = vsel %vm3002, %v2999, %v2843
        %v3009 = vsel %vm3002, %v3000, %v2845
        %v3010 = vsel %vm3002, %v3001, %v2847
        %vm3011 = vcmask 261120
        %v3012 = vsel %vm3011, %v3003, %v2865
        %v3013 = vsel %vm3011, %v3004, %v2867
        %v3014 = vsel %vm3011, %v3005, %v2869
        %v3015 = vsel %vm3011, %v3006, %v2871
        %v3016 = vsel %vm3011, %v3007, %v2873
        %v3017 = vsel %vm3011, %v3008, %v2875
        %v3018 = vsel %vm3011, %v3009, %v2877
        %v3019 = vsel %vm3011, %v3010, %v2879
        %vm3020 = vcmask 326656
        %v3021 = vsel %vm3020, %v3012, %v2897
        %v3022 = vsel %vm3020, %v3013, %v2899
        %v3023 = vsel %vm3020, %v3014, %v2901
        %v3024 = vsel %vm3020, %v3015, %v2903
        %v3025 = vsel %vm3020, %v3016, %v2905
        %v3026 = vsel %vm3020, %v3017, %v2907
        %v3027 = vsel %vm3020, %v3018, %v2909
        %v3028 = vsel %vm3020, %v3019, %v2911
        %vm3029 = vcmask 392192
        %v3030 = vsel %vm3029, %v3021, %v2929
        %v3031 = vsel %vm3029, %v3022, %v2931
        %v3032 = vsel %vm3029, %v3023, %v2933
        %v3033 = vsel %vm3029, %v3024, %v2935
        %v3034 = vsel %vm3029, %v3025, %v2937
        %v3035 = vsel %vm3029, %v3026, %v2939
        %v3036 = vsel %vm3029, %v3027, %v2941
        %v3037 = vsel %vm3029, %v3028, %v2943
        %vm3038 = vcmask 457728
        %v3039 = vsel %vm3038, %v3030, %v2961
        %v3040 = vsel %vm3038, %v3031, %v2963
        %v3041 = vsel %vm3038, %v3032, %v2965
        %v3042 = vsel %vm3038, %v3033, %v2967
        %v3043 = vsel %vm3038, %v3034, %v2969
        %v3044 = vsel %vm3038, %v3035, %v2971
        %v3045 = vsel %vm3038, %v3036, %v2973
        %v3046 = vsel %vm3038, %v3037, %v2975
        %v3047 = vld [vmem:[#allocation8] sm:$0xff]
        %v3048 = vld [vmem:[#allocation8 + $0x8] sm:$0x1]
        %v3049 = vlaneseq
        %v3050 = vshrl.u32 %v3049, 7
        %v3051 = vadd.s32 %v3050, 8
        %v3052 = vadd.s32 %v3050, 16
        %v3053 = vadd.s32 %v3050, 24
        %v3054 = vadd.s32 %v3050, 32
        %v3055 = vadd.s32 %v3050, 40
        %v3056 = vadd.s32 %v3050, 48
        %v3057 = vadd.s32 %v3050, 56
        %vm3058 = vcmp.lt.s32.totalorder %v3050, 0
        %v3059 = vsub.s32 0, %v3050
        %v3060 = vsel %vm3058, %v3059, %v3050
        %v3061 = vshrl.u32 %v3060, 3
        %v3062 = vand.u32 %v3060, 7
        %v3063 = vsub.s32 0, %v3062
        %v3064 = vsel %vm3058, %v3063, %v3062
        %vm3065 = vcmp.lt.s32.totalorder %v3051, 0
        %v3066 = vsub.s32 0, %v3051
        %v3067 = vsel %vm3065, %v3066, %v3051
        %v3068 = vshrl.u32 %v3067, 3
        %v3069 = vand.u32 %v3067, 7
        %v3070 = vsub.s32 0, %v3069
        %v3071 = vsel %vm3065, %v3070, %v3069
        %vm3072 = vcmp.lt.s32.totalorder %v3052, 0
        %v3073 = vsub.s32 0, %v3052
        %v3074 = vsel %vm3072, %v3073, %v3052
        %v3075 = vshrl.u32 %v3074, 3
        %v3076 = vand.u32 %v3074, 7
        %v3077 = vsub.s32 0, %v3076
        %v3078 = vsel %vm3072, %v3077, %v3076
        %vm3079 = vcmp.lt.s32.totalorder %v3053, 0
        %v3080 = vsub.s32 0, %v3053
        %v3081 = vsel %vm3079, %v3080, %v3053
        %v3082 = vshrl.u32 %v3081, 3
        %v3083 = vand.u32 %v3081, 7
        %v3084 = vsub.s32 0, %v3083
        %v3085 = vsel %vm3079, %v3084, %v3083
        %vm3086 = vcmp.lt.s32.totalorder %v3054, 0
        %v3087 = vsub.s32 0, %v3054
        %v3088 = vsel %vm3086, %v3087, %v3054
        %v3089 = vshrl.u32 %v3088, 3
        %v3090 = vand.u32 %v3088, 7
        %v3091 = vsub.s32 0, %v3090
        %v3092 = vsel %vm3086, %v3091, %v3090
        %vm3093 = vcmp.lt.s32.totalorder %v3055, 0
        %v3094 = vsub.s32 0, %v3055
        %v3095 = vsel %vm3093, %v3094, %v3055
        %v3096 = vshrl.u32 %v3095, 3
        %v3097 = vand.u32 %v3095, 7
        %v3098 = vsub.s32 0, %v3097
        %v3099 = vsel %vm3093, %v3098, %v3097
        %vm3100 = vcmp.lt.s32.totalorder %v3056, 0
        %v3101 = vsub.s32 0, %v3056
        %v3102 = vsel %vm3100, %v3101, %v3056
        %v3103 = vshrl.u32 %v3102, 3
        %v3104 = vand.u32 %v3102, 7
        %v3105 = vsub.s32 0, %v3104
        %v3106 = vsel %vm3100, %v3105, %v3104
        %vm3107 = vcmp.lt.s32.totalorder %v3057, 0
        %v3108 = vsub.s32 0, %v3057
        %v3109 = vsel %vm3107, %v3108, %v3057
        %v3110 = vshrl.u32 %v3109, 3
        %v3111 = vand.u32 %v3109, 7
        %v3112 = vsub.s32 0, %v3111
        %v3113 = vsel %vm3107, %v3112, %v3111
        %vm3114 = vcmp.ne.s32.totalorder %v3064, 0
        %vm3115 = vcmp.ne.s32.totalorder %v3071, 0
        %vm3116 = vcmp.ne.s32.totalorder %v3078, 0
        %vm3117 = vcmp.ne.s32.totalorder %v3085, 0
        %vm3118 = vcmp.ne.s32.totalorder %v3092, 0
        %vm3119 = vcmp.ne.s32.totalorder %v3099, 0
        %vm3120 = vcmp.ne.s32.totalorder %v3106, 0
        %vm3121 = vcmp.ne.s32.totalorder %v3113, 0
        %vm3122 = vcmp.lt.s32.totalorder %v3064, 0
        %vm3123 = vcmp.lt.s32.totalorder %v3071, 0
        %vm3124 = vcmp.lt.s32.totalorder %v3078, 0
        %vm3125 = vcmp.lt.s32.totalorder %v3085, 0
        %vm3126 = vcmp.lt.s32.totalorder %v3092, 0
        %vm3127 = vcmp.lt.s32.totalorder %v3099, 0
        %vm3128 = vcmp.lt.s32.totalorder %v3106, 0
        %vm3129 = vcmp.lt.s32.totalorder %v3113, 0
        %vm3130 = vmand %vm3122, %vm3114
        %vm3131 = vmand %vm3123, %vm3115
        %vm3132 = vmand %vm3124, %vm3116
        %vm3133 = vmand %vm3125, %vm3117
        %vm3134 = vmand %vm3126, %vm3118
        %vm3135 = vmand %vm3127, %vm3119
        %vm3136 = vmand %vm3128, %vm3120
        %vm3137 = vmand %vm3129, %vm3121
        %v3138 = vadd.s32 %v3064, 8
        %v3139 = vadd.s32 %v3071, 8
        %v3140 = vadd.s32 %v3078, 8
        %v3141 = vadd.s32 %v3085, 8
        %v3142 = vadd.s32 %v3092, 8
        %v3143 = vadd.s32 %v3099, 8
        %v3144 = vadd.s32 %v3106, 8
        %v3145 = vadd.s32 %v3113, 8
        %v3146 = vsel %vm3130, %v3138, %v3064
        %v3147 = vsel %vm3131, %v3139, %v3071
        %v3148 = vsel %vm3132, %v3140, %v3078
        %v3149 = vsel %vm3133, %v3141, %v3085
        %v3150 = vsel %vm3134, %v3142, %v3092
        %v3151 = vsel %vm3135, %v3143, %v3099
        %v3152 = vsel %vm3136, %v3144, %v3106
        %v3153 = vsel %vm3137, %v3145, %v3113
        %vm3154 = vcmp.ge.s32.totalorder %v3146, 1
        %vm3155 = vcmp.ge.s32.totalorder %v3147, 1
        %vm3156 = vcmp.ge.s32.totalorder %v3148, 1
        %vm3157 = vcmp.ge.s32.totalorder %v3149, 1
        %vm3158 = vcmp.ge.s32.totalorder %v3150, 1
        %vm3159 = vcmp.ge.s32.totalorder %v3151, 1
        %vm3160 = vcmp.ge.s32.totalorder %v3152, 1
        %vm3161 = vcmp.ge.s32.totalorder %v3153, 1
        %vm3162 = vcmp.lt.s32.totalorder %v3146, 7
        %vm3163 = vcmp.lt.s32.totalorder %v3147, 7
        %vm3164 = vcmp.lt.s32.totalorder %v3148, 7
        %vm3165 = vcmp.lt.s32.totalorder %v3149, 7
        %vm3166 = vcmp.lt.s32.totalorder %v3150, 7
        %vm3167 = vcmp.lt.s32.totalorder %v3151, 7
        %vm3168 = vcmp.lt.s32.totalorder %v3152, 7
        %vm3169 = vcmp.lt.s32.totalorder %v3153, 7
        %3170 = vst.msk [vmem:[#allocation2] sm:$0xff] %vm393, 0.0
        %3171 = vst.msk [vmem:[#allocation2 + $0x8] sm:$0xff] %vm393, 0.0
        %3172 = vst.msk [vmem:[#allocation2 + $0x50] sm:$0xff] %vm393, 0.0
        %3173 = vst.msk [vmem:[#allocation2 + $0x58] sm:$0xff] %vm393, 0.0
        %3182 = vrot.lane.b32.xlu0 %v441, 64
        %v3183 = vpop.permute.xlu0 %3182
        %3184 = vrot.lane.b32.xlu0 %v444, 64
        %v3185 = vpop.permute.xlu0 %3184
        %3186 = vrot.lane.b32.xlu0 %v449, 64
        %v3187 = vpop.permute.xlu0 %3186
        %3188 = vrot.lane.b32.xlu0 %v452, 64
        %v3189 = vpop.permute.xlu0 %3188
        %3190 = vrot.lane.b32.xlu0 %v457, 64
        %v3191 = vpop.permute.xlu0 %3190
        %3192 = vrot.lane.b32.xlu0 %v460, 64
        %v3193 = vpop.permute.xlu0 %3192
        %3194 = vrot.lane.b32.xlu0 %v465, 64
        %v3195 = vpop.permute.xlu0 %3194
        %3196 = vrot.lane.b32.xlu0 %v468, 64
        %v3197 = vpop.permute.xlu0 %3196
        %3206 = vst.msk [vmem:[#allocation2 + $0x10] sm:$0xff] %vm393, %v3183
        %3207 = vst.msk [vmem:[#allocation2 + $0x18] sm:$0xff] %vm393, %v3185
        %3208 = vst.msk [vmem:[#allocation2 + $0x20] sm:$0xff] %vm393, %v3187
        %3209 = vst.msk [vmem:[#allocation2 + $0x28] sm:$0xff] %vm393, %v3189
        %3210 = vst.msk [vmem:[#allocation2 + $0x30] sm:$0xff] %vm393, %v3191
        %3211 = vst.msk [vmem:[#allocation2 + $0x38] sm:$0xff] %vm393, %v3193
        %3212 = vst.msk [vmem:[#allocation2 + $0x40] sm:$0xff] %vm393, %v3195
        %3213 = vst.msk [vmem:[#allocation2 + $0x48] sm:$0xff] %vm393, %v3197
        %v3214 = vlaneseq
        %v3215 = vshrl.u32 %v3214, 7
        %v3216 = vsub.s32 4, %v3215
        %v3217 = vrot.slane %v3047, %v3216
        %3219 = vrot.lane.b32.xlu0 %v3217, 64
        %v3220 = vpop.permute.xlu0 %3219
        %v3222 = vmul.f32 %v441, %v3220
        %v3223 = vmul.f32 %v444, %v3220
        %v3224 = vmul.f32 %v449, %v3220
        %v3225 = vmul.f32 %v452, %v3220
        %v3226 = vmul.f32 %v457, %v3220
        %v3227 = vmul.f32 %v460, %v3220
        %v3228 = vmul.f32 %v465, %v3220
        %v3229 = vmul.f32 %v468, %v3220
        %v3230 = vld [vmem:[#allocation2 + $0x7] sm:$0xff]
        %v3231 = vld [vmem:[#allocation2 + $0xf] sm:$0xff]
        %v3232 = vld [vmem:[#allocation2 + $0x17] sm:$0xff]
        %v3233 = vld [vmem:[#allocation2 + $0x1f] sm:$0xff]
        %v3234 = vld [vmem:[#allocation2 + $0x27] sm:$0xff]
        %v3235 = vld [vmem:[#allocation2 + $0x2f] sm:$0xff]
        %v3236 = vld [vmem:[#allocation2 + $0x37] sm:$0xff]
        %v3237 = vld [vmem:[#allocation2 + $0x3f] sm:$0xff]
        %v3238 = vsel %vm3154, 1, 0
        %v3239 = vsel %vm3155, 1, 0
        %v3240 = vsel %vm3156, 1, 0
        %v3241 = vsel %vm3157, 1, 0
        %v3242 = vsel %vm3158, 1, 0
        %v3243 = vsel %vm3159, 1, 0
        %v3244 = vsel %vm3160, 1, 0
        %v3245 = vsel %vm3161, 1, 0
        %vm3246 = vcmp.eq.s32.totalorder %v3238, 1
        %vm3247 = vcmp.eq.s32.totalorder %v3239, 1
        %vm3248 = vcmp.eq.s32.totalorder %v3240, 1
        %vm3249 = vcmp.eq.s32.totalorder %v3241, 1
        %vm3250 = vcmp.eq.s32.totalorder %v3242, 1
        %vm3251 = vcmp.eq.s32.totalorder %v3243, 1
        %vm3252 = vcmp.eq.s32.totalorder %v3244, 1
        %vm3253 = vcmp.eq.s32.totalorder %v3245, 1
        %v3254 = vsel %vm3246, %v3230, 0.0
        %v3255 = vsel %vm3247, %v3231, 0.0
        %v3256 = vsel %vm3248, %v3232, 0.0
        %v3257 = vsel %vm3249, %v3233, 0.0
        %v3258 = vsel %vm3250, %v3234, 0.0
        %v3259 = vsel %vm3251, %v3235, 0.0
        %v3260 = vsel %vm3252, %v3236, 0.0
        %v3261 = vsel %vm3253, %v3237, 0.0
        %v3262 = vlaneseq
        %v3263 = vshrl.u32 %v3262, 7
        %v3264 = vsub.s32 0, %v3263
        %v3265 = vrot.slane %v3047, %v3264
        %v3266 = vmul.f32 %v3254, %v3265
        %v3267 = vmul.f32 %v3255, %v3265
        %v3268 = vmul.f32 %v3256, %v3265
        %v3269 = vmul.f32 %v3257, %v3265
        %v3270 = vmul.f32 %v3258, %v3265
        %v3271 = vmul.f32 %v3259, %v3265
        %v3272 = vmul.f32 %v3260, %v3265
        %v3273 = vmul.f32 %v3261, %v3265
        %3282 = vrot.lane.b32.xlu0 %v3266, 64
        %v3283 = vpop.permute.xlu0 %3282
        %3284 = vrot.lane.b32.xlu0 %v3267, 64
        %v3285 = vpop.permute.xlu0 %3284
        %3286 = vrot.lane.b32.xlu0 %v3268, 64
        %v3287 = vpop.permute.xlu0 %3286
        %3288 = vrot.lane.b32.xlu0 %v3269, 64
        %v3289 = vpop.permute.xlu0 %3288
        %3290 = vrot.lane.b32.xlu0 %v3270, 64
        %v3291 = vpop.permute.xlu0 %3290
        %3292 = vrot.lane.b32.xlu0 %v3271, 64
        %v3293 = vpop.permute.xlu0 %3292
        %3294 = vrot.lane.b32.xlu0 %v3272, 64
        %v3295 = vpop.permute.xlu0 %3294
        %3296 = vrot.lane.b32.xlu0 %v3273, 64
        %v3297 = vpop.permute.xlu0 %3296
        %v3306 = vadd.f32 %v3222, %v3283
        %v3307 = vadd.f32 %v3223, %v3285
        %v3308 = vadd.f32 %v3224, %v3287
        %v3309 = vadd.f32 %v3225, %v3289
        %v3310 = vadd.f32 %v3226, %v3291
        %v3311 = vadd.f32 %v3227, %v3293
        %v3312 = vadd.f32 %v3228, %v3295
        %v3313 = vadd.f32 %v3229, %v3297
        %v3314 = vld [vmem:[#allocation2 + $0x8] sm:$0xff]
        %v3315 = vld [vmem:[#allocation2 + $0x10] sm:$0xff]
        %v3316 = vld [vmem:[#allocation2 + $0x18] sm:$0xff]
        %v3317 = vld [vmem:[#allocation2 + $0x20] sm:$0xff]
        %v3318 = vld [vmem:[#allocation2 + $0x28] sm:$0xff]
        %v3319 = vld [vmem:[#allocation2 + $0x30] sm:$0xff]
        %v3320 = vld [vmem:[#allocation2 + $0x38] sm:$0xff]
        %v3321 = vld [vmem:[#allocation2 + $0x40] sm:$0xff]
        %v3322 = vlaneseq
        %v3323 = vshrl.u32 %v3322, 7
        %v3324 = vsub.s32 1, %v3323
        %v3325 = vrot.slane %v3047, %v3324
        %v3326 = vmul.f32 %v3314, %v3325
        %v3327 = vmul.f32 %v3315, %v3325
        %v3328 = vmul.f32 %v3316, %v3325
        %v3329 = vmul.f32 %v3317, %v3325
        %v3330 = vmul.f32 %v3318, %v3325
        %v3331 = vmul.f32 %v3319, %v3325
        %v3332 = vmul.f32 %v3320, %v3325
        %v3333 = vmul.f32 %v3321, %v3325
        %3342 = vrot.lane.b32.xlu0 %v3326, 64
        %v3343 = vpop.permute.xlu0 %3342
        %3344 = vrot.lane.b32.xlu0 %v3327, 64
        %v3345 = vpop.permute.xlu0 %3344
        %3346 = vrot.lane.b32.xlu0 %v3328, 64
        %v3347 = vpop.permute.xlu0 %3346
        %3348 = vrot.lane.b32.xlu0 %v3329, 64
        %v3349 = vpop.permute.xlu0 %3348
        %3350 = vrot.lane.b32.xlu0 %v3330, 64
        %v3351 = vpop.permute.xlu0 %3350
        %3352 = vrot.lane.b32.xlu0 %v3331, 64
        %v3353 = vpop.permute.xlu0 %3352
        %3354 = vrot.lane.b32.xlu0 %v3332, 64
        %v3355 = vpop.permute.xlu0 %3354
        %3356 = vrot.lane.b32.xlu0 %v3333, 64
        %v3357 = vpop.permute.xlu0 %3356
        %v3366 = vadd.f32 %v3306, %v3343
        %v3367 = vadd.f32 %v3307, %v3345
        %v3368 = vadd.f32 %v3308, %v3347
        %v3369 = vadd.f32 %v3309, %v3349
        %v3370 = vadd.f32 %v3310, %v3351
        %v3371 = vadd.f32 %v3311, %v3353
        %v3372 = vadd.f32 %v3312, %v3355
        %v3373 = vadd.f32 %v3313, %v3357
        %v3374 = vld [vmem:[#allocation2 + $0x9] sm:$0xff]
        %v3375 = vld [vmem:[#allocation2 + $0x11] sm:$0xff]
        %v3376 = vld [vmem:[#allocation2 + $0x19] sm:$0xff]
        %v3377 = vld [vmem:[#allocation2 + $0x21] sm:$0xff]
        %v3378 = vld [vmem:[#allocation2 + $0x29] sm:$0xff]
        %v3379 = vld [vmem:[#allocation2 + $0x31] sm:$0xff]
        %v3380 = vld [vmem:[#allocation2 + $0x39] sm:$0xff]
        %v3381 = vld [vmem:[#allocation2 + $0x41] sm:$0xff]
        %v3382 = vsel %vm3162, 1, 0
        %v3383 = vsel %vm3163, 1, 0
        %v3384 = vsel %vm3164, 1, 0
        %v3385 = vsel %vm3165, 1, 0
        %v3386 = vsel %vm3166, 1, 0
        %v3387 = vsel %vm3167, 1, 0
        %v3388 = vsel %vm3168, 1, 0
        %v3389 = vsel %vm3169, 1, 0
        %vm3390 = vcmp.eq.s32.totalorder %v3382, 1
        %vm3391 = vcmp.eq.s32.totalorder %v3383, 1
        %vm3392 = vcmp.eq.s32.totalorder %v3384, 1
        %vm3393 = vcmp.eq.s32.totalorder %v3385, 1
        %vm3394 = vcmp.eq.s32.totalorder %v3386, 1
        %vm3395 = vcmp.eq.s32.totalorder %v3387, 1
        %vm3396 = vcmp.eq.s32.totalorder %v3388, 1
        %vm3397 = vcmp.eq.s32.totalorder %v3389, 1
        %v3398 = vsel %vm3390, %v3374, 0.0
        %v3399 = vsel %vm3391, %v3375, 0.0
        %v3400 = vsel %vm3392, %v3376, 0.0
        %v3401 = vsel %vm3393, %v3377, 0.0
        %v3402 = vsel %vm3394, %v3378, 0.0
        %v3403 = vsel %vm3395, %v3379, 0.0
        %v3404 = vsel %vm3396, %v3380, 0.0
        %v3405 = vsel %vm3397, %v3381, 0.0
        %v3406 = vlaneseq
        %v3407 = vshrl.u32 %v3406, 7
        %v3408 = vsub.s32 2, %v3407
        %v3409 = vrot.slane %v3047, %v3408
        %v3410 = vmul.f32 %v3398, %v3409
        %v3411 = vmul.f32 %v3399, %v3409
        %v3412 = vmul.f32 %v3400, %v3409
        %v3413 = vmul.f32 %v3401, %v3409
        %v3414 = vmul.f32 %v3402, %v3409
        %v3415 = vmul.f32 %v3403, %v3409
        %v3416 = vmul.f32 %v3404, %v3409
        %v3417 = vmul.f32 %v3405, %v3409
        %3426 = vrot.lane.b32.xlu0 %v3410, 64
        %v3427 = vpop.permute.xlu0 %3426
        %3428 = vrot.lane.b32.xlu0 %v3411, 64
        %v3429 = vpop.permute.xlu0 %3428
        %3430 = vrot.lane.b32.xlu0 %v3412, 64
        %v3431 = vpop.permute.xlu0 %3430
        %3432 = vrot.lane.b32.xlu0 %v3413, 64
        %v3433 = vpop.permute.xlu0 %3432
        %3434 = vrot.lane.b32.xlu0 %v3414, 64
        %v3435 = vpop.permute.xlu0 %3434
        %3436 = vrot.lane.b32.xlu0 %v3415, 64
        %v3437 = vpop.permute.xlu0 %3436
        %3438 = vrot.lane.b32.xlu0 %v3416, 64
        %v3439 = vpop.permute.xlu0 %3438
        %3440 = vrot.lane.b32.xlu0 %v3417, 64
        %v3441 = vpop.permute.xlu0 %3440
        %v3450 = vadd.f32 %v3366, %v3427
        %v3451 = vadd.f32 %v3367, %v3429
        %v3452 = vadd.f32 %v3368, %v3431
        %v3453 = vadd.f32 %v3369, %v3433
        %v3454 = vadd.f32 %v3370, %v3435
        %v3455 = vadd.f32 %v3371, %v3437
        %v3456 = vadd.f32 %v3372, %v3439
        %v3457 = vadd.f32 %v3373, %v3441
        %v3458 = vld [vmem:[#allocation2 + $0x47] sm:$0xff]
        %v3459 = vsel %vm3246, %v3231, 0.0
        %v3460 = vsel %vm3247, %v3232, 0.0
        %v3461 = vsel %vm3248, %v3233, 0.0
        %v3462 = vsel %vm3249, %v3234, 0.0
        %v3463 = vsel %vm3250, %v3235, 0.0
        %v3464 = vsel %vm3251, %v3236, 0.0
        %v3465 = vsel %vm3252, %v3237, 0.0
        %v3466 = vsel %vm3253, %v3458, 0.0
        %v3467 = vlaneseq
        %v3468 = vshrl.u32 %v3467, 7
        %v3469 = vsub.s32 3, %v3468
        %v3470 = vrot.slane %v3047, %v3469
        %v3471 = vmul.f32 %v3459, %v3470
        %v3472 = vmul.f32 %v3460, %v3470
        %v3473 = vmul.f32 %v3461, %v3470
        %v3474 = vmul.f32 %v3462, %v3470
        %v3475 = vmul.f32 %v3463, %v3470
        %v3476 = vmul.f32 %v3464, %v3470
        %v3477 = vmul.f32 %v3465, %v3470
        %v3478 = vmul.f32 %v3466, %v3470
        %3487 = vrot.lane.b32.xlu0 %v3471, 64
        %v3488 = vpop.permute.xlu0 %3487
        %3489 = vrot.lane.b32.xlu0 %v3472, 64
        %v3490 = vpop.permute.xlu0 %3489
        %3491 = vrot.lane.b32.xlu0 %v3473, 64
        %v3492 = vpop.permute.xlu0 %3491
        %3493 = vrot.lane.b32.xlu0 %v3474, 64
        %v3494 = vpop.permute.xlu0 %3493
        %3495 = vrot.lane.b32.xlu0 %v3475, 64
        %v3496 = vpop.permute.xlu0 %3495
        %3497 = vrot.lane.b32.xlu0 %v3476, 64
        %v3498 = vpop.permute.xlu0 %3497
        %3499 = vrot.lane.b32.xlu0 %v3477, 64
        %v3500 = vpop.permute.xlu0 %3499
        %3501 = vrot.lane.b32.xlu0 %v3478, 64
        %v3502 = vpop.permute.xlu0 %3501
        %v3511 = vadd.f32 %v3450, %v3488
        %v3512 = vadd.f32 %v3451, %v3490
        %v3513 = vadd.f32 %v3452, %v3492
        %v3514 = vadd.f32 %v3453, %v3494
        %v3515 = vadd.f32 %v3454, %v3496
        %v3516 = vadd.f32 %v3455, %v3498
        %v3517 = vadd.f32 %v3456, %v3500
        %v3518 = vadd.f32 %v3457, %v3502
        %v3519 = vld [vmem:[#allocation2 + $0x49] sm:$0xff]
        %v3520 = vsel %vm3390, %v3375, 0.0
        %v3521 = vsel %vm3391, %v3376, 0.0
        %v3522 = vsel %vm3392, %v3377, 0.0
        %v3523 = vsel %vm3393, %v3378, 0.0
        %v3524 = vsel %vm3394, %v3379, 0.0
        %v3525 = vsel %vm3395, %v3380, 0.0
        %v3526 = vsel %vm3396, %v3381, 0.0
        %v3527 = vsel %vm3397, %v3519, 0.0
        %v3528 = vlaneseq
        %v3529 = vshrl.u32 %v3528, 7
        %v3530 = vsub.s32 5, %v3529
        %v3531 = vrot.slane %v3047, %v3530
        %v3532 = vmul.f32 %v3520, %v3531
        %v3533 = vmul.f32 %v3521, %v3531
        %v3534 = vmul.f32 %v3522, %v3531
        %v3535 = vmul.f32 %v3523, %v3531
        %v3536 = vmul.f32 %v3524, %v3531
        %v3537 = vmul.f32 %v3525, %v3531
        %v3538 = vmul.f32 %v3526, %v3531
        %v3539 = vmul.f32 %v3527, %v3531
        %3548 = vrot.lane.b32.xlu0 %v3532, 64
        %v3549 = vpop.permute.xlu0 %3548
        %3550 = vrot.lane.b32.xlu0 %v3533, 64
        %v3551 = vpop.permute.xlu0 %3550
        %3552 = vrot.lane.b32.xlu0 %v3534, 64
        %v3553 = vpop.permute.xlu0 %3552
        %3554 = vrot.lane.b32.xlu0 %v3535, 64
        %v3555 = vpop.permute.xlu0 %3554
        %3556 = vrot.lane.b32.xlu0 %v3536, 64
        %v3557 = vpop.permute.xlu0 %3556
        %3558 = vrot.lane.b32.xlu0 %v3537, 64
        %v3559 = vpop.permute.xlu0 %3558
        %3560 = vrot.lane.b32.xlu0 %v3538, 64
        %v3561 = vpop.permute.xlu0 %3560
        %3562 = vrot.lane.b32.xlu0 %v3539, 64
        %v3563 = vpop.permute.xlu0 %3562
        %v3572 = vadd.f32 %v3511, %v3549
        %v3573 = vadd.f32 %v3512, %v3551
        %v3574 = vadd.f32 %v3513, %v3553
        %v3575 = vadd.f32 %v3514, %v3555
        %v3576 = vadd.f32 %v3515, %v3557
        %v3577 = vadd.f32 %v3516, %v3559
        %v3578 = vadd.f32 %v3517, %v3561
        %v3579 = vadd.f32 %v3518, %v3563
        %v3580 = vld [vmem:[#allocation2 + $0x4f] sm:$0xff]
        %v3581 = vsel %vm3246, %v3232, 0.0
        %v3582 = vsel %vm3247, %v3233, 0.0
        %v3583 = vsel %vm3248, %v3234, 0.0
        %v3584 = vsel %vm3249, %v3235, 0.0
        %v3585 = vsel %vm3250, %v3236, 0.0
        %v3586 = vsel %vm3251, %v3237, 0.0
        %v3587 = vsel %vm3252, %v3458, 0.0
        %v3588 = vsel %vm3253, %v3580, 0.0
        %v3589 = vlaneseq
        %v3590 = vshrl.u32 %v3589, 7
        %v3591 = vsub.s32 6, %v3590
        %v3592 = vrot.slane %v3047, %v3591
        %v3593 = vmul.f32 %v3581, %v3592
        %v3594 = vmul.f32 %v3582, %v3592
        %v3595 = vmul.f32 %v3583, %v3592
        %v3596 = vmul.f32 %v3584, %v3592
        %v3597 = vmul.f32 %v3585, %v3592
        %v3598 = vmul.f32 %v3586, %v3592
        %v3599 = vmul.f32 %v3587, %v3592
        %v3600 = vmul.f32 %v3588, %v3592
        %3609 = vrot.lane.b32.xlu0 %v3593, 64
        %v3610 = vpop.permute.xlu0 %3609
        %3611 = vrot.lane.b32.xlu0 %v3594, 64
        %v3612 = vpop.permute.xlu0 %3611
        %3613 = vrot.lane.b32.xlu0 %v3595, 64
        %v3614 = vpop.permute.xlu0 %3613
        %3615 = vrot.lane.b32.xlu0 %v3596, 64
        %v3616 = vpop.permute.xlu0 %3615
        %3617 = vrot.lane.b32.xlu0 %v3597, 64
        %v3618 = vpop.permute.xlu0 %3617
        %3619 = vrot.lane.b32.xlu0 %v3598, 64
        %v3620 = vpop.permute.xlu0 %3619
        %3621 = vrot.lane.b32.xlu0 %v3599, 64
        %v3622 = vpop.permute.xlu0 %3621
        %3623 = vrot.lane.b32.xlu0 %v3600, 64
        %v3624 = vpop.permute.xlu0 %3623
        %v3633 = vadd.f32 %v3572, %v3610
        %v3634 = vadd.f32 %v3573, %v3612
        %v3635 = vadd.f32 %v3574, %v3614
        %v3636 = vadd.f32 %v3575, %v3616
        %v3637 = vadd.f32 %v3576, %v3618
        %v3638 = vadd.f32 %v3577, %v3620
        %v3639 = vadd.f32 %v3578, %v3622
        %v3640 = vadd.f32 %v3579, %v3624
        %v3641 = vld [vmem:[#allocation2 + $0x48] sm:$0xff]
        %v3642 = vld [vmem:[#allocation2 + $0x50] sm:$0xff]
        %v3643 = vlaneseq
        %v3644 = vshrl.u32 %v3643, 7
        %v3645 = vsub.s32 7, %v3644
        %v3646 = vrot.slane %v3047, %v3645
        %v3647 = vmul.f32 %v3316, %v3646
        %v3648 = vmul.f32 %v3317, %v3646
        %v3649 = vmul.f32 %v3318, %v3646
        %v3650 = vmul.f32 %v3319, %v3646
        %v3651 = vmul.f32 %v3320, %v3646
        %v3652 = vmul.f32 %v3321, %v3646
        %v3653 = vmul.f32 %v3641, %v3646
        %v3654 = vmul.f32 %v3642, %v3646
        %3663 = vrot.lane.b32.xlu0 %v3647, 64
        %v3664 = vpop.permute.xlu0 %3663
        %3665 = vrot.lane.b32.xlu0 %v3648, 64
        %v3666 = vpop.permute.xlu0 %3665
        %3667 = vrot.lane.b32.xlu0 %v3649, 64
        %v3668 = vpop.permute.xlu0 %3667
        %3669 = vrot.lane.b32.xlu0 %v3650, 64
        %v3670 = vpop.permute.xlu0 %3669
        %3671 = vrot.lane.b32.xlu0 %v3651, 64
        %v3672 = vpop.permute.xlu0 %3671
        %3673 = vrot.lane.b32.xlu0 %v3652, 64
        %v3674 = vpop.permute.xlu0 %3673
        %3675 = vrot.lane.b32.xlu0 %v3653, 64
        %v3676 = vpop.permute.xlu0 %3675
        %3677 = vrot.lane.b32.xlu0 %v3654, 64
        %v3678 = vpop.permute.xlu0 %3677
        %v3687 = vadd.f32 %v3633, %v3664
        %v3688 = vadd.f32 %v3634, %v3666
        %v3689 = vadd.f32 %v3635, %v3668
        %v3690 = vadd.f32 %v3636, %v3670
        %v3691 = vadd.f32 %v3637, %v3672
        %v3692 = vadd.f32 %v3638, %v3674
        %v3693 = vadd.f32 %v3639, %v3676
        %v3694 = vadd.f32 %v3640, %v3678
        %v3695 = vld [vmem:[#allocation2 + $0x51] sm:$0xff]
        %v3696 = vsel %vm3390, %v3376, 0.0
        %v3697 = vsel %vm3391, %v3377, 0.0
        %v3698 = vsel %vm3392, %v3378, 0.0
        %v3699 = vsel %vm3393, %v3379, 0.0
        %v3700 = vsel %vm3394, %v3380, 0.0
        %v3701 = vsel %vm3395, %v3381, 0.0
        %v3702 = vsel %vm3396, %v3519, 0.0
        %v3703 = vsel %vm3397, %v3695, 0.0
        %v3704 = vlaneseq
        %v3705 = vshrl.u32 %v3704, 7
        %v3706 = vsub.s32 0, %v3705
        %v3707 = vrot.slane %v3048, %v3706
        %v3708 = vmul.f32 %v3696, %v3707
        %v3709 = vmul.f32 %v3697, %v3707
        %v3710 = vmul.f32 %v3698, %v3707
        %v3711 = vmul.f32 %v3699, %v3707
        %v3712 = vmul.f32 %v3700, %v3707
        %v3713 = vmul.f32 %v3701, %v3707
        %v3714 = vmul.f32 %v3702, %v3707
        %v3715 = vmul.f32 %v3703, %v3707
        %3724 = vrot.lane.b32.xlu0 %v3708, 64
        %v3725 = vpop.permute.xlu0 %3724
        %3726 = vrot.lane.b32.xlu0 %v3709, 64
        %v3727 = vpop.permute.xlu0 %3726
        %3728 = vrot.lane.b32.xlu0 %v3710, 64
        %v3729 = vpop.permute.xlu0 %3728
        %3730 = vrot.lane.b32.xlu0 %v3711, 64
        %v3731 = vpop.permute.xlu0 %3730
        %3732 = vrot.lane.b32.xlu0 %v3712, 64
        %v3733 = vpop.permute.xlu0 %3732
        %3734 = vrot.lane.b32.xlu0 %v3713, 64
        %v3735 = vpop.permute.xlu0 %3734
        %3736 = vrot.lane.b32.xlu0 %v3714, 64
        %v3737 = vpop.permute.xlu0 %3736
        %3738 = vrot.lane.b32.xlu0 %v3715, 64
        %v3739 = vpop.permute.xlu0 %3738
        %v3748 = vadd.f32 %v3687, %v3725
        %v3749 = vadd.f32 %v3688, %v3727
        %v3750 = vadd.f32 %v3689, %v3729
        %v3751 = vadd.f32 %v3690, %v3731
        %v3752 = vadd.f32 %v3691, %v3733
        %v3753 = vadd.f32 %v3692, %v3735
        %v3754 = vadd.f32 %v3693, %v3737
        %v3755 = vadd.f32 %v3694, %v3739
        %v3756 = vld [vmem:[%s4] sm:$0x1]
        %v3758 = vlaneseq
        %v3759 = vshrl.u32 %v3758, 7
        %v3760 = vsub.s32 0, %v3759
        %v3761 = vrot.slane %v3756, %v3760
        %3762 = vrot.lane.b32.xlu0 %v3761, 64
        %v3763 = vpop.permute.xlu0 %3762
        %v3765 = vadd.f32 %v3748, %v3763
        %v3766 = vadd.f32 %v3749, %v3763
        %v3767 = vadd.f32 %v3750, %v3763
        %v3768 = vadd.f32 %v3751, %v3763
        %v3769 = vadd.f32 %v3752, %v3763
        %v3770 = vadd.f32 %v3753, %v3763
        %v3771 = vadd.f32 %v3754, %v3763
        %v3772 = vadd.f32 %v3755, %v3763
        %3781 = vrot.lane.b32.xlu0 %v3765, 64
        %v3782 = vpop.permute.xlu0 %3781
        %3783 = vrot.lane.b32.xlu0 %v3766, 64
        %v3784 = vpop.permute.xlu0 %3783
        %3785 = vrot.lane.b32.xlu0 %v3767, 64
        %v3786 = vpop.permute.xlu0 %3785
        %3787 = vrot.lane.b32.xlu0 %v3768, 64
        %v3788 = vpop.permute.xlu0 %3787
        %3789 = vrot.lane.b32.xlu0 %v3769, 64
        %v3790 = vpop.permute.xlu0 %3789
        %3791 = vrot.lane.b32.xlu0 %v3770, 64
        %v3792 = vpop.permute.xlu0 %3791
        %3793 = vrot.lane.b32.xlu0 %v3771, 64
        %v3794 = vpop.permute.xlu0 %3793
        %3795 = vrot.lane.b32.xlu0 %v3772, 64
        %v3796 = vpop.permute.xlu0 %3795
        %v3805 = vadd.f32 %v3039, %v3782
        %v3806 = vadd.f32 %v3040, %v3784
        %v3807 = vadd.f32 %v3041, %v3786
        %v3808 = vadd.f32 %v3042, %v3788
        %v3809 = vadd.f32 %v3043, %v3790
        %v3810 = vadd.f32 %v3044, %v3792
        %v3811 = vadd.f32 %v3045, %v3794
        %v3812 = vadd.f32 %v3046, %v3796
        %v3813 = vpack.c.bf16 %v3806, %v3805
        %v3814 = vpack.c.bf16 %v3808, %v3807
        %v3815 = vpack.c.bf16 %v3810, %v3809
        %v3816 = vpack.c.bf16 %v3812, %v3811
        %v3817 = vld [vmem:[#allocation9] sm:$0xf]
        %v3818 = vld [vmem:[#allocation9 + $0x4] sm:$0xf]
        %v3819 = vld [vmem:[#allocation9 + $0x8] sm:$0xf]
        %v3820 = vld [vmem:[#allocation9 + $0xc] sm:$0xf]
        %v3821 = vld [vmem:[#allocation9 + $0x10] sm:$0xf]
        %v3822 = vld [vmem:[#allocation9 + $0x14] sm:$0xf]
        %v3823 = vld [vmem:[#allocation9 + $0x18] sm:$0xf]
        %v3824 = vld [vmem:[#allocation9 + $0x1c] sm:$0xf]
        %v3825 = vld [vmem:[%s6] sm:$0x1]
        %v3827 = vlaneseq
        %v3828 = vshrl.u32 %v3827, 7
        %v3829 = vsub.s32 0, %v3828
        %v3830 = vrot.slane %v3825, %v3829
        %v3840 = vunpack.c.l.b16 %v3817
        %v3841 = vunpack.c.l.b16 %v3818
        %v3842 = vunpack.c.l.b16 %v3819
        %v3843 = vunpack.c.l.b16 %v3820
        %v3844 = vunpack.c.l.b16 %v3821
        %v3845 = vunpack.c.l.b16 %v3822
        %v3846 = vunpack.c.l.b16 %v3823
        %v3847 = vunpack.c.l.b16 %v3824
        %v3848 = vpack.c.b16 %v3841, %v3840
        %v3849 = vpack.c.b16 %v3843, %v3842
        %v3850 = vpack.c.b16 %v3845, %v3844
        %v3851 = vpack.c.b16 %v3847, %v3846
        %v3857 = vsel %vm393, %v3813, 0
        %v3860 = vsel %vm393, %v3814, 0
        %v3863 = vsel %vm393, %v3815, 0
        %v3866 = vsel %vm393, %v3816, 0
        %3868 = vmatprep.subr.bf16.mxu0 0
        %3869 = vmatpush1.bf16.msra.mxu0 %v3848
        %3870 = vmatprep.subr.bf16.mxu0 0
        %3871 = vmatpush1.bf16.msra.mxu0 %v3849
        %3872 = vmatprep.subr.bf16.mxu0 0
        %3873 = vmatpush1.bf16.msra.mxu0 %v3850
        %3874 = vmatprep.subr.bf16.mxu0 0
        %3875 = vmatpush1.bf16.msra.mxu0 %v3851
        %3876 = vmatprep.subr.bf16.mxu0 0
        %3877 = vmatpush1.bf16.msra.mxu0 0
        %3878 = vmatprep.subr.bf16.mxu0 0
        %3879 = vmatpush1.bf16.msra.mxu0 0
        %3880 = vmatprep.subr.bf16.mxu0 0
        %3881 = vmatpush1.bf16.msra.mxu0 0
        %3882 = vmatprep.subr.bf16.mxu0 0
        %3883 = vmatpush1.bf16.msra.mxu0 0
        %3884 = vmatprep.subr.bf16.mxu0 0
        %3885 = vmatpush1.bf16.msra.mxu0 0
        %3886 = vmatprep.subr.bf16.mxu0 0
        %3887 = vmatpush1.bf16.msra.mxu0 0
        %3888 = vmatprep.subr.bf16.mxu0 0
        %3889 = vmatpush1.bf16.msra.mxu0 0
        %3890 = vmatprep.subr.bf16.mxu0 0
        %3891 = vmatpush1.bf16.msra.mxu0 0
        %3892 = vmatprep.subr.bf16.mxu0 0
        %3893 = vmatpush1.bf16.msra.mxu0 0
        %3894 = vmatprep.subr.bf16.mxu0 0
        %3895 = vmatpush1.bf16.msra.mxu0 0
        %3896 = vmatprep.subr.bf16.mxu0 0
        %3897 = vmatpush1.bf16.msra.mxu0 0
        %3898 = vmatprep.subr.bf16.mxu0 0
        %3899 = vmatpush1.bf16.msra.mxu0 0
        %3900 = vmatprep.mubr.bf16.mxu0 0
        %3901 = vmatmul.mubr.bf16.gmra.mrb[0].mxu0 %v3857
        %v3902 = vpop.f32.mrb[0].mxu0
        %v3903 = vadd.f32 %v3830, %v3902
        %v3904 = vpop.f32.mrb[0].mxu0
        %v3905 = vpop.f32.mrb[0].mxu0
        %v3906 = vadd.f32 %v3830, %v3905
        %v3907 = vpop.f32.mrb[0].mxu0
        %3908 = vmatprep.mubr.bf16.mxu0 0
        %3909 = vmatmul.mubr.bf16.gmra.mrb[0].mxu0 %v3860
        %v3910 = vpop.f32.mrb[0].mxu0
        %v3911 = vadd.f32 %v3830, %v3910
        %v3912 = vpop.f32.mrb[0].mxu0
        %v3913 = vpop.f32.mrb[0].mxu0
        %v3914 = vadd.f32 %v3830, %v3913
        %v3915 = vpop.f32.mrb[0].mxu0
        %3916 = vmatprep.mubr.bf16.mxu0 0
        %3917 = vmatmul.mubr.bf16.gmra.mrb[0].mxu0 %v3863
        %v3918 = vpop.f32.mrb[0].mxu0
        %v3919 = vadd.f32 %v3830, %v3918
        %v3920 = vpop.f32.mrb[0].mxu0
        %v3921 = vpop.f32.mrb[0].mxu0
        %v3922 = vadd.f32 %v3830, %v3921
        %v3923 = vpop.f32.mrb[0].mxu0
        %3924 = vmatprep.mubr.bf16.mxu0 0
        %3925 = vmatmul.mubr.bf16.gmra.mrb[0].mxu0 %v3866
        %v3926 = vpop.f32.mrb[0].mxu0
        %v3927 = vadd.f32 %v3830, %v3926
        %v3928 = vpop.f32.mrb[0].mxu0
        %v3929 = vpop.f32.mrb[0].mxu0
        %v3930 = vadd.f32 %v3830, %v3929
        %v3931 = vpop.f32.mrb[0].mxu0
        %3932 = vdwg.mxu0
        %3933 = vst.msk [vmem:[%s340] sm:$0xff] %vm393, %v3903
        %3934 = vst.msk [vmem:[%s340 + $0x8] sm:$0xff] %vm393, %v3906
        %3935 = vst.msk [vmem:[%s340 + $0x10] sm:$0xff] %vm393, %v3911
        %3936 = vst.msk [vmem:[%s340 + $0x18] sm:$0xff] %vm393, %v3914
        %3937 = vst.msk [vmem:[%s340 + $0x20] sm:$0xff] %vm393, %v3919
        %3938 = vst.msk [vmem:[%s340 + $0x28] sm:$0xff] %vm393, %v3922
        %3939 = vst.msk [vmem:[%s340 + $0x30] sm:$0xff] %vm393, %v3927
        %3940 = vst.msk [vmem:[%s340 + $0x38] sm:$0xff] %vm393, %v3930
        %s3941 = sand.u32 %s186, 1
        %s3942 = scalar_lea.sflag [#allocation5], %s3941
        %s3943 = sand.u32 %s186, 1
        %s3944 = smul.addr %s3943, 64
        %s3945 = scalar_lea.vmem [#allocation11], %s3944
        // Predicated region
        $region65: #{tpu_custom_call.1} parent=47 // pred_check
          %p3946 = pneg %p196
        $region66: #{tpu_custom_call.1} parent=47 // pred_check_branch
          %3948 = sbr.rel (%p3946) target = $region68
        $region67: #{tpu_custom_call.1} parent=47 // pred_region
          %s3950 = ssub.s32 1024, 1024
          %3951 = vsyncadd %s3942, %s3950
          %s3952 = smul.addr %s26, 8
          %s3953 = smul.addr %s3952, 128
          %s3954 = scalar_lea.hbm %s7, %s3953
          %s3955 = sshll.u32 %s3945, 4
          %s3956 = int_to_ptr.vmem [resolvable:$true] %s3955
          %3961 = dma.vmem_to_hbm [thread:$0]  %s3956, 1024, %s3954, %s3942, 128, 128, 8
        $region68: #{tpu_custom_call.1} parent=47 // pred_fallthru
          _
      $region48: #{tpu_custom_call.1} parent=5 // pred_fallthru
        _
      %p3962 = scmp.le.s32.totalorder 2, %s21
      // Predicated region
      $region69: #{tpu_custom_call.1} parent=5 // pred_check
        %p3963 = pneg %p3962
      $region70: #{tpu_custom_call.1} parent=5 // pred_check_branch
        %3965 = sbr.rel (%p3963) target = $region72
      $region71: #{tpu_custom_call.1} parent=5 // pred_region
        %s3966 = ssub.s32 %s21, 2
        // Predicated region
        $region73: #{tpu_custom_call.1} parent=71 // pred_check
          %p3967 = pneg %p202
        $region74: #{tpu_custom_call.1} parent=71 // pred_check_branch
          %3969 = sbr.rel (%p3967) target = $region76
        $region75: #{tpu_custom_call.1} parent=71 // pred_region
          %s3970 = sand.u32 %s187, 1
          %s3971 = scalar_lea.sflag [#allocation5], %s3970
          %s3972 = sand.u32 %s187, 1
          %s3973 = smul.addr %s3972, 64
          %s3974 = scalar_lea.vmem [#allocation11], %s3973
          %3975 = dma.done %s3971, 1024
        $region76: #{tpu_custom_call.1} parent=71 // pred_fallthru
          _
      $region72: #{tpu_custom_call.1} parent=5 // pred_fallthru
        _
    $region6: #{tpu_custom_call.1} parent=1 // loop_footer
      %s25 = sadd.s32 1, %s21
    $region7: #{tpu_custom_call.1} parent=1 // loop_footer_branch
      %20 = sbr.rel target = $region3
    $region8: #{tpu_custom_call.1} parent=1 // loop_exit
      _
    %3976 = vsyncpa [#allocation4], 1
    %s3977 = scalar_lea.sflag [#allocation4], 1
    %3978 = vsyncpa %s3977, 1
    %3979 = vsyncpa [#allocation7], 1
    %3980 = vsyncpa [#allocation10], 1
    %3981 = vsyncpa [#allocation5], 1
    %s3982 = scalar_lea.sflag [#allocation5], 1
    %3983 = vsyncpa %s3982, 1

</llo_original>
